<compile_context>
chip_gen: v5e
topology: v5e:2x2
jax: 0.10.0
libtpu: 0.0.40
codegen_flags: <defaults>
</compile_context>

<pallas_src>
import functools

import jax
import jax.numpy as jnp
from jax.experimental import pallas as pl
from jax.experimental.pallas import tpu as pltpu

BF16 = jnp.bfloat16
F32 = jnp.float32

# Tile caps.  v6e/v5e (128 MiB VMEM) can raise TM/TN/TK and VMEM_LIMIT for
# production shapes; 48 MiB keeps headroom inside v7x's 64 MiB physical VMEM.
TM_MAX = 256
TK_MAX = 512
TN_MAX = 512
VMEM_LIMIT = 48 * 1024 * 1024


def _ceil_to(x, m):
    return ((x + m - 1) // m) * m


def _pick_tile(dim, align, max_tile):
    """Aligned tile minimizing padding for large dims."""
    padded = _ceil_to(dim, align)
    if padded <= max_tile:
        return padded, padded
    best_t, best_p = None, None
    for t in range(max_tile, align - 1, -align):
        p = _ceil_to(dim, t)
        if best_p is None or p < best_p:
            best_t, best_p = t, p
    return best_t, best_p


def _choose_tile(dim, max_tile):
    """Full-extent block (no padding, allowed by the (8,128) rule) when small,
    divisor tile when large."""
    if dim <= max_tile:
        return dim, dim
    for a in (512, 256, 128):
        if a <= max_tile and dim % a == 0:
            return a, dim
    return _pick_tile(dim, 128, max_tile)


def _m_tile(M):
    # Full-extent block when small (no runtime pad / slice); 16-aligned tiles
    # otherwise (bf16 packs two rows per sublane).
    return (M, M) if M <= TM_MAX else _pick_tile(M, 16, TM_MAX)


# --------------------------------------------------------------------------
# Pallas kernel 1a/1b: direct conv as kh*kw tap-accumulated GEMMs (no im2col).
#   x_ref : (1, P*Hh, Wh, Cin)  padded + stride-phase-split activation, VMEM-resident
#   w_ref : (kh*kw*Cin, tn)     tap-major weight slab (bf16)
#   sba   : (3, tn)             packed [BN scale, BN bias, PReLU alpha]
#   All taps and the full Cin reduce inside one grid step (f32 accumulator).
# --------------------------------------------------------------------------
def _conv_taps(x_ref, w_ref, *, kh, kw, stride, ho, wo, hh, cin, cout):
    m = ho * wo
    pw = min(kw, stride)
    acc = jnp.zeros((m, cout), jnp.float32)
    for i in range(kh):
        for j in range(kw):
            p = (i % stride) * pw + (j % stride)            # stride phase index
            a = x_ref[0, pl.ds(p * hh + i // stride, ho), pl.ds(j // stride, wo), :]
            a = a.reshape(m, cin)
            wt = w_ref[(i * kw + j) * cin:(i * kw + j + 1) * cin, :]
            acc = acc + jnp.dot(a, wt, preferred_element_type=jnp.float32)
    return acc


def _conv_epilogue(acc, sba_ref):
    y = acc * sba_ref[0:1, :] + sba_ref[1:2, :]             # folded BN / bias
    return jnp.where(y >= 0.0, y, sba_ref[2:3, :] * y)      # PReLU (alpha=1 => id)


def _conv_kernel(x_ref, w_ref, sba_ref, o_ref, *, kh, kw, stride, ho, wo, hh, cin):
    acc = _conv_taps(x_ref, w_ref, kh=kh, kw=kw, stride=stride,
                     ho=ho, wo=wo, hh=hh, cin=cin, cout=o_ref.shape[2])
    o_ref[0] = _conv_epilogue(acc, sba_ref).astype(o_ref.dtype)


def _conv_res_kernel(x_ref, w_ref, sba_ref, res_ref, o_ref, *, kh, kw, stride,
                     ho, wo, hh, cin):
    acc = _conv_taps(x_ref, w_ref, kh=kh, kw=kw, stride=stride,
                     ho=ho, wo=wo, hh=hh, cin=cin, cout=o_ref.shape[2])
    y = _conv_epilogue(acc, sba_ref) + res_ref[0].astype(jnp.float32)
    o_ref[0] = y.astype(o_ref.dtype)


def _phase_split(xpad, kh, kw, stride, ho, wo):
    """Stack the stride phases of a padded NHWC activation along H so tap
    windows become plain unit-stride slices inside the kernel."""
    ph_h, ph_w = min(kh, stride), min(kw, stride)
    hh = (kh - 1) // stride + ho
    wh = (kw - 1) // stride + wo
    phases = []
    for pi in range(ph_h):
        for pj in range(ph_w):
            phases.append(xpad[:, pi::stride, pj::stride, :][:, :hh, :wh, :])
    return jnp.concatenate(phases, axis=1), hh, wh          # (N, P*hh, wh, C)


def conv2d(x, cw, stride, res=None, out_dtype=BF16):
    """Conv (+folded BN +PReLU [+residual]) on NHWC input, one Pallas call."""
    n, h, w, c = x.shape
    kh, kw, cout, tn = cw["kh"], cw["kw"], cw["cout"], cw["tn"]
    pad = (kh - 1) // 2
    ho = (h + 2 * pad - kh) // stride + 1
    wo = (w + 2 * pad - kw) // stride + 1

    xp = x.astype(BF16)
    if pad:
        xp = jnp.pad(xp, ((0, 0), (pad, pad), (pad, pad), (0, 0)))
    xph, hh, wh = _phase_split(xp, kh, kw, stride, ho, wo)

    kwargs = dict(kh=kh, kw=kw, stride=stride, ho=ho, wo=wo, hh=hh, cin=c)
    in_specs = [
        pl.BlockSpec((1, xph.shape[1], wh, c), lambda b, j: (b, 0, 0, 0)),
        pl.BlockSpec((kh * kw * c, tn), lambda b, j: (0, j)),
        pl.BlockSpec((3, tn), lambda b, j: (0, j)),
    ]
    operands = [xph, cw["W"], cw["sba"]]
    if res is None:
        kernel = functools.partial(_conv_kernel, **kwargs)
    else:
        kernel = functools.partial(_conv_res_kernel, **kwargs)
        in_specs.append(pl.BlockSpec((1, ho * wo, tn), lambda b, j: (b, 0, j)))
        operands.append(res.reshape(n, ho * wo, cout).astype(BF16))

    out = pl.pallas_call(
        kernel,
        out_shape=jax.ShapeDtypeStruct((n, ho * wo, cout), out_dtype),
        grid=(n, cout // tn),
        in_specs=in_specs,
        out_specs=pl.BlockSpec((1, ho * wo, tn), lambda b, j: (b, 0, j)),
        compiler_params=pltpu.CompilerParams(
            dimension_semantics=("parallel", "parallel"),
            vmem_limit_bytes=VMEM_LIMIT),
    )(*operands)
    return out.reshape(n, ho, wo, cout)


# --------------------------------------------------------------------------
# Pallas kernel 2a/2b: tiled matmul, bf16 operands, f32 accumulation, fused
# (scale, bias, PReLU) epilogue; variant 2b also fuses row-wise L2 normalize.
# --------------------------------------------------------------------------
def _mm_kernel(a_ref, b_ref, sba_ref, o_ref, acc_ref):
    k = pl.program_id(2)

    @pl.when(k == 0)
    def _():
        acc_ref[...] = jnp.zeros_like(acc_ref)

    acc_ref[...] += jnp.dot(a_ref[...], b_ref[...], preferred_element_type=jnp.float32)

    @pl.when(k == pl.num_programs(2) - 1)
    def _():
        y = acc_ref[...] * sba_ref[0:1, :] + sba_ref[1:2, :]
        y = jnp.where(y >= 0.0, y, sba_ref[2:3, :] * y)
        o_ref[...] = y.astype(o_ref.dtype)


def _mm_l2norm_kernel(a_ref, b_ref, sba_ref, o_ref, acc_ref):
    k = pl.program_id(1)

    @pl.when(k == 0)
    def _():
        acc_ref[...] = jnp.zeros_like(acc_ref)

    acc_ref[...] += jnp.dot(a_ref[...], b_ref[...], preferred_element_type=jnp.float32)

    @pl.when(k == pl.num_programs(1) - 1)
    def _():
        y = acc_ref[...] * sba_ref[0:1, :] + sba_ref[1:2, :]
        # F.normalize fused: the full embedding row is resident (single N block).
        y = y * jax.lax.rsqrt(jnp.sum(y * y, axis=1, keepdims=True) + 1e-12)
        o_ref[...] = y.astype(o_ref.dtype)


def _prep_gemm(w2d, scale=None, bias=None, alpha=None):
    """Pad/cast a GEMM RHS and pack its fused epilogue params once, at init."""
    K, N = w2d.shape
    tk, Kp = _choose_tile(K, TK_MAX)
    tn, Np = _choose_tile(N, TN_MAX)
    b = w2d.astype(BF16)
    if (Kp, Np) != (K, N):
        b = jnp.zeros((Kp, Np), BF16).at[:K, :N].set(b)
    sba = jnp.zeros((3, Np), F32)
    sba = sba.at[0, :N].set(jnp.ones((N,), F32) if scale is None else scale.astype(F32))
    if bias is not None:
        sba = sba.at[1, :N].set(bias.astype(F32))
    sba = sba.at[2, :N].set(jnp.ones((N,), F32) if alpha is None else alpha.astype(F32))
    return dict(B=b, sba=sba, K=K, N=N, tk=tk, tn=tn)


def pl_matmul(a, gemm, out_dtype=BF16):
    M, K = a.shape
    assert K == gemm["K"]
    N, tk, tn = gemm["N"], gemm["tk"], gemm["tn"]
    Kp, Np = gemm["B"].shape
    tm, Mp = _m_tile(M)
    ap = a.astype(BF16)
    if (Mp, Kp) != (M, K):
        ap = jnp.pad(ap, ((0, Mp - M), (0, Kp - K)))
    out = pl.pallas_call(
        _mm_kernel,
        out_shape=jax.ShapeDtypeStruct((Mp, Np), out_dtype),
        grid=(Mp // tm, Np // tn, Kp // tk),
        in_specs=[pl.BlockSpec((tm, tk), lambda i, j, k: (i, k)),
                  pl.BlockSpec((tk, tn), lambda i, j, k: (k, j)),
                  pl.BlockSpec((3, tn), lambda i, j, k: (0, j))],
        out_specs=pl.BlockSpec((tm, tn), lambda i, j, k: (i, j)),
        scratch_shapes=[pltpu.VMEM((tm, tn), jnp.float32)],
        compiler_params=pltpu.CompilerParams(
            dimension_semantics=("parallel", "parallel", "arbitrary"),
            vmem_limit_bytes=VMEM_LIMIT),
    )(ap, gemm["B"], gemm["sba"])
    return out if (Mp, Np) == (M, N) else out[:M, :N]


def pl_matmul_l2norm(a, gemm):
    """fc GEMM with folded BN/bias + fused F.normalize (single N block required).
    TODO(synk): on v7x this leaves one TC idle for tiny batches; split M when B>=2 tiles."""
    M, K = a.shape
    assert K == gemm["K"]
    N, tk = gemm["N"], gemm["tk"]
    Kp, Np = gemm["B"].shape
    assert Np <= TN_MAX, "fused L2-norm needs the full row in one N block"
    tm, Mp = _m_tile(M)
    ap = a.astype(BF16)
    if (Mp, Kp) != (M, K):
        ap = jnp.pad(ap, ((0, Mp - M), (0, Kp - K)))
    out = pl.pallas_call(
        _mm_l2norm_kernel,
        out_shape=jax.ShapeDtypeStruct((Mp, Np), F32),
        grid=(Mp // tm, Kp // tk),
        in_specs=[pl.BlockSpec((tm, tk), lambda i, k: (i, k)),
                  pl.BlockSpec((tk, Np), lambda i, k: (k, 0)),
                  pl.BlockSpec((3, Np), lambda i, k: (0, 0))],
        out_specs=pl.BlockSpec((tm, Np), lambda i, k: (i, 0)),
        scratch_shapes=[pltpu.VMEM((tm, Np), jnp.float32)],
        compiler_params=pltpu.CompilerParams(
            dimension_semantics=("parallel", "arbitrary"),
            vmem_limit_bytes=VMEM_LIMIT),
    )(ap, gemm["B"], gemm["sba"])
    return out if (Mp, Np) == (M, N) else out[:M, :N]


# --------------------------------------------------------------------------
# Pallas kernel 3: ElasticArcFace head, tiled over the class dimension.
#   logits = s * cos(theta + m_i) for the target class, s * cos(theta) otherwise,
#   cos(t+m) = cos(t)cos(m) - sin(t)sin(m) with sin(t)=sqrt(1-cos^2) (t in [0,pi],
#   so this is exactly cos(acos(c)+m) as in the reference).  Class weights are
#   pre-normalized once in XLA; the dot runs in bf16 with an f32 MXU accumulator.
# --------------------------------------------------------------------------
def _arcface_kernel(en_ref, w_ref, lab_ref, cm_ref, sm_ref, logit_ref, *, s):
    j = pl.program_id(0)
    tn = logit_ref.shape[1]
    cos = jnp.dot(en_ref[...], w_ref[...], preferred_element_type=jnp.float32)
    cos = jnp.clip(cos, -1.0, 1.0)
    sin = jnp.sqrt(jnp.maximum(1.0 - cos * cos, 0.0))
    cls = jax.lax.broadcasted_iota(jnp.int32, cos.shape, 1) + j * tn
    tgt = cls == lab_ref[...]                               # (B,1) broadcast vs (B,tn)
    cm = jnp.where(tgt, cm_ref[...], 1.0)
    sm = jnp.where(tgt, sm_ref[...], 0.0)
    logit_ref[...] = s * (cos * cm - sin * sm)


def pl_arcface_head(en, w, labels, margins, s):
    """en: already-normalized embeddings (B,D); w: (D,C) class weights."""
    B, D = en.shape
    _, C = w.shape
    wn = (w / jnp.maximum(jnp.linalg.norm(w, axis=0, keepdims=True), 1e-12)).astype(BF16)
    tn, Cp = _choose_tile(C, TN_MAX)
    if Cp != C:
        wn = jnp.pad(wn, ((0, 0), (0, Cp - C)))
    lab = labels.astype(jnp.int32).reshape(B, 1)
    cm = jnp.cos(margins.astype(F32)).reshape(B, 1)
    sm = jnp.sin(margins.astype(F32)).reshape(B, 1)

    logits = pl.pallas_call(
        functools.partial(_arcface_kernel, s=float(s)),
        out_shape=jax.ShapeDtypeStruct((B, Cp), F32),
        grid=(Cp // tn,),
        in_specs=[pl.BlockSpec((B, D), lambda j: (0, 0)),
                  pl.BlockSpec((D, tn), lambda j: (0, j)),
                  pl.BlockSpec((B, 1), lambda j: (0, 0)),
                  pl.BlockSpec((B, 1), lambda j: (0, 0)),
                  pl.BlockSpec((B, 1), lambda j: (0, 0))],
        out_specs=pl.BlockSpec((B, tn), lambda j: (0, j)),
        compiler_params=pltpu.CompilerParams(
            dimension_semantics=("parallel",),
            vmem_limit_bytes=VMEM_LIMIT),
    )(en.astype(BF16), wn, lab, cm, sm)
    return logits if Cp == C else logits[:, :C]


# --------------------------------------------------------------------------
# Glue: IBasicBlock, backbone, full forward
# --------------------------------------------------------------------------
def iblock(x, p):
    # IBasicBlock: bn1 -> conv3x3 -> bn2 -> PReLU -> conv3x3(stride) -> bn3, + shortcut
    xb = (x.astype(F32) + p["bn1_shift"]).astype(BF16)        # bn1 (scale folded into conv1 W)
    h = conv2d(xb, p["conv1"], stride=1)                      # conv1 + bn2 + PReLU fused
    if p["down"] is not None:
        identity = conv2d(x, p["down"], stride=p["stride"])   # 1x1 conv + BN fused
    else:
        identity = x
    return conv2d(h, p["conv2"], stride=p["stride"], res=identity)  # conv2 + bn3 + residual fused


def backbone_forward(bp, x_nhwc):
    x = conv2d(x_nhwc, bp["stem"], stride=1)                  # stem conv3x3 + BN + PReLU fused
    for stage in bp["stages"]:
        for blk in stage:
            x = iblock(x, blk)
    n, h, w, c = x.shape
    flat = x.reshape(n, h * w * c)    # NHWC flatten, matches fc-weight row order (no transpose)
    # TODO(synk): iresnet Dropout (p=0 by default) is a no-op and omitted.
    return pl_matmul_l2norm(flat, bp["fc"])   # fc + folded BN2/BN1d + fused F.normalize


def ada_translearn_forward(params, x_nchw, labels, margin_key,
                           teacher_m=0.35, s=64.0, std=0.0125):
    x = jnp.transpose(x_nchw, (0, 2, 3, 1)).astype(BF16)      # NCHW -> NHWC, bf16 activations
    feat_t = backbone_forward(params["teacher_backbone"], x)  # normalized teacher features (f32)
    feat_s = backbone_forward(params["student_backbone"], x)  # normalized student features (f32)
    # ElasticArcFace: per-sample margin ~ N(m, std), deterministic via fixed key
    margins = teacher_m + std * jax.random.normal(margin_key, (labels.shape[0],), F32)
    id_class_t = pl_arcface_head(feat_t, params["teacher_head_w"], labels, margins, s)
    id_class_s = pl_matmul(feat_s, params["student_head"], out_dtype=F32)   # nn.Linear head
    return feat_s, feat_t, id_class_s, id_class_t


# --------------------------------------------------------------------------
# Deterministic parameter initialization (synthetic; no checkpoint loading).
# Weights are prepared (reshaped, BN-folded, padded, bf16-cast) once here.
# --------------------------------------------------------------------------
def _keygen(key):
    while True:
        key, sub = jax.random.split(key)
        yield sub


def _prep_conv(w4d, bn_scale=None, bn_bias=None, prelu=None, in_scale=None):
    kh, kw, cin, cout = w4d.shape
    if in_scale is not None:
        # Fold the preceding BN's per-input-channel scale into the conv weights
        # (exact under zero padding since scale*0 = 0).
        w4d = w4d * in_scale.reshape(1, 1, cin, 1)
    assert cout <= TN_MAX or cout % 256 == 0
    tn = cout if cout <= TN_MAX else 256
    ones = jnp.ones((cout,), F32)
    sba = jnp.stack([ones if bn_scale is None else bn_scale.astype(F32),
                     jnp.zeros((cout,), F32) if bn_bias is None else bn_bias.astype(F32),
                     ones if prelu is None else prelu.astype(F32)], axis=0)
    return dict(kh=kh, kw=kw, cin=cin, cout=cout, tn=tn,
                W=w4d.reshape(kh * kw * cin, cout).astype(BF16), sba=sba)


def init_backbone_params(key, channels=(8, 16, 32, 64), blocks=(1, 1, 1, 1),
                         emb_dim=512, in_ch=3, input_size=16):
    kg = _keygen(key)

    def conv_w(kh, kw, ci, co):
        return jax.random.normal(next(kg), (kh, kw, ci, co), F32) * (2.0 / (kh * kw * ci)) ** 0.5

    def bn(c):  # folded eval-mode BatchNorm affine
        return (1.0 + 0.1 * jax.random.normal(next(kg), (c,), F32),
                0.1 * jax.random.normal(next(kg), (c,), F32))

    c0 = channels[0]
    s0, b0 = bn(c0)
    stem = _prep_conv(conv_w(3, 3, in_ch, c0), s0, b0, jnp.full((c0,), 0.25, F32))

    stages = []
    inplanes = c0
    spatial = input_size
    for planes, nblk in zip(channels, blocks):
        stage = []
        for bi in range(nblk):
            stride = 2 if bi == 0 else 1
            need_down = (stride != 1) or (inplanes != planes)
            bn1s, bn1b = bn(inplanes)
            bn2s, bn2b = bn(planes)
            bn3s, bn3b = bn(planes)
            blk = dict(
                stride=stride,
                # bn1 scale folded into conv1's weights; only the shift remains.
                bn1_shift=(bn1b / bn1s).astype(F32),
                conv1=_prep_conv(conv_w(3, 3, inplanes, planes), bn2s, bn2b,
                                 jnp.full((planes,), 0.25, F32), in_scale=bn1s),
                conv2=_prep_conv(conv_w(3, 3, planes, planes), bn3s, bn3b),
                down=None)
            if need_down:
                ds, db = bn(planes)
                blk["down"] = _prep_conv(conv_w(1, 1, inplanes, planes), ds, db)
            stage.append(blk)
            inplanes = planes
        spatial //= 2
        stages.append(stage)

    # Final bn2 -> flatten -> fc -> features(BN1d), all folded into one GEMM.
    # fc weight rows are in NHWC-flatten order (row r <-> channel r % C).
    bn2s, bn2b = bn(inplanes)
    hw = spatial * spatial
    fc_in = inplanes * hw
    fc_w = jax.random.normal(next(kg), (fc_in, emb_dim), F32) * (1.0 / fc_in) ** 0.5
    fc_b = jnp.zeros((emb_dim,), F32)
    feat_s, feat_b = bn(emb_dim)
    scale_rows = jnp.tile(bn2s, hw)
    bias_rows = jnp.tile(bn2b, hw)
    w_final = fc_w * scale_rows[:, None] * feat_s[None, :]
    b_final = (fc_b + bias_rows @ fc_w) * feat_s + feat_b
    fc = _prep_gemm(w_final, bias=b_final)

    return dict(stem=stem, stages=stages, fc=fc)


if __name__ == "__main__":
    key = jax.random.PRNGKey(0)
    k_tb, k_sb, k_th, k_sh, k_shb, kx, klab, kmargin = jax.random.split(key, 8)

    num_classes = 10
    params = dict(
        teacher_backbone=init_backbone_params(k_tb),
        student_backbone=init_backbone_params(k_sb),
        teacher_head_w=0.01 * jax.random.normal(k_th, (512, num_classes), F32),
        student_head=_prep_gemm(
            0.01 * jax.random.normal(k_sh, (512, num_classes), F32),
            bias=0.01 * jax.random.normal(k_shb, (num_classes,), F32)),
    )

    x = jax.random.normal(kx, (2, 3, 16, 16), F32)            # NCHW, like PyTorch
    labels = jax.random.randint(klab, (2,), 0, num_classes)

    outs = ada_translearn_forward(params, x, labels, kmargin, teacher_m=0.35, s=64.0)
    jax.block_until_ready(outs)
    id_features_s, id_features_t, id_class_s, id_class_t = outs

    assert id_features_s.shape == (2, 512) and id_features_t.shape == (2, 512)
    assert id_class_s.shape == (2, num_classes) and id_class_t.shape == (2, num_classes)
    for o in outs:
        assert bool(jnp.all(jnp.isfinite(o)))
    print("KERNEL_OK")
</pallas_src>

<mosaic_0001>
module attributes {stable_mosaic.version = 11 : i64} {
  func.func @_conv_kernel(%arg0: i32, %arg1: i32, %arg2: memref<1x18x18x3xbf16, #tpu.memory_space<vmem>>, %arg3: memref<27x8xbf16, #tpu.memory_space<vmem>>, %arg4: memref<3x8xf32, #tpu.memory_space<vmem>>, %arg5: memref<1x256x8xbf16, #tpu.memory_space<vmem>>) attributes {dimension_semantics = [#tpu.dimension_semantics<parallel>, #tpu.dimension_semantics<parallel>], iteration_bounds = array<i64: 2, 1>, scalar_prefetch = 0 : i64, scratch_operands = 0 : i64, tpu.core_type = #tpu.core_type<tc>, window_params = [{transform_indices = @transform_0, window_bounds = array<i64: 1, 18, 18, 3>}, {transform_indices = @transform_1, window_bounds = array<i64: 27, 8>}, {transform_indices = @transform_2, window_bounds = array<i64: 3, 8>}, {transform_indices = @transform_3, window_bounds = array<i64: 1, 256, 8>}]} {
    %cst = arith.constant 0.000000e+00 : f32
    %0 = vector.broadcast %cst : f32 to vector<256x8xf32>
    %c0 = arith.constant 0 : index
    %c0_0 = arith.constant 0 : index
    %c0_1 = arith.constant 0 : index
    %c0_2 = arith.constant 0 : index
    %1 = vector.load %arg2[%c0, %c0_0, %c0_1, %c0_2] : memref<1x18x18x3xbf16, #tpu.memory_space<vmem>>, vector<1x16x16x3xbf16>
    %2 = vector.shape_cast %1 : vector<1x16x16x3xbf16> to vector<16x16x3xbf16>
    %3 = vector.shape_cast %2 : vector<16x16x3xbf16> to vector<256x3xbf16>
    %c0_3 = arith.constant 0 : index
    %c0_4 = arith.constant 0 : index
    %4 = vector.load %arg3[%c0_3, %c0_4] : memref<27x8xbf16, #tpu.memory_space<vmem>>, vector<3x8xbf16>
    %cst_5 = arith.constant dense<0.000000e+00> : vector<256x8xf32>
    %5 = tpu.matmul %3, %4, %cst_5 {dimension_numbers = #tpu.dot_dimension_numbers<[1], [0], [0], [1], [0, 0, 1, 1], [], []>} : vector<256x3xbf16>, vector<3x8xbf16>, vector<256x8xf32> -> vector<256x8xf32>
    %6 = arith.addf %0, %5 : vector<256x8xf32>
    %c0_6 = arith.constant 0 : index
    %c0_7 = arith.constant 0 : index
    %c1 = arith.constant 1 : index
    %c0_8 = arith.constant 0 : index
    %7 = vector.load %arg2[%c0_6, %c0_7, %c1, %c0_8] : memref<1x18x18x3xbf16, #tpu.memory_space<vmem>>, vector<1x16x16x3xbf16>
    %8 = vector.shape_cast %7 : vector<1x16x16x3xbf16> to vector<16x16x3xbf16>
    %9 = vector.shape_cast %8 : vector<16x16x3xbf16> to vector<256x3xbf16>
    %c3 = arith.constant 3 : index
    %c0_9 = arith.constant 0 : index
    %10 = vector.load %arg3[%c3, %c0_9] : memref<27x8xbf16, #tpu.memory_space<vmem>>, vector<3x8xbf16>
    %cst_10 = arith.constant dense<0.000000e+00> : vector<256x8xf32>
    %11 = tpu.matmul %9, %10, %cst_10 {dimension_numbers = #tpu.dot_dimension_numbers<[1], [0], [0], [1], [0, 0, 1, 1], [], []>} : vector<256x3xbf16>, vector<3x8xbf16>, vector<256x8xf32> -> vector<256x8xf32>
    %12 = arith.addf %6, %11 : vector<256x8xf32>
    %c0_11 = arith.constant 0 : index
    %c0_12 = arith.constant 0 : index
    %c2 = arith.constant 2 : index
    %c0_13 = arith.constant 0 : index
    %13 = vector.load %arg2[%c0_11, %c0_12, %c2, %c0_13] : memref<1x18x18x3xbf16, #tpu.memory_space<vmem>>, vector<1x16x16x3xbf16>
    %14 = vector.shape_cast %13 : vector<1x16x16x3xbf16> to vector<16x16x3xbf16>
    %15 = vector.shape_cast %14 : vector<16x16x3xbf16> to vector<256x3xbf16>
    %c6 = arith.constant 6 : index
    %c0_14 = arith.constant 0 : index
    %16 = vector.load %arg3[%c6, %c0_14] : memref<27x8xbf16, #tpu.memory_space<vmem>>, vector<3x8xbf16>
    %cst_15 = arith.constant dense<0.000000e+00> : vector<256x8xf32>
    %17 = tpu.matmul %15, %16, %cst_15 {dimension_numbers = #tpu.dot_dimension_numbers<[1], [0], [0], [1], [0, 0, 1, 1], [], []>} : vector<256x3xbf16>, vector<3x8xbf16>, vector<256x8xf32> -> vector<256x8xf32>
    %18 = arith.addf %12, %17 : vector<256x8xf32>
    %c0_16 = arith.constant 0 : index
    %c1_17 = arith.constant 1 : index
    %c0_18 = arith.constant 0 : index
    %c0_19 = arith.constant 0 : index
    %19 = vector.load %arg2[%c0_16, %c1_17, %c0_18, %c0_19] : memref<1x18x18x3xbf16, #tpu.memory_space<vmem>>, vector<1x16x16x3xbf16>
    %20 = vector.shape_cast %19 : vector<1x16x16x3xbf16> to vector<16x16x3xbf16>
    %21 = vector.shape_cast %20 : vector<16x16x3xbf16> to vector<256x3xbf16>
    %c9 = arith.constant 9 : index
    %c0_20 = arith.constant 0 : index
    %22 = vector.load %arg3[%c9, %c0_20] : memref<27x8xbf16, #tpu.memory_space<vmem>>, vector<3x8xbf16>
    %cst_21 = arith.constant dense<0.000000e+00> : vector<256x8xf32>
    %23 = tpu.matmul %21, %22, %cst_21 {dimension_numbers = #tpu.dot_dimension_numbers<[1], [0], [0], [1], [0, 0, 1, 1], [], []>} : vector<256x3xbf16>, vector<3x8xbf16>, vector<256x8xf32> -> vector<256x8xf32>
    %24 = arith.addf %18, %23 : vector<256x8xf32>
    %c0_22 = arith.constant 0 : index
    %c1_23 = arith.constant 1 : index
    %c1_24 = arith.constant 1 : index
    %c0_25 = arith.constant 0 : index
    %25 = vector.load %arg2[%c0_22, %c1_23, %c1_24, %c0_25] : memref<1x18x18x3xbf16, #tpu.memory_space<vmem>>, vector<1x16x16x3xbf16>
    %26 = vector.shape_cast %25 : vector<1x16x16x3xbf16> to vector<16x16x3xbf16>
    %27 = vector.shape_cast %26 : vector<16x16x3xbf16> to vector<256x3xbf16>
    %c12 = arith.constant 12 : index
    %c0_26 = arith.constant 0 : index
    %28 = vector.load %arg3[%c12, %c0_26] : memref<27x8xbf16, #tpu.memory_space<vmem>>, vector<3x8xbf16>
    %cst_27 = arith.constant dense<0.000000e+00> : vector<256x8xf32>
    %29 = tpu.matmul %27, %28, %cst_27 {dimension_numbers = #tpu.dot_dimension_numbers<[1], [0], [0], [1], [0, 0, 1, 1], [], []>} : vector<256x3xbf16>, vector<3x8xbf16>, vector<256x8xf32> -> vector<256x8xf32>
    %30 = arith.addf %24, %29 : vector<256x8xf32>
    %c0_28 = arith.constant 0 : index
    %c1_29 = arith.constant 1 : index
    %c2_30 = arith.constant 2 : index
    %c0_31 = arith.constant 0 : index
    %31 = vector.load %arg2[%c0_28, %c1_29, %c2_30, %c0_31] : memref<1x18x18x3xbf16, #tpu.memory_space<vmem>>, vector<1x16x16x3xbf16>
    %32 = vector.shape_cast %31 : vector<1x16x16x3xbf16> to vector<16x16x3xbf16>
    %33 = vector.shape_cast %32 : vector<16x16x3xbf16> to vector<256x3xbf16>
    %c15 = arith.constant 15 : index
    %c0_32 = arith.constant 0 : index
    %34 = vector.load %arg3[%c15, %c0_32] : memref<27x8xbf16, #tpu.memory_space<vmem>>, vector<3x8xbf16>
    %cst_33 = arith.constant dense<0.000000e+00> : vector<256x8xf32>
    %35 = tpu.matmul %33, %34, %cst_33 {dimension_numbers = #tpu.dot_dimension_numbers<[1], [0], [0], [1], [0, 0, 1, 1], [], []>} : vector<256x3xbf16>, vector<3x8xbf16>, vector<256x8xf32> -> vector<256x8xf32>
    %36 = arith.addf %30, %35 : vector<256x8xf32>
    %c0_34 = arith.constant 0 : index
    %c2_35 = arith.constant 2 : index
    %c0_36 = arith.constant 0 : index
    %c0_37 = arith.constant 0 : index
    %37 = vector.load %arg2[%c0_34, %c2_35, %c0_36, %c0_37] : memref<1x18x18x3xbf16, #tpu.memory_space<vmem>>, vector<1x16x16x3xbf16>
    %38 = vector.shape_cast %37 : vector<1x16x16x3xbf16> to vector<16x16x3xbf16>
    %39 = vector.shape_cast %38 : vector<16x16x3xbf16> to vector<256x3xbf16>
    %c18 = arith.constant 18 : index
    %c0_38 = arith.constant 0 : index
    %40 = vector.load %arg3[%c18, %c0_38] : memref<27x8xbf16, #tpu.memory_space<vmem>>, vector<3x8xbf16>
    %cst_39 = arith.constant dense<0.000000e+00> : vector<256x8xf32>
    %41 = tpu.matmul %39, %40, %cst_39 {dimension_numbers = #tpu.dot_dimension_numbers<[1], [0], [0], [1], [0, 0, 1, 1], [], []>} : vector<256x3xbf16>, vector<3x8xbf16>, vector<256x8xf32> -> vector<256x8xf32>
    %42 = arith.addf %36, %41 : vector<256x8xf32>
    %c0_40 = arith.constant 0 : index
    %c2_41 = arith.constant 2 : index
    %c1_42 = arith.constant 1 : index
    %c0_43 = arith.constant 0 : index
    %43 = vector.load %arg2[%c0_40, %c2_41, %c1_42, %c0_43] : memref<1x18x18x3xbf16, #tpu.memory_space<vmem>>, vector<1x16x16x3xbf16>
    %44 = vector.shape_cast %43 : vector<1x16x16x3xbf16> to vector<16x16x3xbf16>
    %45 = vector.shape_cast %44 : vector<16x16x3xbf16> to vector<256x3xbf16>
    %c21 = arith.constant 21 : index
    %c0_44 = arith.constant 0 : index
    %46 = vector.load %arg3[%c21, %c0_44] : memref<27x8xbf16, #tpu.memory_space<vmem>>, vector<3x8xbf16>
    %cst_45 = arith.constant dense<0.000000e+00> : vector<256x8xf32>
    %47 = tpu.matmul %45, %46, %cst_45 {dimension_numbers = #tpu.dot_dimension_numbers<[1], [0], [0], [1], [0, 0, 1, 1], [], []>} : vector<256x3xbf16>, vector<3x8xbf16>, vector<256x8xf32> -> vector<256x8xf32>
    %48 = arith.addf %42, %47 : vector<256x8xf32>
    %c0_46 = arith.constant 0 : index
    %c2_47 = arith.constant 2 : index
    %c2_48 = arith.constant 2 : index
    %c0_49 = arith.constant 0 : index
    %49 = vector.load %arg2[%c0_46, %c2_47, %c2_48, %c0_49] : memref<1x18x18x3xbf16, #tpu.memory_space<vmem>>, vector<1x16x16x3xbf16>
    %50 = vector.shape_cast %49 : vector<1x16x16x3xbf16> to vector<16x16x3xbf16>
    %51 = vector.shape_cast %50 : vector<16x16x3xbf16> to vector<256x3xbf16>
    %c24 = arith.constant 24 : index
    %c0_50 = arith.constant 0 : index
    %52 = vector.load %arg3[%c24, %c0_50] : memref<27x8xbf16, #tpu.memory_space<vmem>>, vector<3x8xbf16>
    %cst_51 = arith.constant dense<0.000000e+00> : vector<256x8xf32>
    %53 = tpu.matmul %51, %52, %cst_51 {dimension_numbers = #tpu.dot_dimension_numbers<[1], [0], [0], [1], [0, 0, 1, 1], [], []>} : vector<256x3xbf16>, vector<3x8xbf16>, vector<256x8xf32> -> vector<256x8xf32>
    %54 = arith.addf %48, %53 : vector<256x8xf32>
    %c0_52 = arith.constant 0 : index
    %c0_53 = arith.constant 0 : index
    %55 = vector.load %arg4[%c0_52, %c0_53] : memref<3x8xf32, #tpu.memory_space<vmem>>, vector<1x8xf32>
    %56 = vector.broadcast %55 : vector<1x8xf32> to vector<256x8xf32>
    %57 = arith.mulf %54, %56 : vector<256x8xf32>
    %c1_54 = arith.constant 1 : index
    %c0_55 = arith.constant 0 : index
    %58 = vector.load %arg4[%c1_54, %c0_55] : memref<3x8xf32, #tpu.memory_space<vmem>>, vector<1x8xf32>
    %59 = vector.broadcast %58 : vector<1x8xf32> to vector<256x8xf32>
    %60 = arith.addf %57, %59 : vector<256x8xf32>
    %cst_56 = arith.constant 0.000000e+00 : f32
    %61 = vector.broadcast %cst_56 : f32 to vector<256x8xf32>
    %62 = arith.cmpf oge, %60, %61 : vector<256x8xf32>
    %c2_57 = arith.constant 2 : index
    %c0_58 = arith.constant 0 : index
    %63 = vector.load %arg4[%c2_57, %c0_58] : memref<3x8xf32, #tpu.memory_space<vmem>>, vector<1x8xf32>
    %64 = vector.broadcast %63 : vector<1x8xf32> to vector<256x8xf32>
    %65 = arith.mulf %64, %60 : vector<256x8xf32>
    %66 = arith.select %62, %60, %65 : vector<256x8xi1>, vector<256x8xf32>
    %67 = arith.truncf %66 : vector<256x8xf32> to vector<256x8xbf16>
    %c0_59 = arith.constant 0 : index
    %c0_60 = arith.constant 0 : index
    %c0_61 = arith.constant 0 : index
    %68 = vector.load %arg5[%c0_59, %c0_60, %c0_61] : memref<1x256x8xbf16, #tpu.memory_space<vmem>>, vector<1x256x8xbf16>
    %69 = vector.shape_cast %68 : vector<1x256x8xbf16> to vector<256x8xbf16>
    %70 = vector.shape_cast %67 : vector<256x8xbf16> to vector<1x256x8xbf16>
    tpu.vector_store %arg5[%c0_59, %c0_60, %c0_61], %70 {strides = array<i32>} : memref<1x256x8xbf16, #tpu.memory_space<vmem>>, vector<1x256x8xbf16>,
    return
  }
  func.func @transform_0(%arg0: i32, %arg1: i32) -> (i32, i32, i32, i32) {
    %c0_i32 = arith.constant 0 : i32
    %c0_i32_0 = arith.constant 0 : i32
    %c0_i32_1 = arith.constant 0 : i32
    %c0_i32_2 = arith.constant 0 : i32
    return %arg0, %c0_i32, %c0_i32_0, %c0_i32_1 : i32, i32, i32, i32
  }
  func.func @transform_1(%arg0: i32, %arg1: i32) -> (i32, i32) {
    %c0_i32 = arith.constant 0 : i32
    %c0_i32_0 = arith.constant 0 : i32
    return %c0_i32, %arg1 : i32, i32
  }
  func.func @transform_2(%arg0: i32, %arg1: i32) -> (i32, i32) {
    %c0_i32 = arith.constant 0 : i32
    %c0_i32_0 = arith.constant 0 : i32
    return %c0_i32, %arg1 : i32, i32
  }
  func.func @transform_3(%arg0: i32, %arg1: i32) -> (i32, i32, i32) {
    %c0_i32 = arith.constant 0 : i32
    %c0_i32_0 = arith.constant 0 : i32
    return %arg0, %c0_i32, %arg1 : i32, i32, i32
  }
}

</mosaic_0001>

<llo_original>
// kernel: tpu_custom_call.1
$region0: #{tpu_custom_call.1}
  #allocation0 [shape = 'u32[]', space=smem, size = 0x4, offset = 0x4, fixed_abs, tag = 'smem constant byte address 0x4 - core index']
  #allocation1 [shape = 'u32[72,128]{1,0:T(1,128)}', space=vmem, size = 0x9000, scoped, tag = 'internal scratch']
  %s0 = inlined_call_operand.vmem [shape: bf16[2,18,18,3], index: 0, kind: input, shape index: {}]
  %s1 = inlined_call_operand.vmem [shape: bf16[27,8], index: 1, kind: input, shape index: {}]
  %s2 = inlined_call_operand.vmem [shape: f32[3,8], index: 2, kind: input, shape index: {}]
  %s3 = inlined_call_operand.vmem [shape: bf16[2,256,8], index: 3, kind: output, shape index: {}]
  %s4 = sld [smem:[#allocation0]]
  $region45: #{tpu_custom_call.1} parent=0
    _
  %s6 = ssub.s32 1, %s4
  %s7 = scalar_select 0, %s6, %s4
  loop: start=0, step=1, limit=4
  $region2: #{tpu_custom_call.1} parent=0 // loop_pre_header
    _
  $region3: #{tpu_custom_call.1} parent=0 // loop_header
    %s9 = sphi 0, %s13
    %p10 = scmp.ge.s32.totalorder %s9, 4
    %s16 = sphi 0, %s28
    %s17 = sphi 0, %s24
    %s18 = sphi 0, %s16
    %s19 = sphi 0, %s17
    %s20 = sphi 0, %s18
    %s21 = sphi 0, %s19
    %s31 = sphi 0, %s33
    %s34 = sphi 0, %s31
    %s35 = sphi 0, %s34
    %s51 = sphi 0, %s35
    %s57 = sphi 0, %s59
    %s60 = sphi 0, %s57
    %s61 = sphi 0, %s60
    %s77 = sphi 0, %s61
    %s83 = sphi 0, %s85
    %s86 = sphi 0, %s83
    %s87 = sphi 0, %s86
    %s103 = sphi 0, %s87
    %s111 = sphi 0, %s113
    %s114 = sphi 0, %s111
    %s115 = sphi 0, %s114
    %s131 = sphi 0, %s115
  $region4: #{tpu_custom_call.1} parent=0 // loop_header_branch
    %12 = sbr.rel (%p10) target = $region8
  $region5: #{tpu_custom_call.1} parent=0 // loop_body
    %s14 = ssub.s32 %s9, 1
    %s15 = ssub.s32 %s9, 2
    %s22 = sadd.s32 1, %s17
    %p23 = scmp.ge.s32.totalorder %s22, 1
    %s24 = scalar_select %p23, 0, %s22
    %s25 = sadd.s32 1, %s16
    %s26 = scalar_select %p23, %s25, %s16
    %p27 = scmp.ge.s32.totalorder %s26, 2
    %s28 = scalar_select %p27, 0, %s26
    %s29 = ssub.s32 %s16, %s28
    %p30 = scmp.eq.s32.totalorder %s29, 0
    %s32 = sadd.s32 %s31, 1
    %s33 = scalar_select %p30, %s31, %s32
    %p36 = pneg %p30
    %p37 = scmp.eq.s32.totalorder %s9, 1
    %p38 = por %p36, %p37
    %p39 = scmp.ne.s32.totalorder %s31, %s34
    %p40 = scmp.eq.s32.totalorder %s9, 0
    %p41 = por %p39, %p40
    %p42 = scmp.ne.s32.totalorder %s31, %s34
    %p43 = scmp.eq.s32.totalorder %s14, 1
    %p44 = por %p42, %p43
    %p45 = scmp.ne.s32.totalorder %s34, %s35
    %p46 = scmp.eq.s32.totalorder %s14, 0
    %p47 = por %p45, %p46
    %p48 = scmp.ne.s32.totalorder %s34, %s35
    %p49 = scmp.eq.s32.totalorder %s15, 1
    %p50 = por %p48, %p49
    %p52 = scmp.ne.s32.totalorder %s35, %s51
    %p53 = scmp.eq.s32.totalorder %s15, 0
    %p54 = por %p52, %p53
    %s55 = ssub.s32 %s17, %s24
    %p56 = scmp.eq.s32.totalorder %s55, 0
    %s58 = sadd.s32 %s57, 1
    %s59 = scalar_select %p56, %s57, %s58
    %p62 = pneg %p56
    %p63 = scmp.eq.s32.totalorder %s9, 1
    %p64 = por %p62, %p63
    %p65 = scmp.ne.s32.totalorder %s57, %s60
    %p66 = scmp.eq.s32.totalorder %s9, 0
    %p67 = por %p65, %p66
    %p68 = scmp.ne.s32.totalorder %s57, %s60
    %p69 = scmp.eq.s32.totalorder %s14, 1
    %p70 = por %p68, %p69
    %p71 = scmp.ne.s32.totalorder %s60, %s61
    %p72 = scmp.eq.s32.totalorder %s14, 0
    %p73 = por %p71, %p72
    %p74 = scmp.ne.s32.totalorder %s60, %s61
    %p75 = scmp.eq.s32.totalorder %s15, 1
    %p76 = por %p74, %p75
    %p78 = scmp.ne.s32.totalorder %s61, %s77
    %p79 = scmp.eq.s32.totalorder %s15, 0
    %p80 = por %p78, %p79
    %s81 = ssub.s32 %s17, %s24
    %p82 = scmp.eq.s32.totalorder %s81, 0
    %s84 = sadd.s32 %s83, 1
    %s85 = scalar_select %p82, %s83, %s84
    %p88 = pneg %p82
    %p89 = scmp.eq.s32.totalorder %s9, 1
    %p90 = por %p88, %p89
    %p91 = scmp.ne.s32.totalorder %s83, %s86
    %p92 = scmp.eq.s32.totalorder %s9, 0
    %p93 = por %p91, %p92
    %p94 = scmp.ne.s32.totalorder %s83, %s86
    %p95 = scmp.eq.s32.totalorder %s14, 1
    %p96 = por %p94, %p95
    %p97 = scmp.ne.s32.totalorder %s86, %s87
    %p98 = scmp.eq.s32.totalorder %s14, 0
    %p99 = por %p97, %p98
    %p100 = scmp.ne.s32.totalorder %s86, %s87
    %p101 = scmp.eq.s32.totalorder %s15, 1
    %p102 = por %p100, %p101
    %p104 = scmp.ne.s32.totalorder %s87, %s103
    %p105 = scmp.eq.s32.totalorder %s15, 0
    %p106 = por %p104, %p105
    %s107 = ssub.s32 %s16, %s28
    %s108 = ssub.s32 %s17, %s24
    %s109 = sor.u32 %s107, %s108
    %p110 = scmp.eq.s32.totalorder %s109, 0
    %s112 = sadd.s32 %s111, 1
    %s113 = scalar_select %p110, %s111, %s112
    %p116 = pneg %p110
    %p117 = scmp.eq.s32.totalorder %s9, 1
    %p118 = por %p116, %p117
    %p119 = scmp.ne.s32.totalorder %s111, %s114
    %p120 = scmp.eq.s32.totalorder %s9, 0
    %p121 = por %p119, %p120
    %p122 = scmp.ne.s32.totalorder %s111, %s114
    %p123 = scmp.eq.s32.totalorder %s14, 1
    %p124 = por %p122, %p123
    %p125 = scmp.ne.s32.totalorder %s114, %s115
    %p126 = scmp.eq.s32.totalorder %s14, 0
    %p127 = por %p125, %p126
    %p128 = scmp.ne.s32.totalorder %s114, %s115
    %p129 = scmp.eq.s32.totalorder %s15, 1
    %p130 = por %p128, %p129
    %p132 = scmp.ne.s32.totalorder %s115, %s131
    %p133 = scmp.eq.s32.totalorder %s15, 0
    %p134 = por %p132, %p133
    %p135 = scmp.le.s32.totalorder 1, %s9
    %p136 = scmp.lt.s32.totalorder %s9, 3
    %p137 = pnand %p135, %p136
    %p138 = pneg %p137
    // Predicated region
    $region9: #{tpu_custom_call.1} parent=5 // pred_check
      _
    $region10: #{tpu_custom_call.1} parent=5 // pred_check_branch
      %140 = sbr.rel (%p137) target = $region12
    $region11: #{tpu_custom_call.1} parent=5 // pred_region
      %s141 = ssub.s32 %s9, 1
      // Predicated region
      $region13: #{tpu_custom_call.1} parent=11 // pred_check
        %p142 = pneg %p73
      $region14: #{tpu_custom_call.1} parent=11 // pred_check_branch
        %144 = sbr.rel (%p142) target = $region16
      $region15: #{tpu_custom_call.1} parent=11 // pred_region
        %p145 = scmp.lt.s32.totalorder %s19, 0
        %s146 = scalar_select %p145, %s19, 0
        %s147 = smul.addr %s146, 4
        %s148 = scalar_lea.vmem %s1, %s147
      $region16: #{tpu_custom_call.1} parent=11 // pred_fallthru
        _
      // Predicated region
      $region17: #{tpu_custom_call.1} parent=11 // pred_check
        %p149 = pneg %p99
      $region18: #{tpu_custom_call.1} parent=11 // pred_check_branch
        %151 = sbr.rel (%p149) target = $region20
      $region19: #{tpu_custom_call.1} parent=11 // pred_region
        %p152 = scmp.lt.s32.totalorder %s19, 0
        %s153 = scalar_select %p152, %s19, 0
        %s154 = smul.addr %s153, 4
        %s155 = scalar_lea.vmem %s2, %s154
      $region20: #{tpu_custom_call.1} parent=11 // pred_fallthru
        _
    $region12: #{tpu_custom_call.1} parent=5 // pred_fallthru
      _
    %p156 = scmp.lt.s32.totalorder %s9, 2
    // Predicated region
    $region21: #{tpu_custom_call.1} parent=5 // pred_check
      %p157 = pneg %p156
    $region22: #{tpu_custom_call.1} parent=5 // pred_check_branch
      %159 = sbr.rel (%p157) target = $region24
    $region23: #{tpu_custom_call.1} parent=5 // pred_region
      // Predicated region
      $region25: #{tpu_custom_call.1} parent=23 // pred_check
        %p160 = pneg %p41
      $region26: #{tpu_custom_call.1} parent=23 // pred_check_branch
        %162 = sbr.rel (%p160) target = $region28
      $region27: #{tpu_custom_call.1} parent=23 // pred_region
        %p163 = scmp.lt.s32.totalorder %s16, 1
        %s164 = scalar_select %p163, %s16, 1
        %s165 = smul.addr %s164, 54
        %s166 = smul.addr %s165, 4
        %s167 = scalar_lea.vmem %s0, %s166
      $region28: #{tpu_custom_call.1} parent=23 // pred_fallthru
        _
    $region24: #{tpu_custom_call.1} parent=5 // pred_fallthru
      _
    %p168 = scmp.le.s32.totalorder 1, %s9
    %p169 = scmp.lt.s32.totalorder %s9, 3
    %p170 = pnand %p168, %p169
    %p171 = pneg %p170
    // Predicated region
    $region29: #{tpu_custom_call.1} parent=5 // pred_check
      _
    $region30: #{tpu_custom_call.1} parent=5 // pred_check_branch
      %173 = sbr.rel (%p170) target = $region32
    $region31: #{tpu_custom_call.1} parent=5 // pred_region
      %s174 = ssub.s32 %s9, 1
      %p175 = scmp.lt.s32.totalorder %s18, 1
      %s176 = scalar_select %p175, %s18, 1
      %s177 = smul.addr %s176, 54
      %s178 = smul.addr %s177, 4
      %s179 = scalar_lea.vmem %s0, %s178
      %p180 = pneg %p47
      %p181 = pneg %p44
      %p182 = scmp.lt.s32.totalorder %s19, 0
      %s183 = scalar_select %p182, %s19, 0
      %s184 = smul.addr %s183, 4
      %s185 = scalar_lea.vmem %s1, %s184
      %p186 = pneg %p73
      %p187 = pneg %p70
      %p188 = scmp.lt.s32.totalorder %s19, 0
      %s189 = scalar_select %p188, %s19, 0
      %s190 = smul.addr %s189, 4
      %s191 = scalar_lea.vmem %s2, %s190
      %p192 = pneg %p99
      %p193 = pneg %p96
      %p194 = pneg %p127
      %p195 = pneg %p124
      %p196 = scmp.lt.s32.totalorder %s18, 1
      %s197 = scalar_select %p196, %s18, 1
      %p198 = scmp.lt.s32.totalorder %s19, 0
      %s199 = scalar_select %p198, %s19, 0
      %s200 = smul.addr %s197, 32
      %s201 = sadd.s32 %s199, %s200
      %s202 = smul.addr %s201, 4
      %s203 = scalar_lea.vmem %s3, %s202
      %p204 = scmp.lt.s32.totalorder %s18, 1
      %s205 = scalar_select %p204, %s18, 1
      %s206 = smul.addr %s205, 54
      %s207 = smul.addr %s206, 4
      %s208 = scalar_lea.vmem %s0, %s207
      %p209 = scmp.lt.s32.totalorder %s19, 0
      %s210 = scalar_select %p209, %s19, 0
      %s211 = smul.addr %s210, 4
      %s212 = scalar_lea.vmem %s1, %s211
      %p213 = scmp.lt.s32.totalorder %s19, 0
      %s214 = scalar_select %p213, %s19, 0
      %s215 = smul.addr %s214, 4
      %s216 = scalar_lea.vmem %s2, %s215
      %p217 = scmp.lt.s32.totalorder %s18, 1
      %s218 = scalar_select %p217, %s18, 1
      %p219 = scmp.lt.s32.totalorder %s19, 0
      %s220 = scalar_select %p219, %s19, 0
      %s221 = smul.addr %s218, 32
      %s222 = sadd.s32 %s220, %s221
      %s223 = smul.addr %s222, 4
      %s224 = scalar_lea.vmem %s3, %s223
      %v226 = vld [vmem:[%s208] sm:$0xf]
      %v227 = vld [vmem:[%s208 + $0x4] sm:$0xf]
      %v228 = vld [vmem:[%s208 + $0xc] sm:$0xf]
      %v229 = vld [vmem:[%s208 + $0x10] sm:$0xf]
      %v230 = vld [vmem:[%s208 + $0x18] sm:$0xf]
      %v231 = vld [vmem:[%s208 + $0x1c] sm:$0xf]
      %v232 = vld [vmem:[%s208 + $0x24] sm:$0xf]
      %v233 = vld [vmem:[%s208 + $0x28] sm:$0xf]
      %v234 = vld [vmem:[%s208 + $0x30] sm:$0xf]
      %v235 = vld [vmem:[%s208 + $0x34] sm:$0xf]
      %v236 = vld [vmem:[%s208 + $0x3c] sm:$0xf]
      %v237 = vld [vmem:[%s208 + $0x40] sm:$0xf]
      %v238 = vld [vmem:[%s208 + $0x48] sm:$0xf]
      %v239 = vld [vmem:[%s208 + $0x4c] sm:$0xf]
      %v240 = vld [vmem:[%s208 + $0x54] sm:$0xf]
      %v241 = vld [vmem:[%s208 + $0x58] sm:$0xf]
      %v242 = vld [vmem:[%s208 + $0x60] sm:$0xf]
      %v243 = vld [vmem:[%s208 + $0x64] sm:$0xf]
      %v244 = vld [vmem:[%s208 + $0x6c] sm:$0xf]
      %v245 = vld [vmem:[%s208 + $0x70] sm:$0xf]
      %v246 = vld [vmem:[%s208 + $0x78] sm:$0xf]
      %v247 = vld [vmem:[%s208 + $0x7c] sm:$0xf]
      %v248 = vld [vmem:[%s208 + $0x84] sm:$0xf]
      %v249 = vld [vmem:[%s208 + $0x88] sm:$0xf]
      %v250 = vld [vmem:[%s208 + $0x90] sm:$0xf]
      %v251 = vld [vmem:[%s208 + $0x94] sm:$0xf]
      %v252 = vld [vmem:[%s208 + $0x9c] sm:$0xf]
      %v253 = vld [vmem:[%s208 + $0xa0] sm:$0xf]
      %v254 = vld [vmem:[%s208 + $0xa8] sm:$0xf]
      %v255 = vld [vmem:[%s208 + $0xac] sm:$0xf]
      %v256 = vld [vmem:[%s208 + $0xb4] sm:$0xf]
      %v257 = vld [vmem:[%s208 + $0xb8] sm:$0xf]
      %v258 = vld [vmem:[%s212] sm:$0x3]
      %v259 = vld [vmem:[%s208 + $0x8] sm:$0x1]
      %v260 = vld [vmem:[%s208 + $0x14] sm:$0x1]
      %v261 = vld [vmem:[%s208 + $0x20] sm:$0x1]
      %v262 = vld [vmem:[%s208 + $0x2c] sm:$0x1]
      %v263 = vld [vmem:[%s208 + $0x38] sm:$0x1]
      %v264 = vld [vmem:[%s208 + $0x44] sm:$0x1]
      %v265 = vld [vmem:[%s208 + $0x50] sm:$0x1]
      %v266 = vld [vmem:[%s208 + $0x5c] sm:$0x1]
      %v267 = vld [vmem:[%s208 + $0x68] sm:$0x1]
      %v268 = vld [vmem:[%s208 + $0x74] sm:$0x1]
      %v269 = vld [vmem:[%s208 + $0x80] sm:$0x1]
      %v270 = vld [vmem:[%s208 + $0x8c] sm:$0x1]
      %v271 = vld [vmem:[%s208 + $0x98] sm:$0x1]
      %v272 = vld [vmem:[%s208 + $0xa4] sm:$0x1]
      %v273 = vld [vmem:[%s208 + $0xb0] sm:$0x1]
      %v274 = vld [vmem:[%s208 + $0xbc] sm:$0x1]
      %vm275 = vsmask.f32 3328
      %vm276 = vsmask.f32 7440
      %vm277 = vmor %vm275, %vm276
      %v279 = vshrl.u32 %v226, 16
      %v281 = vrot.slane %v279, 4
      %v282 = vshll.u32 %v226, 16
      %v284 = vrot.slane %v282, 5
      %v285 = vor.u32 %v281, %v284
      %v286 = vrot.slane %v285, 4
      %v288 = vshll.u32 %v227, 16
      %v290 = vrot.slane %v288, 5
      %v291 = vsel %vm277, %v286, %v290
      %v292 = vshrl.u32 %v227, 16
      %v294 = vrot.slane %v292, 4
      %v295 = vor.u32 %v294, %v290
      %v296 = vrot.slane %v295, 4
      %v298 = vshll.u32 %v259, 16
      %v300 = vrot.slane %v298, 5
      %v301 = vsel %vm277, %v296, %v300
      %v303 = vshrl.u32 %v228, 16
      %v305 = vrot.slane %v303, 4
      %v306 = vshll.u32 %v228, 16
      %v308 = vrot.slane %v306, 5
      %v309 = vor.u32 %v305, %v308
      %v310 = vrot.slane %v309, 4
      %v312 = vshll.u32 %v229, 16
      %v314 = vrot.slane %v312, 5
      %v315 = vsel %vm277, %v310, %v314
      %v316 = vshrl.u32 %v229, 16
      %v318 = vrot.slane %v316, 4
      %v319 = vor.u32 %v318, %v314
      %v320 = vrot.slane %v319, 4
      %v322 = vshll.u32 %v260, 16
      %v324 = vrot.slane %v322, 5
      %v325 = vsel %vm277, %v320, %v324
      %v327 = vshrl.u32 %v230, 16
      %v329 = vrot.slane %v327, 4
      %v330 = vshll.u32 %v230, 16
      %v332 = vrot.slane %v330, 5
      %v333 = vor.u32 %v329, %v332
      %v334 = vrot.slane %v333, 4
      %v336 = vshll.u32 %v231, 16
      %v338 = vrot.slane %v336, 5
      %v339 = vsel %vm277, %v334, %v338
      %v340 = vshrl.u32 %v231, 16
      %v342 = vrot.slane %v340, 4
      %v343 = vor.u32 %v342, %v338
      %v344 = vrot.slane %v343, 4
      %v346 = vshll.u32 %v261, 16
      %v348 = vrot.slane %v346, 5
      %v349 = vsel %vm277, %v344, %v348
      %v351 = vshrl.u32 %v232, 16
      %v353 = vrot.slane %v351, 4
      %v354 = vshll.u32 %v232, 16
      %v356 = vrot.slane %v354, 5
      %v357 = vor.u32 %v353, %v356
      %v358 = vrot.slane %v357, 4
      %v360 = vshll.u32 %v233, 16
      %v362 = vrot.slane %v360, 5
      %v363 = vsel %vm277, %v358, %v362
      %v364 = vshrl.u32 %v233, 16
      %v366 = vrot.slane %v364, 4
      %v367 = vor.u32 %v366, %v362
      %v368 = vrot.slane %v367, 4
      %v370 = vshll.u32 %v262, 16
      %v372 = vrot.slane %v370, 5
      %v373 = vsel %vm277, %v368, %v372
      %v375 = vshrl.u32 %v234, 16
      %v377 = vrot.slane %v375, 4
      %v378 = vshll.u32 %v234, 16
      %v380 = vrot.slane %v378, 5
      %v381 = vor.u32 %v377, %v380
      %v382 = vrot.slane %v381, 4
      %v384 = vshll.u32 %v235, 16
      %v386 = vrot.slane %v384, 5
      %v387 = vsel %vm277, %v382, %v386
      %v388 = vshrl.u32 %v235, 16
      %v390 = vrot.slane %v388, 4
      %v391 = vor.u32 %v390, %v386
      %v392 = vrot.slane %v391, 4
      %v394 = vshll.u32 %v263, 16
      %v396 = vrot.slane %v394, 5
      %v397 = vsel %vm277, %v392, %v396
      %v399 = vshrl.u32 %v236, 16
      %v401 = vrot.slane %v399, 4
      %v402 = vshll.u32 %v236, 16
      %v404 = vrot.slane %v402, 5
      %v405 = vor.u32 %v401, %v404
      %v406 = vrot.slane %v405, 4
      %v408 = vshll.u32 %v237, 16
      %v410 = vrot.slane %v408, 5
      %v411 = vsel %vm277, %v406, %v410
      %v412 = vshrl.u32 %v237, 16
      %v414 = vrot.slane %v412, 4
      %v415 = vor.u32 %v414, %v410
      %v416 = vrot.slane %v415, 4
      %v418 = vshll.u32 %v264, 16
      %v420 = vrot.slane %v418, 5
      %v421 = vsel %vm277, %v416, %v420
      %v423 = vshrl.u32 %v238, 16
      %v425 = vrot.slane %v423, 4
      %v426 = vshll.u32 %v238, 16
      %v428 = vrot.slane %v426, 5
      %v429 = vor.u32 %v425, %v428
      %v430 = vrot.slane %v429, 4
      %v432 = vshll.u32 %v239, 16
      %v434 = vrot.slane %v432, 5
      %v435 = vsel %vm277, %v430, %v434
      %v436 = vshrl.u32 %v239, 16
      %v438 = vrot.slane %v436, 4
      %v439 = vor.u32 %v438, %v434
      %v440 = vrot.slane %v439, 4
      %v442 = vshll.u32 %v265, 16
      %v444 = vrot.slane %v442, 5
      %v445 = vsel %vm277, %v440, %v444
      %v447 = vshrl.u32 %v240, 16
      %v449 = vrot.slane %v447, 4
      %v450 = vshll.u32 %v240, 16
      %v452 = vrot.slane %v450, 5
      %v453 = vor.u32 %v449, %v452
      %v454 = vrot.slane %v453, 4
      %v456 = vshll.u32 %v241, 16
      %v458 = vrot.slane %v456, 5
      %v459 = vsel %vm277, %v454, %v458
      %v460 = vshrl.u32 %v241, 16
      %v462 = vrot.slane %v460, 4
      %v463 = vor.u32 %v462, %v458
      %v464 = vrot.slane %v463, 4
      %v466 = vshll.u32 %v266, 16
      %v468 = vrot.slane %v466, 5
      %v469 = vsel %vm277, %v464, %v468
      %v471 = vshrl.u32 %v242, 16
      %v473 = vrot.slane %v471, 4
      %v474 = vshll.u32 %v242, 16
      %v476 = vrot.slane %v474, 5
      %v477 = vor.u32 %v473, %v476
      %v478 = vrot.slane %v477, 4
      %v480 = vshll.u32 %v243, 16
      %v482 = vrot.slane %v480, 5
      %v483 = vsel %vm277, %v478, %v482
      %v484 = vshrl.u32 %v243, 16
      %v486 = vrot.slane %v484, 4
      %v487 = vor.u32 %v486, %v482
      %v488 = vrot.slane %v487, 4
      %v490 = vshll.u32 %v267, 16
      %v492 = vrot.slane %v490, 5
      %v493 = vsel %vm277, %v488, %v492
      %v495 = vshrl.u32 %v244, 16
      %v497 = vrot.slane %v495, 4
      %v498 = vshll.u32 %v244, 16
      %v500 = vrot.slane %v498, 5
      %v501 = vor.u32 %v497, %v500
      %v502 = vrot.slane %v501, 4
      %v504 = vshll.u32 %v245, 16
      %v506 = vrot.slane %v504, 5
      %v507 = vsel %vm277, %v502, %v506
      %v508 = vshrl.u32 %v245, 16
      %v510 = vrot.slane %v508, 4
      %v511 = vor.u32 %v510, %v506
      %v512 = vrot.slane %v511, 4
      %v514 = vshll.u32 %v268, 16
      %v516 = vrot.slane %v514, 5
      %v517 = vsel %vm277, %v512, %v516
      %v519 = vshrl.u32 %v246, 16
      %v521 = vrot.slane %v519, 4
      %v522 = vshll.u32 %v246, 16
      %v524 = vrot.slane %v522, 5
      %v525 = vor.u32 %v521, %v524
      %v526 = vrot.slane %v525, 4
      %v528 = vshll.u32 %v247, 16
      %v530 = vrot.slane %v528, 5
      %v531 = vsel %vm277, %v526, %v530
      %v532 = vshrl.u32 %v247, 16
      %v534 = vrot.slane %v532, 4
      %v535 = vor.u32 %v534, %v530
      %v536 = vrot.slane %v535, 4
      %v538 = vshll.u32 %v269, 16
      %v540 = vrot.slane %v538, 5
      %v541 = vsel %vm277, %v536, %v540
      %v543 = vshrl.u32 %v248, 16
      %v545 = vrot.slane %v543, 4
      %v546 = vshll.u32 %v248, 16
      %v548 = vrot.slane %v546, 5
      %v549 = vor.u32 %v545, %v548
      %v550 = vrot.slane %v549, 4
      %v552 = vshll.u32 %v249, 16
      %v554 = vrot.slane %v552, 5
      %v555 = vsel %vm277, %v550, %v554
      %v556 = vshrl.u32 %v249, 16
      %v558 = vrot.slane %v556, 4
      %v559 = vor.u32 %v558, %v554
      %v560 = vrot.slane %v559, 4
      %v562 = vshll.u32 %v270, 16
      %v564 = vrot.slane %v562, 5
      %v565 = vsel %vm277, %v560, %v564
      %v567 = vshrl.u32 %v250, 16
      %v569 = vrot.slane %v567, 4
      %v570 = vshll.u32 %v250, 16
      %v572 = vrot.slane %v570, 5
      %v573 = vor.u32 %v569, %v572
      %v574 = vrot.slane %v573, 4
      %v576 = vshll.u32 %v251, 16
      %v578 = vrot.slane %v576, 5
      %v579 = vsel %vm277, %v574, %v578
      %v580 = vshrl.u32 %v251, 16
      %v582 = vrot.slane %v580, 4
      %v583 = vor.u32 %v582, %v578
      %v584 = vrot.slane %v583, 4
      %v586 = vshll.u32 %v271, 16
      %v588 = vrot.slane %v586, 5
      %v589 = vsel %vm277, %v584, %v588
      %v591 = vshrl.u32 %v252, 16
      %v593 = vrot.slane %v591, 4
      %v594 = vshll.u32 %v252, 16
      %v596 = vrot.slane %v594, 5
      %v597 = vor.u32 %v593, %v596
      %v598 = vrot.slane %v597, 4
      %v600 = vshll.u32 %v253, 16
      %v602 = vrot.slane %v600, 5
      %v603 = vsel %vm277, %v598, %v602
      %v604 = vshrl.u32 %v253, 16
      %v606 = vrot.slane %v604, 4
      %v607 = vor.u32 %v606, %v602
      %v608 = vrot.slane %v607, 4
      %v610 = vshll.u32 %v272, 16
      %v612 = vrot.slane %v610, 5
      %v613 = vsel %vm277, %v608, %v612
      %v615 = vshrl.u32 %v254, 16
      %v617 = vrot.slane %v615, 4
      %v618 = vshll.u32 %v254, 16
      %v620 = vrot.slane %v618, 5
      %v621 = vor.u32 %v617, %v620
      %v622 = vrot.slane %v621, 4
      %v624 = vshll.u32 %v255, 16
      %v626 = vrot.slane %v624, 5
      %v627 = vsel %vm277, %v622, %v626
      %v628 = vshrl.u32 %v255, 16
      %v630 = vrot.slane %v628, 4
      %v631 = vor.u32 %v630, %v626
      %v632 = vrot.slane %v631, 4
      %v634 = vshll.u32 %v273, 16
      %v636 = vrot.slane %v634, 5
      %v637 = vsel %vm277, %v632, %v636
      %v639 = vshrl.u32 %v256, 16
      %v641 = vrot.slane %v639, 4
      %v642 = vshll.u32 %v256, 16
      %v644 = vrot.slane %v642, 5
      %v645 = vor.u32 %v641, %v644
      %v646 = vrot.slane %v645, 4
      %v648 = vshll.u32 %v257, 16
      %v650 = vrot.slane %v648, 5
      %v651 = vsel %vm277, %v646, %v650
      %v652 = vshrl.u32 %v257, 16
      %v654 = vrot.slane %v652, 4
      %v655 = vor.u32 %v654, %v650
      %v656 = vrot.slane %v655, 4
      %v658 = vshll.u32 %v274, 16
      %v660 = vrot.slane %v658, 5
      %v661 = vsel %vm277, %v656, %v660
      %v662 = vld [vmem:[%s212] sm:$0x6]
      %v663 = vunpack.c.l.b16 %v291
      %v664 = vunpack.c.l.b16 %v301
      %v665 = vunpack.c.l.b16 %v315
      %v666 = vunpack.c.l.b16 %v325
      %v667 = vunpack.c.l.b16 %v339
      %v668 = vunpack.c.l.b16 %v349
      %v669 = vunpack.c.l.b16 %v363
      %v670 = vunpack.c.l.b16 %v373
      %v671 = vunpack.c.l.b16 %v387
      %v672 = vunpack.c.l.b16 %v397
      %v673 = vunpack.c.l.b16 %v411
      %v674 = vunpack.c.l.b16 %v421
      %v675 = vunpack.c.l.b16 %v435
      %v676 = vunpack.c.l.b16 %v445
      %v677 = vunpack.c.l.b16 %v459
      %v678 = vunpack.c.l.b16 %v469
      %v679 = vunpack.c.l.b16 %v483
      %v680 = vunpack.c.l.b16 %v493
      %v681 = vunpack.c.l.b16 %v507
      %v682 = vunpack.c.l.b16 %v517
      %v683 = vunpack.c.l.b16 %v531
      %v684 = vunpack.c.l.b16 %v541
      %v685 = vunpack.c.l.b16 %v555
      %v686 = vunpack.c.l.b16 %v565
      %v687 = vunpack.c.l.b16 %v579
      %v688 = vunpack.c.l.b16 %v589
      %v689 = vunpack.c.l.b16 %v603
      %v690 = vunpack.c.l.b16 %v613
      %v691 = vunpack.c.l.b16 %v627
      %v692 = vunpack.c.l.b16 %v637
      %v693 = vunpack.c.l.b16 %v651
      %v694 = vunpack.c.l.b16 %v661
      %v695 = vpack.c.b16 %v664, %v663
      %v696 = vpack.c.b16 %v666, %v665
      %v697 = vpack.c.b16 %v668, %v667
      %v698 = vpack.c.b16 %v670, %v669
      %v699 = vpack.c.b16 %v672, %v671
      %v700 = vpack.c.b16 %v674, %v673
      %v701 = vpack.c.b16 %v676, %v675
      %v702 = vpack.c.b16 %v678, %v677
      %v703 = vpack.c.b16 %v680, %v679
      %v704 = vpack.c.b16 %v682, %v681
      %v705 = vpack.c.b16 %v684, %v683
      %v706 = vpack.c.b16 %v686, %v685
      %v707 = vpack.c.b16 %v688, %v687
      %v708 = vpack.c.b16 %v690, %v689
      %v709 = vpack.c.b16 %v692, %v691
      %v710 = vpack.c.b16 %v694, %v693
      %v712 = vunpack.c.l.b16 %v662
      %v713 = vpack.c.b16 %v712, %v712
      %v715 = vshrl.u32 %v713, 16
      %v717 = vrot.slane %v715, 1
      %v718 = vshll.u32 %v713, 16
      %v720 = vrot.slane %v718, 2
      %v721 = vor.u32 %v717, %v720
      %vm722 = vcmask 23552
      %v724 = vsel %vm722, %v695, 0
      %v727 = vsel %vm722, %v696, 0
      %v730 = vsel %vm722, %v697, 0
      %v733 = vsel %vm722, %v698, 0
      %v736 = vsel %vm722, %v699, 0
      %v739 = vsel %vm722, %v700, 0
      %v742 = vsel %vm722, %v701, 0
      %v745 = vsel %vm722, %v702, 0
      %v748 = vsel %vm722, %v703, 0
      %v751 = vsel %vm722, %v704, 0
      %v754 = vsel %vm722, %v705, 0
      %v757 = vsel %vm722, %v706, 0
      %v760 = vsel %vm722, %v707, 0
      %v763 = vsel %vm722, %v708, 0
      %v766 = vsel %vm722, %v709, 0
      %v769 = vsel %vm722, %v710, 0
      %vm771 = vcmask 1040384
      %vm772 = vcmask 1041408
      %v773 = vsel %vm771, 4294967295, 65535
      %v774 = vsel %vm772, %v773, 0
      %v776 = vand.u32 %v721, %v774
      %778 = vmatpush.bf16.msra.mxu0 0
      %779 = vmatpush.bf16.msra.mxu0 0
      %780 = vmatpush.bf16.msra.mxu0 0
      %781 = vmatpush.bf16.msra.mxu0 0
      %782 = vmatpush.bf16.msra.mxu0 0
      %783 = vmatpush.bf16.msra.mxu0 0
      %784 = vmatpush.bf16.msra.mxu0 0
      %785 = vmatpush.bf16.msra.mxu0 %v776
      %786 = vmatmul.bf16.gmra.mxu0 %v724
      %v787 = vpop.f32.mrf.mxu0
      %v788 = vadd.f32 0.0, %v787
      %v789 = vpop.f32.mrf.mxu0
      %v790 = vadd.f32 0.0, %v789
      %791 = vmatmul.bf16.gmra.mxu0 %v727
      %v792 = vpop.f32.mrf.mxu0
      %v793 = vadd.f32 0.0, %v792
      %v794 = vpop.f32.mrf.mxu0
      %v795 = vadd.f32 0.0, %v794
      %796 = vmatmul.bf16.gmra.mxu0 %v730
      %v797 = vpop.f32.mrf.mxu0
      %v798 = vadd.f32 0.0, %v797
      %v799 = vpop.f32.mrf.mxu0
      %v800 = vadd.f32 0.0, %v799
      %801 = vmatmul.bf16.gmra.mxu0 %v733
      %v802 = vpop.f32.mrf.mxu0
      %v803 = vadd.f32 0.0, %v802
      %v804 = vpop.f32.mrf.mxu0
      %v805 = vadd.f32 0.0, %v804
      %806 = vmatmul.bf16.gmra.mxu0 %v736
      %v807 = vpop.f32.mrf.mxu0
      %v808 = vadd.f32 0.0, %v807
      %v809 = vpop.f32.mrf.mxu0
      %v810 = vadd.f32 0.0, %v809
      %811 = vmatmul.bf16.gmra.mxu0 %v739
      %v812 = vpop.f32.mrf.mxu0
      %v813 = vadd.f32 0.0, %v812
      %v814 = vpop.f32.mrf.mxu0
      %v815 = vadd.f32 0.0, %v814
      %816 = vmatmul.bf16.gmra.mxu0 %v742
      %v817 = vpop.f32.mrf.mxu0
      %v818 = vadd.f32 0.0, %v817
      %v819 = vpop.f32.mrf.mxu0
      %v820 = vadd.f32 0.0, %v819
      %821 = vmatmul.bf16.gmra.mxu0 %v745
      %v822 = vpop.f32.mrf.mxu0
      %v823 = vadd.f32 0.0, %v822
      %v824 = vpop.f32.mrf.mxu0
      %v825 = vadd.f32 0.0, %v824
      %826 = vmatmul.bf16.gmra.mxu0 %v748
      %v827 = vpop.f32.mrf.mxu0
      %v828 = vadd.f32 0.0, %v827
      %v829 = vpop.f32.mrf.mxu0
      %v830 = vadd.f32 0.0, %v829
      %831 = vmatmul.bf16.gmra.mxu0 %v751
      %v832 = vpop.f32.mrf.mxu0
      %v833 = vadd.f32 0.0, %v832
      %v834 = vpop.f32.mrf.mxu0
      %v835 = vadd.f32 0.0, %v834
      %836 = vmatmul.bf16.gmra.mxu0 %v754
      %v837 = vpop.f32.mrf.mxu0
      %v838 = vadd.f32 0.0, %v837
      %v839 = vpop.f32.mrf.mxu0
      %v840 = vadd.f32 0.0, %v839
      %841 = vmatmul.bf16.gmra.mxu0 %v757
      %v842 = vpop.f32.mrf.mxu0
      %v843 = vadd.f32 0.0, %v842
      %v844 = vpop.f32.mrf.mxu0
      %v845 = vadd.f32 0.0, %v844
      %846 = vmatmul.bf16.gmra.mxu0 %v760
      %v847 = vpop.f32.mrf.mxu0
      %v848 = vadd.f32 0.0, %v847
      %v849 = vpop.f32.mrf.mxu0
      %v850 = vadd.f32 0.0, %v849
      %851 = vmatmul.bf16.gmra.mxu0 %v763
      %v852 = vpop.f32.mrf.mxu0
      %v853 = vadd.f32 0.0, %v852
      %v854 = vpop.f32.mrf.mxu0
      %v855 = vadd.f32 0.0, %v854
      %856 = vmatmul.bf16.gmra.mxu0 %v766
      %v857 = vpop.f32.mrf.mxu0
      %v858 = vadd.f32 0.0, %v857
      %v859 = vpop.f32.mrf.mxu0
      %v860 = vadd.f32 0.0, %v859
      %861 = vmatmul.bf16.gmra.mxu0 %v769
      %v862 = vpop.f32.mrf.mxu0
      %v863 = vadd.f32 0.0, %v862
      %v864 = vpop.f32.mrf.mxu0
      %v865 = vadd.f32 0.0, %v864
      %866 = vdwg.mxu0
      %v899 = vunpack.c.l.b16 %v226
      %v900 = vunpack.c.l.b16 %v227
      %v901 = vunpack.c.l.b16 %v228
      %v902 = vunpack.c.l.b16 %v229
      %v903 = vunpack.c.l.b16 %v230
      %v904 = vunpack.c.l.b16 %v231
      %v905 = vunpack.c.l.b16 %v232
      %v906 = vunpack.c.l.b16 %v233
      %v907 = vunpack.c.l.b16 %v234
      %v908 = vunpack.c.l.b16 %v235
      %v909 = vunpack.c.l.b16 %v236
      %v910 = vunpack.c.l.b16 %v237
      %v911 = vunpack.c.l.b16 %v238
      %v912 = vunpack.c.l.b16 %v239
      %v913 = vunpack.c.l.b16 %v240
      %v914 = vunpack.c.l.b16 %v241
      %v915 = vunpack.c.l.b16 %v242
      %v916 = vunpack.c.l.b16 %v243
      %v917 = vunpack.c.l.b16 %v244
      %v918 = vunpack.c.l.b16 %v245
      %v919 = vunpack.c.l.b16 %v246
      %v920 = vunpack.c.l.b16 %v247
      %v921 = vunpack.c.l.b16 %v248
      %v922 = vunpack.c.l.b16 %v249
      %v923 = vunpack.c.l.b16 %v250
      %v924 = vunpack.c.l.b16 %v251
      %v925 = vunpack.c.l.b16 %v252
      %v926 = vunpack.c.l.b16 %v253
      %v927 = vunpack.c.l.b16 %v254
      %v928 = vunpack.c.l.b16 %v255
      %v929 = vunpack.c.l.b16 %v256
      %v930 = vunpack.c.l.b16 %v257
      %v931 = vpack.c.b16 %v900, %v899
      %v932 = vpack.c.b16 %v902, %v901
      %v933 = vpack.c.b16 %v904, %v903
      %v934 = vpack.c.b16 %v906, %v905
      %v935 = vpack.c.b16 %v908, %v907
      %v936 = vpack.c.b16 %v910, %v909
      %v937 = vpack.c.b16 %v912, %v911
      %v938 = vpack.c.b16 %v914, %v913
      %v939 = vpack.c.b16 %v916, %v915
      %v940 = vpack.c.b16 %v918, %v917
      %v941 = vpack.c.b16 %v920, %v919
      %v942 = vpack.c.b16 %v922, %v921
      %v943 = vpack.c.b16 %v924, %v923
      %v944 = vpack.c.b16 %v926, %v925
      %v945 = vpack.c.b16 %v928, %v927
      %v946 = vpack.c.b16 %v930, %v929
      %v948 = vsel %vm722, %v931, 0
      %v951 = vsel %vm722, %v932, 0
      %v954 = vsel %vm722, %v933, 0
      %v957 = vsel %vm722, %v934, 0
      %v960 = vsel %vm722, %v935, 0
      %v963 = vsel %vm722, %v936, 0
      %v966 = vsel %vm722, %v937, 0
      %v969 = vsel %vm722, %v938, 0
      %v972 = vsel %vm722, %v939, 0
      %v975 = vsel %vm722, %v940, 0
      %v978 = vsel %vm722, %v941, 0
      %v981 = vsel %vm722, %v942, 0
      %v984 = vsel %vm722, %v943, 0
      %v987 = vsel %vm722, %v944, 0
      %v990 = vsel %vm722, %v945, 0
      %v993 = vsel %vm722, %v946, 0
      %v996 = vand.u32 %v258, %v774
      %998 = vmatpush.bf16.msra.mxu0 0
      %999 = vmatpush.bf16.msra.mxu0 0
      %1000 = vmatpush.bf16.msra.mxu0 0
      %1001 = vmatpush.bf16.msra.mxu0 0
      %1002 = vmatpush.bf16.msra.mxu0 0
      %1003 = vmatpush.bf16.msra.mxu0 0
      %1004 = vmatpush.bf16.msra.mxu0 0
      %1005 = vmatpush.bf16.msra.mxu0 %v996
      %1006 = vmatmul.bf16.gmra.mxu0 %v948
      %v1007 = vpop.f32.mrf.mxu0
      %v1008 = vadd.f32 %v788, %v1007
      %v1009 = vpop.f32.mrf.mxu0
      %v1010 = vadd.f32 %v790, %v1009
      %1011 = vmatmul.bf16.gmra.mxu0 %v951
      %v1012 = vpop.f32.mrf.mxu0
      %v1013 = vadd.f32 %v793, %v1012
      %v1014 = vpop.f32.mrf.mxu0
      %v1015 = vadd.f32 %v795, %v1014
      %1016 = vmatmul.bf16.gmra.mxu0 %v954
      %v1017 = vpop.f32.mrf.mxu0
      %v1018 = vadd.f32 %v798, %v1017
      %v1019 = vpop.f32.mrf.mxu0
      %v1020 = vadd.f32 %v800, %v1019
      %1021 = vmatmul.bf16.gmra.mxu0 %v957
      %v1022 = vpop.f32.mrf.mxu0
      %v1023 = vadd.f32 %v803, %v1022
      %v1024 = vpop.f32.mrf.mxu0
      %v1025 = vadd.f32 %v805, %v1024
      %1026 = vmatmul.bf16.gmra.mxu0 %v960
      %v1027 = vpop.f32.mrf.mxu0
      %v1028 = vadd.f32 %v808, %v1027
      %v1029 = vpop.f32.mrf.mxu0
      %v1030 = vadd.f32 %v810, %v1029
      %1031 = vmatmul.bf16.gmra.mxu0 %v963
      %v1032 = vpop.f32.mrf.mxu0
      %v1033 = vadd.f32 %v813, %v1032
      %v1034 = vpop.f32.mrf.mxu0
      %v1035 = vadd.f32 %v815, %v1034
      %1036 = vmatmul.bf16.gmra.mxu0 %v966
      %v1037 = vpop.f32.mrf.mxu0
      %v1038 = vadd.f32 %v818, %v1037
      %v1039 = vpop.f32.mrf.mxu0
      %v1040 = vadd.f32 %v820, %v1039
      %1041 = vmatmul.bf16.gmra.mxu0 %v969
      %v1042 = vpop.f32.mrf.mxu0
      %v1043 = vadd.f32 %v823, %v1042
      %v1044 = vpop.f32.mrf.mxu0
      %v1045 = vadd.f32 %v825, %v1044
      %1046 = vmatmul.bf16.gmra.mxu0 %v972
      %v1047 = vpop.f32.mrf.mxu0
      %v1048 = vadd.f32 %v828, %v1047
      %v1049 = vpop.f32.mrf.mxu0
      %v1050 = vadd.f32 %v830, %v1049
      %1051 = vmatmul.bf16.gmra.mxu0 %v975
      %v1052 = vpop.f32.mrf.mxu0
      %v1053 = vadd.f32 %v833, %v1052
      %v1054 = vpop.f32.mrf.mxu0
      %v1055 = vadd.f32 %v835, %v1054
      %1056 = vmatmul.bf16.gmra.mxu0 %v978
      %v1057 = vpop.f32.mrf.mxu0
      %v1058 = vadd.f32 %v838, %v1057
      %v1059 = vpop.f32.mrf.mxu0
      %v1060 = vadd.f32 %v840, %v1059
      %1061 = vmatmul.bf16.gmra.mxu0 %v981
      %v1062 = vpop.f32.mrf.mxu0
      %v1063 = vadd.f32 %v843, %v1062
      %v1064 = vpop.f32.mrf.mxu0
      %v1065 = vadd.f32 %v845, %v1064
      %1066 = vmatmul.bf16.gmra.mxu0 %v984
      %v1067 = vpop.f32.mrf.mxu0
      %v1068 = vadd.f32 %v848, %v1067
      %v1069 = vpop.f32.mrf.mxu0
      %v1070 = vadd.f32 %v850, %v1069
      %1071 = vmatmul.bf16.gmra.mxu0 %v987
      %v1072 = vpop.f32.mrf.mxu0
      %v1073 = vadd.f32 %v853, %v1072
      %v1074 = vpop.f32.mrf.mxu0
      %v1075 = vadd.f32 %v855, %v1074
      %1076 = vmatmul.bf16.gmra.mxu0 %v990
      %v1077 = vpop.f32.mrf.mxu0
      %v1078 = vadd.f32 %v858, %v1077
      %v1079 = vpop.f32.mrf.mxu0
      %v1080 = vadd.f32 %v860, %v1079
      %1081 = vmatmul.bf16.gmra.mxu0 %v993
      %v1082 = vpop.f32.mrf.mxu0
      %v1083 = vadd.f32 %v863, %v1082
      %v1084 = vpop.f32.mrf.mxu0
      %v1085 = vadd.f32 %v865, %v1084
      %1086 = vdwg.mxu0
      %v1087 = vld [vmem:[%s208] sm:$0xe]
      %v1088 = vld [vmem:[%s208 + $0xc] sm:$0xe]
      %v1089 = vld [vmem:[%s208 + $0x18] sm:$0xe]
      %v1090 = vld [vmem:[%s208 + $0x24] sm:$0xe]
      %v1091 = vld [vmem:[%s208 + $0x30] sm:$0xe]
      %v1092 = vld [vmem:[%s208 + $0x3c] sm:$0xe]
      %v1093 = vld [vmem:[%s208 + $0x48] sm:$0xe]
      %v1094 = vld [vmem:[%s208 + $0x54] sm:$0xe]
      %v1095 = vld [vmem:[%s208 + $0x60] sm:$0xe]
      %v1096 = vld [vmem:[%s208 + $0x6c] sm:$0xe]
      %v1097 = vld [vmem:[%s208 + $0x78] sm:$0xe]
      %v1098 = vld [vmem:[%s208 + $0x84] sm:$0xe]
      %v1099 = vld [vmem:[%s208 + $0x90] sm:$0xe]
      %v1100 = vld [vmem:[%s208 + $0x9c] sm:$0xe]
      %v1101 = vld [vmem:[%s208 + $0xa8] sm:$0xe]
      %v1102 = vld [vmem:[%s208 + $0xb4] sm:$0xe]
      %vm1135 = vcmask 1042432
      %vm1136 = vcmask 1046532
      %vm1137 = vmor %vm1135, %vm1136
      %v1138 = vrot.slane %v1087, 5
      %v1139 = vrot.slane %v1138, 4
      %v1140 = vrot.slane %v227, 5
      %v1141 = vsel %vm1137, %v1139, %v1140
      %v1142 = vrot.slane %v1140, 4
      %v1143 = vrot.slane %v259, 5
      %v1144 = vsel %vm1137, %v1142, %v1143
      %v1145 = vrot.slane %v1088, 5
      %v1146 = vrot.slane %v1145, 4
      %v1147 = vrot.slane %v229, 5
      %v1148 = vsel %vm1137, %v1146, %v1147
      %v1149 = vrot.slane %v1147, 4
      %v1150 = vrot.slane %v260, 5
      %v1151 = vsel %vm1137, %v1149, %v1150
      %v1152 = vrot.slane %v1089, 5
      %v1153 = vrot.slane %v1152, 4
      %v1154 = vrot.slane %v231, 5
      %v1155 = vsel %vm1137, %v1153, %v1154
      %v1156 = vrot.slane %v1154, 4
      %v1157 = vrot.slane %v261, 5
      %v1158 = vsel %vm1137, %v1156, %v1157
      %v1159 = vrot.slane %v1090, 5
      %v1160 = vrot.slane %v1159, 4
      %v1161 = vrot.slane %v233, 5
      %v1162 = vsel %vm1137, %v1160, %v1161
      %v1163 = vrot.slane %v1161, 4
      %v1164 = vrot.slane %v262, 5
      %v1165 = vsel %vm1137, %v1163, %v1164
      %v1166 = vrot.slane %v1091, 5
      %v1167 = vrot.slane %v1166, 4
      %v1168 = vrot.slane %v235, 5
      %v1169 = vsel %vm1137, %v1167, %v1168
      %v1170 = vrot.slane %v1168, 4
      %v1171 = vrot.slane %v263, 5
      %v1172 = vsel %vm1137, %v1170, %v1171
      %v1173 = vrot.slane %v1092, 5
      %v1174 = vrot.slane %v1173, 4
      %v1175 = vrot.slane %v237, 5
      %v1176 = vsel %vm1137, %v1174, %v1175
      %v1177 = vrot.slane %v1175, 4
      %v1178 = vrot.slane %v264, 5
      %v1179 = vsel %vm1137, %v1177, %v1178
      %v1180 = vrot.slane %v1093, 5
      %v1181 = vrot.slane %v1180, 4
      %v1182 = vrot.slane %v239, 5
      %v1183 = vsel %vm1137, %v1181, %v1182
      %v1184 = vrot.slane %v1182, 4
      %v1185 = vrot.slane %v265, 5
      %v1186 = vsel %vm1137, %v1184, %v1185
      %v1187 = vrot.slane %v1094, 5
      %v1188 = vrot.slane %v1187, 4
      %v1189 = vrot.slane %v241, 5
      %v1190 = vsel %vm1137, %v1188, %v1189
      %v1191 = vrot.slane %v1189, 4
      %v1192 = vrot.slane %v266, 5
      %v1193 = vsel %vm1137, %v1191, %v1192
      %v1194 = vrot.slane %v1095, 5
      %v1195 = vrot.slane %v1194, 4
      %v1196 = vrot.slane %v243, 5
      %v1197 = vsel %vm1137, %v1195, %v1196
      %v1198 = vrot.slane %v1196, 4
      %v1199 = vrot.slane %v267, 5
      %v1200 = vsel %vm1137, %v1198, %v1199
      %v1201 = vrot.slane %v1096, 5
      %v1202 = vrot.slane %v1201, 4
      %v1203 = vrot.slane %v245, 5
      %v1204 = vsel %vm1137, %v1202, %v1203
      %v1205 = vrot.slane %v1203, 4
      %v1206 = vrot.slane %v268, 5
      %v1207 = vsel %vm1137, %v1205, %v1206
      %v1208 = vrot.slane %v1097, 5
      %v1209 = vrot.slane %v1208, 4
      %v1210 = vrot.slane %v247, 5
      %v1211 = vsel %vm1137, %v1209, %v1210
      %v1212 = vrot.slane %v1210, 4
      %v1213 = vrot.slane %v269, 5
      %v1214 = vsel %vm1137, %v1212, %v1213
      %v1215 = vrot.slane %v1098, 5
      %v1216 = vrot.slane %v1215, 4
      %v1217 = vrot.slane %v249, 5
      %v1218 = vsel %vm1137, %v1216, %v1217
      %v1219 = vrot.slane %v1217, 4
      %v1220 = vrot.slane %v270, 5
      %v1221 = vsel %vm1137, %v1219, %v1220
      %v1222 = vrot.slane %v1099, 5
      %v1223 = vrot.slane %v1222, 4
      %v1224 = vrot.slane %v251, 5
      %v1225 = vsel %vm1137, %v1223, %v1224
      %v1226 = vrot.slane %v1224, 4
      %v1227 = vrot.slane %v271, 5
      %v1228 = vsel %vm1137, %v1226, %v1227
      %v1229 = vrot.slane %v1100, 5
      %v1230 = vrot.slane %v1229, 4
      %v1231 = vrot.slane %v253, 5
      %v1232 = vsel %vm1137, %v1230, %v1231
      %v1233 = vrot.slane %v1231, 4
      %v1234 = vrot.slane %v272, 5
      %v1235 = vsel %vm1137, %v1233, %v1234
      %v1236 = vrot.slane %v1101, 5
      %v1237 = vrot.slane %v1236, 4
      %v1238 = vrot.slane %v255, 5
      %v1239 = vsel %vm1137, %v1237, %v1238
      %v1240 = vrot.slane %v1238, 4
      %v1241 = vrot.slane %v273, 5
      %v1242 = vsel %vm1137, %v1240, %v1241
      %v1243 = vrot.slane %v1102, 5
      %v1244 = vrot.slane %v1243, 4
      %v1245 = vrot.slane %v257, 5
      %v1246 = vsel %vm1137, %v1244, %v1245
      %v1247 = vrot.slane %v1245, 4
      %v1248 = vrot.slane %v274, 5
      %v1249 = vsel %vm1137, %v1247, %v1248
      %v1250 = vld [vmem:[%s212] sm:$0x8]
      %v1251 = vld [vmem:[%s212 + $0x4] sm:$0x1]
      %v1252 = vunpack.c.l.b16 %v1141
      %v1253 = vunpack.c.l.b16 %v1144
      %v1254 = vunpack.c.l.b16 %v1148
      %v1255 = vunpack.c.l.b16 %v1151
      %v1256 = vunpack.c.l.b16 %v1155
      %v1257 = vunpack.c.l.b16 %v1158
      %v1258 = vunpack.c.l.b16 %v1162
      %v1259 = vunpack.c.l.b16 %v1165
      %v1260 = vunpack.c.l.b16 %v1169
      %v1261 = vunpack.c.l.b16 %v1172
      %v1262 = vunpack.c.l.b16 %v1176
      %v1263 = vunpack.c.l.b16 %v1179
      %v1264 = vunpack.c.l.b16 %v1183
      %v1265 = vunpack.c.l.b16 %v1186
      %v1266 = vunpack.c.l.b16 %v1190
      %v1267 = vunpack.c.l.b16 %v1193
      %v1268 = vunpack.c.l.b16 %v1197
      %v1269 = vunpack.c.l.b16 %v1200
      %v1270 = vunpack.c.l.b16 %v1204
      %v1271 = vunpack.c.l.b16 %v1207
      %v1272 = vunpack.c.l.b16 %v1211
      %v1273 = vunpack.c.l.b16 %v1214
      %v1274 = vunpack.c.l.b16 %v1218
      %v1275 = vunpack.c.l.b16 %v1221
      %v1276 = vunpack.c.l.b16 %v1225
      %v1277 = vunpack.c.l.b16 %v1228
      %v1278 = vunpack.c.l.b16 %v1232
      %v1279 = vunpack.c.l.b16 %v1235
      %v1280 = vunpack.c.l.b16 %v1239
      %v1281 = vunpack.c.l.b16 %v1242
      %v1282 = vunpack.c.l.b16 %v1246
      %v1283 = vunpack.c.l.b16 %v1249
      %v1284 = vpack.c.b16 %v1253, %v1252
      %v1285 = vpack.c.b16 %v1255, %v1254
      %v1286 = vpack.c.b16 %v1257, %v1256
      %v1287 = vpack.c.b16 %v1259, %v1258
      %v1288 = vpack.c.b16 %v1261, %v1260
      %v1289 = vpack.c.b16 %v1263, %v1262
      %v1290 = vpack.c.b16 %v1265, %v1264
      %v1291 = vpack.c.b16 %v1267, %v1266
      %v1292 = vpack.c.b16 %v1269, %v1268
      %v1293 = vpack.c.b16 %v1271, %v1270
      %v1294 = vpack.c.b16 %v1273, %v1272
      %v1295 = vpack.c.b16 %v1275, %v1274
      %v1296 = vpack.c.b16 %v1277, %v1276
      %v1297 = vpack.c.b16 %v1279, %v1278
      %v1298 = vpack.c.b16 %v1281, %v1280
      %v1299 = vpack.c.b16 %v1283, %v1282
      %v1302 = vunpack.c.l.b16 %v1250
      %v1303 = vunpack.c.l.b16 %v1251
      %v1304 = vpack.c.b16 %v1303, %v1302
      %v1305 = vrot.slane %v1304, 3
      %v1307 = vsel %vm722, %v1284, 0
      %v1310 = vsel %vm722, %v1285, 0
      %v1313 = vsel %vm722, %v1286, 0
      %v1316 = vsel %vm722, %v1287, 0
      %v1319 = vsel %vm722, %v1288, 0
      %v1322 = vsel %vm722, %v1289, 0
      %v1325 = vsel %vm722, %v1290, 0
      %v1328 = vsel %vm722, %v1291, 0
      %v1331 = vsel %vm722, %v1292, 0
      %v1334 = vsel %vm722, %v1293, 0
      %v1337 = vsel %vm722, %v1294, 0
      %v1340 = vsel %vm722, %v1295, 0
      %v1343 = vsel %vm722, %v1296, 0
      %v1346 = vsel %vm722, %v1297, 0
      %v1349 = vsel %vm722, %v1298, 0
      %v1352 = vsel %vm722, %v1299, 0
      %v1355 = vand.u32 %v1305, %v774
      %1357 = vmatpush.bf16.msra.mxu0 0
      %1358 = vmatpush.bf16.msra.mxu0 0
      %1359 = vmatpush.bf16.msra.mxu0 0
      %1360 = vmatpush.bf16.msra.mxu0 0
      %1361 = vmatpush.bf16.msra.mxu0 0
      %1362 = vmatpush.bf16.msra.mxu0 0
      %1363 = vmatpush.bf16.msra.mxu0 0
      %1364 = vmatpush.bf16.msra.mxu0 %v1355
      %1365 = vmatmul.bf16.gmra.mxu0 %v1307
      %v1366 = vpop.f32.mrf.mxu0
      %v1367 = vadd.f32 0.0, %v1366
      %v1368 = vpop.f32.mrf.mxu0
      %v1369 = vadd.f32 0.0, %v1368
      %1370 = vmatmul.bf16.gmra.mxu0 %v1310
      %v1371 = vpop.f32.mrf.mxu0
      %v1372 = vadd.f32 0.0, %v1371
      %v1373 = vpop.f32.mrf.mxu0
      %v1374 = vadd.f32 0.0, %v1373
      %1375 = vmatmul.bf16.gmra.mxu0 %v1313
      %v1376 = vpop.f32.mrf.mxu0
      %v1377 = vadd.f32 0.0, %v1376
      %v1378 = vpop.f32.mrf.mxu0
      %v1379 = vadd.f32 0.0, %v1378
      %1380 = vmatmul.bf16.gmra.mxu0 %v1316
      %v1381 = vpop.f32.mrf.mxu0
      %v1382 = vadd.f32 0.0, %v1381
      %v1383 = vpop.f32.mrf.mxu0
      %v1384 = vadd.f32 0.0, %v1383
      %1385 = vmatmul.bf16.gmra.mxu0 %v1319
      %v1386 = vpop.f32.mrf.mxu0
      %v1387 = vadd.f32 0.0, %v1386
      %v1388 = vpop.f32.mrf.mxu0
      %v1389 = vadd.f32 0.0, %v1388
      %1390 = vmatmul.bf16.gmra.mxu0 %v1322
      %v1391 = vpop.f32.mrf.mxu0
      %v1392 = vadd.f32 0.0, %v1391
      %v1393 = vpop.f32.mrf.mxu0
      %v1394 = vadd.f32 0.0, %v1393
      %1395 = vmatmul.bf16.gmra.mxu0 %v1325
      %v1396 = vpop.f32.mrf.mxu0
      %v1397 = vadd.f32 0.0, %v1396
      %v1398 = vpop.f32.mrf.mxu0
      %v1399 = vadd.f32 0.0, %v1398
      %1400 = vmatmul.bf16.gmra.mxu0 %v1328
      %v1401 = vpop.f32.mrf.mxu0
      %v1402 = vadd.f32 0.0, %v1401
      %v1403 = vpop.f32.mrf.mxu0
      %v1404 = vadd.f32 0.0, %v1403
      %1405 = vmatmul.bf16.gmra.mxu0 %v1331
      %v1406 = vpop.f32.mrf.mxu0
      %v1407 = vadd.f32 0.0, %v1406
      %v1408 = vpop.f32.mrf.mxu0
      %v1409 = vadd.f32 0.0, %v1408
      %1410 = vmatmul.bf16.gmra.mxu0 %v1334
      %v1411 = vpop.f32.mrf.mxu0
      %v1412 = vadd.f32 0.0, %v1411
      %v1413 = vpop.f32.mrf.mxu0
      %v1414 = vadd.f32 0.0, %v1413
      %1415 = vmatmul.bf16.gmra.mxu0 %v1337
      %v1416 = vpop.f32.mrf.mxu0
      %v1417 = vadd.f32 0.0, %v1416
      %v1418 = vpop.f32.mrf.mxu0
      %v1419 = vadd.f32 0.0, %v1418
      %1420 = vmatmul.bf16.gmra.mxu0 %v1340
      %v1421 = vpop.f32.mrf.mxu0
      %v1422 = vadd.f32 0.0, %v1421
      %v1423 = vpop.f32.mrf.mxu0
      %v1424 = vadd.f32 0.0, %v1423
      %1425 = vmatmul.bf16.gmra.mxu0 %v1343
      %v1426 = vpop.f32.mrf.mxu0
      %v1427 = vadd.f32 0.0, %v1426
      %v1428 = vpop.f32.mrf.mxu0
      %v1429 = vadd.f32 0.0, %v1428
      %1430 = vmatmul.bf16.gmra.mxu0 %v1346
      %v1431 = vpop.f32.mrf.mxu0
      %v1432 = vadd.f32 0.0, %v1431
      %v1433 = vpop.f32.mrf.mxu0
      %v1434 = vadd.f32 0.0, %v1433
      %1435 = vmatmul.bf16.gmra.mxu0 %v1349
      %v1436 = vpop.f32.mrf.mxu0
      %v1437 = vadd.f32 0.0, %v1436
      %v1438 = vpop.f32.mrf.mxu0
      %v1439 = vadd.f32 0.0, %v1438
      %1440 = vmatmul.bf16.gmra.mxu0 %v1352
      %v1441 = vpop.f32.mrf.mxu0
      %v1442 = vadd.f32 0.0, %v1441
      %v1443 = vpop.f32.mrf.mxu0
      %v1444 = vadd.f32 0.0, %v1443
      %1445 = vdwg.mxu0
      %v1446 = vadd.f32 %v1008, %v1367
      %v1447 = vadd.f32 %v1010, %v1369
      %v1448 = vadd.f32 %v1013, %v1372
      %v1449 = vadd.f32 %v1015, %v1374
      %v1450 = vadd.f32 %v1018, %v1377
      %v1451 = vadd.f32 %v1020, %v1379
      %v1452 = vadd.f32 %v1023, %v1382
      %v1453 = vadd.f32 %v1025, %v1384
      %v1454 = vadd.f32 %v1028, %v1387
      %v1455 = vadd.f32 %v1030, %v1389
      %v1456 = vadd.f32 %v1033, %v1392
      %v1457 = vadd.f32 %v1035, %v1394
      %v1458 = vadd.f32 %v1038, %v1397
      %v1459 = vadd.f32 %v1040, %v1399
      %v1460 = vadd.f32 %v1043, %v1402
      %v1461 = vadd.f32 %v1045, %v1404
      %v1462 = vadd.f32 %v1048, %v1407
      %v1463 = vadd.f32 %v1050, %v1409
      %v1464 = vadd.f32 %v1053, %v1412
      %v1465 = vadd.f32 %v1055, %v1414
      %v1466 = vadd.f32 %v1058, %v1417
      %v1467 = vadd.f32 %v1060, %v1419
      %v1468 = vadd.f32 %v1063, %v1422
      %v1469 = vadd.f32 %v1065, %v1424
      %v1470 = vadd.f32 %v1068, %v1427
      %v1471 = vadd.f32 %v1070, %v1429
      %v1472 = vadd.f32 %v1073, %v1432
      %v1473 = vadd.f32 %v1075, %v1434
      %v1474 = vadd.f32 %v1078, %v1437
      %v1475 = vadd.f32 %v1080, %v1439
      %v1476 = vadd.f32 %v1083, %v1442
      %v1477 = vadd.f32 %v1085, %v1444
      %s1478 = scalar_lea.vmem %s208, 12
      %v1479 = vld [vmem:[%s1478] sm:$0xf]
      %v1480 = vld [vmem:[%s1478 + $0x4] sm:$0xf]
      %v1481 = vld [vmem:[%s1478 + $0xc] sm:$0xf]
      %v1482 = vld [vmem:[%s1478 + $0x10] sm:$0xf]
      %v1483 = vld [vmem:[%s1478 + $0x18] sm:$0xf]
      %v1484 = vld [vmem:[%s1478 + $0x1c] sm:$0xf]
      %v1485 = vld [vmem:[%s1478 + $0x24] sm:$0xf]
      %v1486 = vld [vmem:[%s1478 + $0x28] sm:$0xf]
      %v1487 = vld [vmem:[%s1478 + $0x30] sm:$0xf]
      %v1488 = vld [vmem:[%s1478 + $0x34] sm:$0xf]
      %v1489 = vld [vmem:[%s1478 + $0x3c] sm:$0xf]
      %v1490 = vld [vmem:[%s1478 + $0x40] sm:$0xf]
      %v1491 = vld [vmem:[%s1478 + $0x48] sm:$0xf]
      %v1492 = vld [vmem:[%s1478 + $0x4c] sm:$0xf]
      %v1493 = vld [vmem:[%s1478 + $0x54] sm:$0xf]
      %v1494 = vld [vmem:[%s1478 + $0x58] sm:$0xf]
      %v1495 = vld [vmem:[%s1478 + $0x60] sm:$0xf]
      %v1496 = vld [vmem:[%s1478 + $0x64] sm:$0xf]
      %v1497 = vld [vmem:[%s1478 + $0x6c] sm:$0xf]
      %v1498 = vld [vmem:[%s1478 + $0x70] sm:$0xf]
      %v1499 = vld [vmem:[%s1478 + $0x78] sm:$0xf]
      %v1500 = vld [vmem:[%s1478 + $0x7c] sm:$0xf]
      %v1501 = vld [vmem:[%s1478 + $0x84] sm:$0xf]
      %v1502 = vld [vmem:[%s1478 + $0x88] sm:$0xf]
      %v1503 = vld [vmem:[%s1478 + $0x90] sm:$0xf]
      %v1504 = vld [vmem:[%s1478 + $0x94] sm:$0xf]
      %v1505 = vld [vmem:[%s1478 + $0x9c] sm:$0xf]
      %v1506 = vld [vmem:[%s1478 + $0xa0] sm:$0xf]
      %v1507 = vld [vmem:[%s1478 + $0xa8] sm:$0xf]
      %v1508 = vld [vmem:[%s1478 + $0xac] sm:$0xf]
      %v1509 = vld [vmem:[%s1478 + $0xb4] sm:$0xf]
      %v1510 = vld [vmem:[%s1478 + $0xb8] sm:$0xf]
      %v1511 = vld [vmem:[%s212 + $0x4] sm:$0x3]
      %v1544 = vunpack.c.l.b16 %v1479
      %v1545 = vunpack.c.l.b16 %v1480
      %v1546 = vunpack.c.l.b16 %v1481
      %v1547 = vunpack.c.l.b16 %v1482
      %v1548 = vunpack.c.l.b16 %v1483
      %v1549 = vunpack.c.l.b16 %v1484
      %v1550 = vunpack.c.l.b16 %v1485
      %v1551 = vunpack.c.l.b16 %v1486
      %v1552 = vunpack.c.l.b16 %v1487
      %v1553 = vunpack.c.l.b16 %v1488
      %v1554 = vunpack.c.l.b16 %v1489
      %v1555 = vunpack.c.l.b16 %v1490
      %v1556 = vunpack.c.l.b16 %v1491
      %v1557 = vunpack.c.l.b16 %v1492
      %v1558 = vunpack.c.l.b16 %v1493
      %v1559 = vunpack.c.l.b16 %v1494
      %v1560 = vunpack.c.l.b16 %v1495
      %v1561 = vunpack.c.l.b16 %v1496
      %v1562 = vunpack.c.l.b16 %v1497
      %v1563 = vunpack.c.l.b16 %v1498
      %v1564 = vunpack.c.l.b16 %v1499
      %v1565 = vunpack.c.l.b16 %v1500
      %v1566 = vunpack.c.l.b16 %v1501
      %v1567 = vunpack.c.l.b16 %v1502
      %v1568 = vunpack.c.l.b16 %v1503
      %v1569 = vunpack.c.l.b16 %v1504
      %v1570 = vunpack.c.l.b16 %v1505
      %v1571 = vunpack.c.l.b16 %v1506
      %v1572 = vunpack.c.l.b16 %v1507
      %v1573 = vunpack.c.l.b16 %v1508
      %v1574 = vunpack.c.l.b16 %v1509
      %v1575 = vunpack.c.l.b16 %v1510
      %v1576 = vpack.c.b16 %v1545, %v1544
      %v1577 = vpack.c.b16 %v1547, %v1546
      %v1578 = vpack.c.b16 %v1549, %v1548
      %v1579 = vpack.c.b16 %v1551, %v1550
      %v1580 = vpack.c.b16 %v1553, %v1552
      %v1581 = vpack.c.b16 %v1555, %v1554
      %v1582 = vpack.c.b16 %v1557, %v1556
      %v1583 = vpack.c.b16 %v1559, %v1558
      %v1584 = vpack.c.b16 %v1561, %v1560
      %v1585 = vpack.c.b16 %v1563, %v1562
      %v1586 = vpack.c.b16 %v1565, %v1564
      %v1587 = vpack.c.b16 %v1567, %v1566
      %v1588 = vpack.c.b16 %v1569, %v1568
      %v1589 = vpack.c.b16 %v1571, %v1570
      %v1590 = vpack.c.b16 %v1573, %v1572
      %v1591 = vpack.c.b16 %v1575, %v1574
      %v1593 = vunpack.c.l.b16 %v1511
      %v1594 = vpack.c.b16 %v1593, %v1593
      %v1596 = vshrl.u32 %v1594, 16
      %v1598 = vshll.u32 %v1594, 16
      %v1600 = vrot.slane %v1598, 1
      %v1601 = vor.u32 %v1596, %v1600
      %v1603 = vsel %vm722, %v1576, 0
      %v1606 = vsel %vm722, %v1577, 0
      %v1609 = vsel %vm722, %v1578, 0
      %v1612 = vsel %vm722, %v1579, 0
      %v1615 = vsel %vm722, %v1580, 0
      %v1618 = vsel %vm722, %v1581, 0
      %v1621 = vsel %vm722, %v1582, 0
      %v1624 = vsel %vm722, %v1583, 0
      %v1627 = vsel %vm722, %v1584, 0
      %v1630 = vsel %vm722, %v1585, 0
      %v1633 = vsel %vm722, %v1586, 0
      %v1636 = vsel %vm722, %v1587, 0
      %v1639 = vsel %vm722, %v1588, 0
      %v1642 = vsel %vm722, %v1589, 0
      %v1645 = vsel %vm722, %v1590, 0
      %v1648 = vsel %vm722, %v1591, 0
      %v1651 = vand.u32 %v1601, %v774
      %1653 = vmatpush.bf16.msra.mxu0 0
      %1654 = vmatpush.bf16.msra.mxu0 0
      %1655 = vmatpush.bf16.msra.mxu0 0
      %1656 = vmatpush.bf16.msra.mxu0 0
      %1657 = vmatpush.bf16.msra.mxu0 0
      %1658 = vmatpush.bf16.msra.mxu0 0
      %1659 = vmatpush.bf16.msra.mxu0 0
      %1660 = vmatpush.bf16.msra.mxu0 %v1651
      %1661 = vmatmul.bf16.gmra.mxu0 %v1603
      %v1662 = vpop.f32.mrf.mxu0
      %v1663 = vadd.f32 0.0, %v1662
      %v1664 = vpop.f32.mrf.mxu0
      %v1665 = vadd.f32 0.0, %v1664
      %1666 = vmatmul.bf16.gmra.mxu0 %v1606
      %v1667 = vpop.f32.mrf.mxu0
      %v1668 = vadd.f32 0.0, %v1667
      %v1669 = vpop.f32.mrf.mxu0
      %v1670 = vadd.f32 0.0, %v1669
      %1671 = vmatmul.bf16.gmra.mxu0 %v1609
      %v1672 = vpop.f32.mrf.mxu0
      %v1673 = vadd.f32 0.0, %v1672
      %v1674 = vpop.f32.mrf.mxu0
      %v1675 = vadd.f32 0.0, %v1674
      %1676 = vmatmul.bf16.gmra.mxu0 %v1612
      %v1677 = vpop.f32.mrf.mxu0
      %v1678 = vadd.f32 0.0, %v1677
      %v1679 = vpop.f32.mrf.mxu0
      %v1680 = vadd.f32 0.0, %v1679
      %1681 = vmatmul.bf16.gmra.mxu0 %v1615
      %v1682 = vpop.f32.mrf.mxu0
      %v1683 = vadd.f32 0.0, %v1682
      %v1684 = vpop.f32.mrf.mxu0
      %v1685 = vadd.f32 0.0, %v1684
      %1686 = vmatmul.bf16.gmra.mxu0 %v1618
      %v1687 = vpop.f32.mrf.mxu0
      %v1688 = vadd.f32 0.0, %v1687
      %v1689 = vpop.f32.mrf.mxu0
      %v1690 = vadd.f32 0.0, %v1689
      %1691 = vmatmul.bf16.gmra.mxu0 %v1621
      %v1692 = vpop.f32.mrf.mxu0
      %v1693 = vadd.f32 0.0, %v1692
      %v1694 = vpop.f32.mrf.mxu0
      %v1695 = vadd.f32 0.0, %v1694
      %1696 = vmatmul.bf16.gmra.mxu0 %v1624
      %v1697 = vpop.f32.mrf.mxu0
      %v1698 = vadd.f32 0.0, %v1697
      %v1699 = vpop.f32.mrf.mxu0
      %v1700 = vadd.f32 0.0, %v1699
      %1701 = vmatmul.bf16.gmra.mxu0 %v1627
      %v1702 = vpop.f32.mrf.mxu0
      %v1703 = vadd.f32 0.0, %v1702
      %v1704 = vpop.f32.mrf.mxu0
      %v1705 = vadd.f32 0.0, %v1704
      %1706 = vmatmul.bf16.gmra.mxu0 %v1630
      %v1707 = vpop.f32.mrf.mxu0
      %v1708 = vadd.f32 0.0, %v1707
      %v1709 = vpop.f32.mrf.mxu0
      %v1710 = vadd.f32 0.0, %v1709
      %1711 = vmatmul.bf16.gmra.mxu0 %v1633
      %v1712 = vpop.f32.mrf.mxu0
      %v1713 = vadd.f32 0.0, %v1712
      %v1714 = vpop.f32.mrf.mxu0
      %v1715 = vadd.f32 0.0, %v1714
      %1716 = vmatmul.bf16.gmra.mxu0 %v1636
      %v1717 = vpop.f32.mrf.mxu0
      %v1718 = vadd.f32 0.0, %v1717
      %v1719 = vpop.f32.mrf.mxu0
      %v1720 = vadd.f32 0.0, %v1719
      %1721 = vmatmul.bf16.gmra.mxu0 %v1639
      %v1722 = vpop.f32.mrf.mxu0
      %v1723 = vadd.f32 0.0, %v1722
      %v1724 = vpop.f32.mrf.mxu0
      %v1725 = vadd.f32 0.0, %v1724
      %1726 = vmatmul.bf16.gmra.mxu0 %v1642
      %v1727 = vpop.f32.mrf.mxu0
      %v1728 = vadd.f32 0.0, %v1727
      %v1729 = vpop.f32.mrf.mxu0
      %v1730 = vadd.f32 0.0, %v1729
      %1731 = vmatmul.bf16.gmra.mxu0 %v1645
      %v1732 = vpop.f32.mrf.mxu0
      %v1733 = vadd.f32 0.0, %v1732
      %v1734 = vpop.f32.mrf.mxu0
      %v1735 = vadd.f32 0.0, %v1734
      %1736 = vmatmul.bf16.gmra.mxu0 %v1648
      %v1737 = vpop.f32.mrf.mxu0
      %v1738 = vadd.f32 0.0, %v1737
      %v1739 = vpop.f32.mrf.mxu0
      %v1740 = vadd.f32 0.0, %v1739
      %1741 = vdwg.mxu0
      %v1742 = vadd.f32 %v1446, %v1663
      %v1743 = vadd.f32 %v1447, %v1665
      %v1744 = vadd.f32 %v1448, %v1668
      %v1745 = vadd.f32 %v1449, %v1670
      %v1746 = vadd.f32 %v1450, %v1673
      %v1747 = vadd.f32 %v1451, %v1675
      %v1748 = vadd.f32 %v1452, %v1678
      %v1749 = vadd.f32 %v1453, %v1680
      %v1750 = vadd.f32 %v1454, %v1683
      %v1751 = vadd.f32 %v1455, %v1685
      %v1752 = vadd.f32 %v1456, %v1688
      %v1753 = vadd.f32 %v1457, %v1690
      %v1754 = vadd.f32 %v1458, %v1693
      %v1755 = vadd.f32 %v1459, %v1695
      %v1756 = vadd.f32 %v1460, %v1698
      %v1757 = vadd.f32 %v1461, %v1700
      %v1758 = vadd.f32 %v1462, %v1703
      %v1759 = vadd.f32 %v1463, %v1705
      %v1760 = vadd.f32 %v1464, %v1708
      %v1761 = vadd.f32 %v1465, %v1710
      %v1762 = vadd.f32 %v1466, %v1713
      %v1763 = vadd.f32 %v1467, %v1715
      %v1764 = vadd.f32 %v1468, %v1718
      %v1765 = vadd.f32 %v1469, %v1720
      %v1766 = vadd.f32 %v1470, %v1723
      %v1767 = vadd.f32 %v1471, %v1725
      %v1768 = vadd.f32 %v1472, %v1728
      %v1769 = vadd.f32 %v1473, %v1730
      %v1770 = vadd.f32 %v1474, %v1733
      %v1771 = vadd.f32 %v1475, %v1735
      %v1772 = vadd.f32 %v1476, %v1738
      %v1773 = vadd.f32 %v1477, %v1740
      %v1774 = vld [vmem:[%s1478] sm:$0xf]
      %v1775 = vld [vmem:[%s1478 + $0x4] sm:$0xf]
      %v1776 = vld [vmem:[%s1478 + $0x8] sm:$0x1]
      %v1777 = vld [vmem:[%s1478 + $0xc] sm:$0xf]
      %v1778 = vld [vmem:[%s1478 + $0x10] sm:$0xf]
      %v1779 = vld [vmem:[%s1478 + $0x14] sm:$0x1]
      %v1780 = vld [vmem:[%s1478 + $0x18] sm:$0xf]
      %v1781 = vld [vmem:[%s1478 + $0x1c] sm:$0xf]
      %v1782 = vld [vmem:[%s1478 + $0x20] sm:$0x1]
      %v1783 = vld [vmem:[%s1478 + $0x24] sm:$0xf]
      %v1784 = vld [vmem:[%s1478 + $0x28] sm:$0xf]
      %v1785 = vld [vmem:[%s1478 + $0x2c] sm:$0x1]
      %v1786 = vld [vmem:[%s1478 + $0x30] sm:$0xf]
      %v1787 = vld [vmem:[%s1478 + $0x34] sm:$0xf]
      %v1788 = vld [vmem:[%s1478 + $0x38] sm:$0x1]
      %v1789 = vld [vmem:[%s1478 + $0x3c] sm:$0xf]
      %v1790 = vld [vmem:[%s1478 + $0x40] sm:$0xf]
      %v1791 = vld [vmem:[%s1478 + $0x44] sm:$0x1]
      %v1792 = vld [vmem:[%s1478 + $0x48] sm:$0xf]
      %v1793 = vld [vmem:[%s1478 + $0x4c] sm:$0xf]
      %v1794 = vld [vmem:[%s1478 + $0x50] sm:$0x1]
      %v1795 = vld [vmem:[%s1478 + $0x54] sm:$0xf]
      %v1796 = vld [vmem:[%s1478 + $0x58] sm:$0xf]
      %v1797 = vld [vmem:[%s1478 + $0x5c] sm:$0x1]
      %v1798 = vld [vmem:[%s1478 + $0x60] sm:$0xf]
      %v1799 = vld [vmem:[%s1478 + $0x64] sm:$0xf]
      %v1800 = vld [vmem:[%s1478 + $0x68] sm:$0x1]
      %v1801 = vld [vmem:[%s1478 + $0x6c] sm:$0xf]
      %v1802 = vld [vmem:[%s1478 + $0x70] sm:$0xf]
      %v1803 = vld [vmem:[%s1478 + $0x74] sm:$0x1]
      %v1804 = vld [vmem:[%s1478 + $0x78] sm:$0xf]
      %v1805 = vld [vmem:[%s1478 + $0x7c] sm:$0xf]
      %v1806 = vld [vmem:[%s1478 + $0x80] sm:$0x1]
      %v1807 = vld [vmem:[%s1478 + $0x84] sm:$0xf]
      %v1808 = vld [vmem:[%s1478 + $0x88] sm:$0xf]
      %v1809 = vld [vmem:[%s1478 + $0x8c] sm:$0x1]
      %v1810 = vld [vmem:[%s1478 + $0x90] sm:$0xf]
      %v1811 = vld [vmem:[%s1478 + $0x94] sm:$0xf]
      %v1812 = vld [vmem:[%s1478 + $0x98] sm:$0x1]
      %v1813 = vld [vmem:[%s1478 + $0x9c] sm:$0xf]
      %v1814 = vld [vmem:[%s1478 + $0xa0] sm:$0xf]
      %v1815 = vld [vmem:[%s1478 + $0xa4] sm:$0x1]
      %v1816 = vld [vmem:[%s1478 + $0xa8] sm:$0xf]
      %v1817 = vld [vmem:[%s1478 + $0xac] sm:$0xf]
      %v1818 = vld [vmem:[%s1478 + $0xb0] sm:$0x1]
      %v1819 = vld [vmem:[%s1478 + $0xb4] sm:$0xf]
      %v1820 = vld [vmem:[%s1478 + $0xb8] sm:$0xf]
      %v1821 = vld [vmem:[%s1478 + $0xbc] sm:$0x1]
      %v1823 = vshrl.u32 %v1774, 16
      %v1825 = vrot.slane %v1823, 4
      %v1826 = vshll.u32 %v1774, 16
      %v1828 = vrot.slane %v1826, 5
      %v1829 = vor.u32 %v1825, %v1828
      %v1830 = vrot.slane %v1829, 4
      %v1832 = vshll.u32 %v1775, 16
      %v1834 = vrot.slane %v1832, 5
      %v1835 = vsel %vm277, %v1830, %v1834
      %v1836 = vshrl.u32 %v1775, 16
      %v1838 = vrot.slane %v1836, 4
      %v1839 = vor.u32 %v1838, %v1834
      %v1840 = vrot.slane %v1839, 4
      %v1842 = vshll.u32 %v1776, 16
      %v1844 = vrot.slane %v1842, 5
      %v1845 = vsel %vm277, %v1840, %v1844
      %v1847 = vshrl.u32 %v1777, 16
      %v1849 = vrot.slane %v1847, 4
      %v1850 = vshll.u32 %v1777, 16
      %v1852 = vrot.slane %v1850, 5
      %v1853 = vor.u32 %v1849, %v1852
      %v1854 = vrot.slane %v1853, 4
      %v1856 = vshll.u32 %v1778, 16
      %v1858 = vrot.slane %v1856, 5
      %v1859 = vsel %vm277, %v1854, %v1858
      %v1860 = vshrl.u32 %v1778, 16
      %v1862 = vrot.slane %v1860, 4
      %v1863 = vor.u32 %v1862, %v1858
      %v1864 = vrot.slane %v1863, 4
      %v1866 = vshll.u32 %v1779, 16
      %v1868 = vrot.slane %v1866, 5
      %v1869 = vsel %vm277, %v1864, %v1868
      %v1871 = vshrl.u32 %v1780, 16
      %v1873 = vrot.slane %v1871, 4
      %v1874 = vshll.u32 %v1780, 16
      %v1876 = vrot.slane %v1874, 5
      %v1877 = vor.u32 %v1873, %v1876
      %v1878 = vrot.slane %v1877, 4
      %v1880 = vshll.u32 %v1781, 16
      %v1882 = vrot.slane %v1880, 5
      %v1883 = vsel %vm277, %v1878, %v1882
      %v1884 = vshrl.u32 %v1781, 16
      %v1886 = vrot.slane %v1884, 4
      %v1887 = vor.u32 %v1886, %v1882
      %v1888 = vrot.slane %v1887, 4
      %v1890 = vshll.u32 %v1782, 16
      %v1892 = vrot.slane %v1890, 5
      %v1893 = vsel %vm277, %v1888, %v1892
      %v1895 = vshrl.u32 %v1783, 16
      %v1897 = vrot.slane %v1895, 4
      %v1898 = vshll.u32 %v1783, 16
      %v1900 = vrot.slane %v1898, 5
      %v1901 = vor.u32 %v1897, %v1900
      %v1902 = vrot.slane %v1901, 4
      %v1904 = vshll.u32 %v1784, 16
      %v1906 = vrot.slane %v1904, 5
      %v1907 = vsel %vm277, %v1902, %v1906
      %v1908 = vshrl.u32 %v1784, 16
      %v1910 = vrot.slane %v1908, 4
      %v1911 = vor.u32 %v1910, %v1906
      %v1912 = vrot.slane %v1911, 4
      %v1914 = vshll.u32 %v1785, 16
      %v1916 = vrot.slane %v1914, 5
      %v1917 = vsel %vm277, %v1912, %v1916
      %v1919 = vshrl.u32 %v1786, 16
      %v1921 = vrot.slane %v1919, 4
      %v1922 = vshll.u32 %v1786, 16
      %v1924 = vrot.slane %v1922, 5
      %v1925 = vor.u32 %v1921, %v1924
      %v1926 = vrot.slane %v1925, 4
      %v1928 = vshll.u32 %v1787, 16
      %v1930 = vrot.slane %v1928, 5
      %v1931 = vsel %vm277, %v1926, %v1930
      %v1932 = vshrl.u32 %v1787, 16
      %v1934 = vrot.slane %v1932, 4
      %v1935 = vor.u32 %v1934, %v1930
      %v1936 = vrot.slane %v1935, 4
      %v1938 = vshll.u32 %v1788, 16
      %v1940 = vrot.slane %v1938, 5
      %v1941 = vsel %vm277, %v1936, %v1940
      %v1943 = vshrl.u32 %v1789, 16
      %v1945 = vrot.slane %v1943, 4
      %v1946 = vshll.u32 %v1789, 16
      %v1948 = vrot.slane %v1946, 5
      %v1949 = vor.u32 %v1945, %v1948
      %v1950 = vrot.slane %v1949, 4
      %v1952 = vshll.u32 %v1790, 16
      %v1954 = vrot.slane %v1952, 5
      %v1955 = vsel %vm277, %v1950, %v1954
      %v1956 = vshrl.u32 %v1790, 16
      %v1958 = vrot.slane %v1956, 4
      %v1959 = vor.u32 %v1958, %v1954
      %v1960 = vrot.slane %v1959, 4
      %v1962 = vshll.u32 %v1791, 16
      %v1964 = vrot.slane %v1962, 5
      %v1965 = vsel %vm277, %v1960, %v1964
      %v1967 = vshrl.u32 %v1792, 16
      %v1969 = vrot.slane %v1967, 4
      %v1970 = vshll.u32 %v1792, 16
      %v1972 = vrot.slane %v1970, 5
      %v1973 = vor.u32 %v1969, %v1972
      %v1974 = vrot.slane %v1973, 4
      %v1976 = vshll.u32 %v1793, 16
      %v1978 = vrot.slane %v1976, 5
      %v1979 = vsel %vm277, %v1974, %v1978
      %v1980 = vshrl.u32 %v1793, 16
      %v1982 = vrot.slane %v1980, 4
      %v1983 = vor.u32 %v1982, %v1978
      %v1984 = vrot.slane %v1983, 4
      %v1986 = vshll.u32 %v1794, 16
      %v1988 = vrot.slane %v1986, 5
      %v1989 = vsel %vm277, %v1984, %v1988
      %v1991 = vshrl.u32 %v1795, 16
      %v1993 = vrot.slane %v1991, 4
      %v1994 = vshll.u32 %v1795, 16
      %v1996 = vrot.slane %v1994, 5
      %v1997 = vor.u32 %v1993, %v1996
      %v1998 = vrot.slane %v1997, 4
      %v2000 = vshll.u32 %v1796, 16
      %v2002 = vrot.slane %v2000, 5
      %v2003 = vsel %vm277, %v1998, %v2002
      %v2004 = vshrl.u32 %v1796, 16
      %v2006 = vrot.slane %v2004, 4
      %v2007 = vor.u32 %v2006, %v2002
      %v2008 = vrot.slane %v2007, 4
      %v2010 = vshll.u32 %v1797, 16
      %v2012 = vrot.slane %v2010, 5
      %v2013 = vsel %vm277, %v2008, %v2012
      %v2015 = vshrl.u32 %v1798, 16
      %v2017 = vrot.slane %v2015, 4
      %v2018 = vshll.u32 %v1798, 16
      %v2020 = vrot.slane %v2018, 5
      %v2021 = vor.u32 %v2017, %v2020
      %v2022 = vrot.slane %v2021, 4
      %v2024 = vshll.u32 %v1799, 16
      %v2026 = vrot.slane %v2024, 5
      %v2027 = vsel %vm277, %v2022, %v2026
      %v2028 = vshrl.u32 %v1799, 16
      %v2030 = vrot.slane %v2028, 4
      %v2031 = vor.u32 %v2030, %v2026
      %v2032 = vrot.slane %v2031, 4
      %v2034 = vshll.u32 %v1800, 16
      %v2036 = vrot.slane %v2034, 5
      %v2037 = vsel %vm277, %v2032, %v2036
      %v2039 = vshrl.u32 %v1801, 16
      %v2041 = vrot.slane %v2039, 4
      %v2042 = vshll.u32 %v1801, 16
      %v2044 = vrot.slane %v2042, 5
      %v2045 = vor.u32 %v2041, %v2044
      %v2046 = vrot.slane %v2045, 4
      %v2048 = vshll.u32 %v1802, 16
      %v2050 = vrot.slane %v2048, 5
      %v2051 = vsel %vm277, %v2046, %v2050
      %v2052 = vshrl.u32 %v1802, 16
      %v2054 = vrot.slane %v2052, 4
      %v2055 = vor.u32 %v2054, %v2050
      %v2056 = vrot.slane %v2055, 4
      %v2058 = vshll.u32 %v1803, 16
      %v2060 = vrot.slane %v2058, 5
      %v2061 = vsel %vm277, %v2056, %v2060
      %v2063 = vshrl.u32 %v1804, 16
      %v2065 = vrot.slane %v2063, 4
      %v2066 = vshll.u32 %v1804, 16
      %v2068 = vrot.slane %v2066, 5
      %v2069 = vor.u32 %v2065, %v2068
      %v2070 = vrot.slane %v2069, 4
      %v2072 = vshll.u32 %v1805, 16
      %v2074 = vrot.slane %v2072, 5
      %v2075 = vsel %vm277, %v2070, %v2074
      %v2076 = vshrl.u32 %v1805, 16
      %v2078 = vrot.slane %v2076, 4
      %v2079 = vor.u32 %v2078, %v2074
      %v2080 = vrot.slane %v2079, 4
      %v2082 = vshll.u32 %v1806, 16
      %v2084 = vrot.slane %v2082, 5
      %v2085 = vsel %vm277, %v2080, %v2084
      %v2087 = vshrl.u32 %v1807, 16
      %v2089 = vrot.slane %v2087, 4
      %v2090 = vshll.u32 %v1807, 16
      %v2092 = vrot.slane %v2090, 5
      %v2093 = vor.u32 %v2089, %v2092
      %v2094 = vrot.slane %v2093, 4
      %v2096 = vshll.u32 %v1808, 16
      %v2098 = vrot.slane %v2096, 5
      %v2099 = vsel %vm277, %v2094, %v2098
      %v2100 = vshrl.u32 %v1808, 16
      %v2102 = vrot.slane %v2100, 4
      %v2103 = vor.u32 %v2102, %v2098
      %v2104 = vrot.slane %v2103, 4
      %v2106 = vshll.u32 %v1809, 16
      %v2108 = vrot.slane %v2106, 5
      %v2109 = vsel %vm277, %v2104, %v2108
      %v2111 = vshrl.u32 %v1810, 16
      %v2113 = vrot.slane %v2111, 4
      %v2114 = vshll.u32 %v1810, 16
      %v2116 = vrot.slane %v2114, 5
      %v2117 = vor.u32 %v2113, %v2116
      %v2118 = vrot.slane %v2117, 4
      %v2120 = vshll.u32 %v1811, 16
      %v2122 = vrot.slane %v2120, 5
      %v2123 = vsel %vm277, %v2118, %v2122
      %v2124 = vshrl.u32 %v1811, 16
      %v2126 = vrot.slane %v2124, 4
      %v2127 = vor.u32 %v2126, %v2122
      %v2128 = vrot.slane %v2127, 4
      %v2130 = vshll.u32 %v1812, 16
      %v2132 = vrot.slane %v2130, 5
      %v2133 = vsel %vm277, %v2128, %v2132
      %v2135 = vshrl.u32 %v1813, 16
      %v2137 = vrot.slane %v2135, 4
      %v2138 = vshll.u32 %v1813, 16
      %v2140 = vrot.slane %v2138, 5
      %v2141 = vor.u32 %v2137, %v2140
      %v2142 = vrot.slane %v2141, 4
      %v2144 = vshll.u32 %v1814, 16
      %v2146 = vrot.slane %v2144, 5
      %v2147 = vsel %vm277, %v2142, %v2146
      %v2148 = vshrl.u32 %v1814, 16
      %v2150 = vrot.slane %v2148, 4
      %v2151 = vor.u32 %v2150, %v2146
      %v2152 = vrot.slane %v2151, 4
      %v2154 = vshll.u32 %v1815, 16
      %v2156 = vrot.slane %v2154, 5
      %v2157 = vsel %vm277, %v2152, %v2156
      %v2159 = vshrl.u32 %v1816, 16
      %v2161 = vrot.slane %v2159, 4
      %v2162 = vshll.u32 %v1816, 16
      %v2164 = vrot.slane %v2162, 5
      %v2165 = vor.u32 %v2161, %v2164
      %v2166 = vrot.slane %v2165, 4
      %v2168 = vshll.u32 %v1817, 16
      %v2170 = vrot.slane %v2168, 5
      %v2171 = vsel %vm277, %v2166, %v2170
      %v2172 = vshrl.u32 %v1817, 16
      %v2174 = vrot.slane %v2172, 4
      %v2175 = vor.u32 %v2174, %v2170
      %v2176 = vrot.slane %v2175, 4
      %v2178 = vshll.u32 %v1818, 16
      %v2180 = vrot.slane %v2178, 5
      %v2181 = vsel %vm277, %v2176, %v2180
      %v2183 = vshrl.u32 %v1819, 16
      %v2185 = vrot.slane %v2183, 4
      %v2186 = vshll.u32 %v1819, 16
      %v2188 = vrot.slane %v2186, 5
      %v2189 = vor.u32 %v2185, %v2188
      %v2190 = vrot.slane %v2189, 4
      %v2192 = vshll.u32 %v1820, 16
      %v2194 = vrot.slane %v2192, 5
      %v2195 = vsel %vm277, %v2190, %v2194
      %v2196 = vshrl.u32 %v1820, 16
      %v2198 = vrot.slane %v2196, 4
      %v2199 = vor.u32 %v2198, %v2194
      %v2200 = vrot.slane %v2199, 4
      %v2202 = vshll.u32 %v1821, 16
      %v2204 = vrot.slane %v2202, 5
      %v2205 = vsel %vm277, %v2200, %v2204
      %v2206 = vld [vmem:[%s212 + $0x4] sm:$0xc]
      %v2207 = vunpack.c.l.b16 %v1835
      %v2208 = vunpack.c.l.b16 %v1845
      %v2209 = vunpack.c.l.b16 %v1859
      %v2210 = vunpack.c.l.b16 %v1869
      %v2211 = vunpack.c.l.b16 %v1883
      %v2212 = vunpack.c.l.b16 %v1893
      %v2213 = vunpack.c.l.b16 %v1907
      %v2214 = vunpack.c.l.b16 %v1917
      %v2215 = vunpack.c.l.b16 %v1931
      %v2216 = vunpack.c.l.b16 %v1941
      %v2217 = vunpack.c.l.b16 %v1955
      %v2218 = vunpack.c.l.b16 %v1965
      %v2219 = vunpack.c.l.b16 %v1979
      %v2220 = vunpack.c.l.b16 %v1989
      %v2221 = vunpack.c.l.b16 %v2003
      %v2222 = vunpack.c.l.b16 %v2013
      %v2223 = vunpack.c.l.b16 %v2027
      %v2224 = vunpack.c.l.b16 %v2037
      %v2225 = vunpack.c.l.b16 %v2051
      %v2226 = vunpack.c.l.b16 %v2061
      %v2227 = vunpack.c.l.b16 %v2075
      %v2228 = vunpack.c.l.b16 %v2085
      %v2229 = vunpack.c.l.b16 %v2099
      %v2230 = vunpack.c.l.b16 %v2109
      %v2231 = vunpack.c.l.b16 %v2123
      %v2232 = vunpack.c.l.b16 %v2133
      %v2233 = vunpack.c.l.b16 %v2147
      %v2234 = vunpack.c.l.b16 %v2157
      %v2235 = vunpack.c.l.b16 %v2171
      %v2236 = vunpack.c.l.b16 %v2181
      %v2237 = vunpack.c.l.b16 %v2195
      %v2238 = vunpack.c.l.b16 %v2205
      %v2239 = vpack.c.b16 %v2208, %v2207
      %v2240 = vpack.c.b16 %v2210, %v2209
      %v2241 = vpack.c.b16 %v2212, %v2211
      %v2242 = vpack.c.b16 %v2214, %v2213
      %v2243 = vpack.c.b16 %v2216, %v2215
      %v2244 = vpack.c.b16 %v2218, %v2217
      %v2245 = vpack.c.b16 %v2220, %v2219
      %v2246 = vpack.c.b16 %v2222, %v2221
      %v2247 = vpack.c.b16 %v2224, %v2223
      %v2248 = vpack.c.b16 %v2226, %v2225
      %v2249 = vpack.c.b16 %v2228, %v2227
      %v2250 = vpack.c.b16 %v2230, %v2229
      %v2251 = vpack.c.b16 %v2232, %v2231
      %v2252 = vpack.c.b16 %v2234, %v2233
      %v2253 = vpack.c.b16 %v2236, %v2235
      %v2254 = vpack.c.b16 %v2238, %v2237
      %v2256 = vunpack.c.l.b16 %v2206
      %v2257 = vpack.c.b16 %v2256, %v2256
      %v2258 = vrot.slane %v2257, 2
      %v2260 = vsel %vm722, %v2239, 0
      %v2263 = vsel %vm722, %v2240, 0
      %v2266 = vsel %vm722, %v2241, 0
      %v2269 = vsel %vm722, %v2242, 0
      %v2272 = vsel %vm722, %v2243, 0
      %v2275 = vsel %vm722, %v2244, 0
      %v2278 = vsel %vm722, %v2245, 0
      %v2281 = vsel %vm722, %v2246, 0
      %v2284 = vsel %vm722, %v2247, 0
      %v2287 = vsel %vm722, %v2248, 0
      %v2290 = vsel %vm722, %v2249, 0
      %v2293 = vsel %vm722, %v2250, 0
      %v2296 = vsel %vm722, %v2251, 0
      %v2299 = vsel %vm722, %v2252, 0
      %v2302 = vsel %vm722, %v2253, 0
      %v2305 = vsel %vm722, %v2254, 0
      %v2308 = vand.u32 %v2258, %v774
      %2310 = vmatpush.bf16.msra.mxu0 0
      %2311 = vmatpush.bf16.msra.mxu0 0
      %2312 = vmatpush.bf16.msra.mxu0 0
      %2313 = vmatpush.bf16.msra.mxu0 0
      %2314 = vmatpush.bf16.msra.mxu0 0
      %2315 = vmatpush.bf16.msra.mxu0 0
      %2316 = vmatpush.bf16.msra.mxu0 0
      %2317 = vmatpush.bf16.msra.mxu0 %v2308
      %2318 = vmatmul.bf16.gmra.mxu0 %v2260
      %v2319 = vpop.f32.mrf.mxu0
      %v2320 = vadd.f32 0.0, %v2319
      %v2321 = vpop.f32.mrf.mxu0
      %v2322 = vadd.f32 0.0, %v2321
      %2323 = vmatmul.bf16.gmra.mxu0 %v2263
      %v2324 = vpop.f32.mrf.mxu0
      %v2325 = vadd.f32 0.0, %v2324
      %v2326 = vpop.f32.mrf.mxu0
      %v2327 = vadd.f32 0.0, %v2326
      %2328 = vmatmul.bf16.gmra.mxu0 %v2266
      %v2329 = vpop.f32.mrf.mxu0
      %v2330 = vadd.f32 0.0, %v2329
      %v2331 = vpop.f32.mrf.mxu0
      %v2332 = vadd.f32 0.0, %v2331
      %2333 = vmatmul.bf16.gmra.mxu0 %v2269
      %v2334 = vpop.f32.mrf.mxu0
      %v2335 = vadd.f32 0.0, %v2334
      %v2336 = vpop.f32.mrf.mxu0
      %v2337 = vadd.f32 0.0, %v2336
      %2338 = vmatmul.bf16.gmra.mxu0 %v2272
      %v2339 = vpop.f32.mrf.mxu0
      %v2340 = vadd.f32 0.0, %v2339
      %v2341 = vpop.f32.mrf.mxu0
      %v2342 = vadd.f32 0.0, %v2341
      %2343 = vmatmul.bf16.gmra.mxu0 %v2275
      %v2344 = vpop.f32.mrf.mxu0
      %v2345 = vadd.f32 0.0, %v2344
      %v2346 = vpop.f32.mrf.mxu0
      %v2347 = vadd.f32 0.0, %v2346
      %2348 = vmatmul.bf16.gmra.mxu0 %v2278
      %v2349 = vpop.f32.mrf.mxu0
      %v2350 = vadd.f32 0.0, %v2349
      %v2351 = vpop.f32.mrf.mxu0
      %v2352 = vadd.f32 0.0, %v2351
      %2353 = vmatmul.bf16.gmra.mxu0 %v2281
      %v2354 = vpop.f32.mrf.mxu0
      %v2355 = vadd.f32 0.0, %v2354
      %v2356 = vpop.f32.mrf.mxu0
      %v2357 = vadd.f32 0.0, %v2356
      %2358 = vmatmul.bf16.gmra.mxu0 %v2284
      %v2359 = vpop.f32.mrf.mxu0
      %v2360 = vadd.f32 0.0, %v2359
      %v2361 = vpop.f32.mrf.mxu0
      %v2362 = vadd.f32 0.0, %v2361
      %2363 = vmatmul.bf16.gmra.mxu0 %v2287
      %v2364 = vpop.f32.mrf.mxu0
      %v2365 = vadd.f32 0.0, %v2364
      %v2366 = vpop.f32.mrf.mxu0
      %v2367 = vadd.f32 0.0, %v2366
      %2368 = vmatmul.bf16.gmra.mxu0 %v2290
      %v2369 = vpop.f32.mrf.mxu0
      %v2370 = vadd.f32 0.0, %v2369
      %v2371 = vpop.f32.mrf.mxu0
      %v2372 = vadd.f32 0.0, %v2371
      %2373 = vmatmul.bf16.gmra.mxu0 %v2293
      %v2374 = vpop.f32.mrf.mxu0
      %v2375 = vadd.f32 0.0, %v2374
      %v2376 = vpop.f32.mrf.mxu0
      %v2377 = vadd.f32 0.0, %v2376
      %2378 = vmatmul.bf16.gmra.mxu0 %v2296
      %v2379 = vpop.f32.mrf.mxu0
      %v2380 = vadd.f32 0.0, %v2379
      %v2381 = vpop.f32.mrf.mxu0
      %v2382 = vadd.f32 0.0, %v2381
      %2383 = vmatmul.bf16.gmra.mxu0 %v2299
      %v2384 = vpop.f32.mrf.mxu0
      %v2385 = vadd.f32 0.0, %v2384
      %v2386 = vpop.f32.mrf.mxu0
      %v2387 = vadd.f32 0.0, %v2386
      %2388 = vmatmul.bf16.gmra.mxu0 %v2302
      %v2389 = vpop.f32.mrf.mxu0
      %v2390 = vadd.f32 0.0, %v2389
      %v2391 = vpop.f32.mrf.mxu0
      %v2392 = vadd.f32 0.0, %v2391
      %2393 = vmatmul.bf16.gmra.mxu0 %v2305
      %v2394 = vpop.f32.mrf.mxu0
      %v2395 = vadd.f32 0.0, %v2394
      %v2396 = vpop.f32.mrf.mxu0
      %v2397 = vadd.f32 0.0, %v2396
      %2398 = vdwg.mxu0
      %v2399 = vadd.f32 %v1742, %v2320
      %v2400 = vadd.f32 %v1743, %v2322
      %v2401 = vadd.f32 %v1744, %v2325
      %v2402 = vadd.f32 %v1745, %v2327
      %v2403 = vadd.f32 %v1746, %v2330
      %v2404 = vadd.f32 %v1747, %v2332
      %v2405 = vadd.f32 %v1748, %v2335
      %v2406 = vadd.f32 %v1749, %v2337
      %v2407 = vadd.f32 %v1750, %v2340
      %v2408 = vadd.f32 %v1751, %v2342
      %v2409 = vadd.f32 %v1752, %v2345
      %v2410 = vadd.f32 %v1753, %v2347
      %v2411 = vadd.f32 %v1754, %v2350
      %v2412 = vadd.f32 %v1755, %v2352
      %v2413 = vadd.f32 %v1756, %v2355
      %v2414 = vadd.f32 %v1757, %v2357
      %v2415 = vadd.f32 %v1758, %v2360
      %v2416 = vadd.f32 %v1759, %v2362
      %v2417 = vadd.f32 %v1760, %v2365
      %v2418 = vadd.f32 %v1761, %v2367
      %v2419 = vadd.f32 %v1762, %v2370
      %v2420 = vadd.f32 %v1763, %v2372
      %v2421 = vadd.f32 %v1764, %v2375
      %v2422 = vadd.f32 %v1765, %v2377
      %v2423 = vadd.f32 %v1766, %v2380
      %v2424 = vadd.f32 %v1767, %v2382
      %v2425 = vadd.f32 %v1768, %v2385
      %v2426 = vadd.f32 %v1769, %v2387
      %v2427 = vadd.f32 %v1770, %v2390
      %v2428 = vadd.f32 %v1771, %v2392
      %v2429 = vadd.f32 %v1772, %v2395
      %v2430 = vadd.f32 %v1773, %v2397
      %v2431 = vld [vmem:[%s1478] sm:$0xe]
      %v2432 = vld [vmem:[%s1478 + $0xc] sm:$0xe]
      %v2433 = vld [vmem:[%s1478 + $0x18] sm:$0xe]
      %v2434 = vld [vmem:[%s1478 + $0x24] sm:$0xe]
      %v2435 = vld [vmem:[%s1478 + $0x30] sm:$0xe]
      %v2436 = vld [vmem:[%s1478 + $0x3c] sm:$0xe]
      %v2437 = vld [vmem:[%s1478 + $0x48] sm:$0xe]
      %v2438 = vld [vmem:[%s1478 + $0x54] sm:$0xe]
      %v2439 = vld [vmem:[%s1478 + $0x60] sm:$0xe]
      %v2440 = vld [vmem:[%s1478 + $0x6c] sm:$0xe]
      %v2441 = vld [vmem:[%s1478 + $0x78] sm:$0xe]
      %v2442 = vld [vmem:[%s1478 + $0x84] sm:$0xe]
      %v2443 = vld [vmem:[%s1478 + $0x90] sm:$0xe]
      %v2444 = vld [vmem:[%s1478 + $0x9c] sm:$0xe]
      %v2445 = vld [vmem:[%s1478 + $0xa8] sm:$0xe]
      %v2446 = vld [vmem:[%s1478 + $0xb4] sm:$0xe]
      %v2495 = vrot.slane %v2431, 5
      %v2496 = vrot.slane %v2495, 4
      %v2497 = vrot.slane %v1775, 5
      %v2498 = vsel %vm1137, %v2496, %v2497
      %v2499 = vrot.slane %v2497, 4
      %v2500 = vrot.slane %v1776, 5
      %v2501 = vsel %vm1137, %v2499, %v2500
      %v2502 = vrot.slane %v2432, 5
      %v2503 = vrot.slane %v2502, 4
      %v2504 = vrot.slane %v1778, 5
      %v2505 = vsel %vm1137, %v2503, %v2504
      %v2506 = vrot.slane %v2504, 4
      %v2507 = vrot.slane %v1779, 5
      %v2508 = vsel %vm1137, %v2506, %v2507
      %v2509 = vrot.slane %v2433, 5
      %v2510 = vrot.slane %v2509, 4
      %v2511 = vrot.slane %v1781, 5
      %v2512 = vsel %vm1137, %v2510, %v2511
      %v2513 = vrot.slane %v2511, 4
      %v2514 = vrot.slane %v1782, 5
      %v2515 = vsel %vm1137, %v2513, %v2514
      %v2516 = vrot.slane %v2434, 5
      %v2517 = vrot.slane %v2516, 4
      %v2518 = vrot.slane %v1784, 5
      %v2519 = vsel %vm1137, %v2517, %v2518
      %v2520 = vrot.slane %v2518, 4
      %v2521 = vrot.slane %v1785, 5
      %v2522 = vsel %vm1137, %v2520, %v2521
      %v2523 = vrot.slane %v2435, 5
      %v2524 = vrot.slane %v2523, 4
      %v2525 = vrot.slane %v1787, 5
      %v2526 = vsel %vm1137, %v2524, %v2525
      %v2527 = vrot.slane %v2525, 4
      %v2528 = vrot.slane %v1788, 5
      %v2529 = vsel %vm1137, %v2527, %v2528
      %v2530 = vrot.slane %v2436, 5
      %v2531 = vrot.slane %v2530, 4
      %v2532 = vrot.slane %v1790, 5
      %v2533 = vsel %vm1137, %v2531, %v2532
      %v2534 = vrot.slane %v2532, 4
      %v2535 = vrot.slane %v1791, 5
      %v2536 = vsel %vm1137, %v2534, %v2535
      %v2537 = vrot.slane %v2437, 5
      %v2538 = vrot.slane %v2537, 4
      %v2539 = vrot.slane %v1793, 5
      %v2540 = vsel %vm1137, %v2538, %v2539
      %v2541 = vrot.slane %v2539, 4
      %v2542 = vrot.slane %v1794, 5
      %v2543 = vsel %vm1137, %v2541, %v2542
      %v2544 = vrot.slane %v2438, 5
      %v2545 = vrot.slane %v2544, 4
      %v2546 = vrot.slane %v1796, 5
      %v2547 = vsel %vm1137, %v2545, %v2546
      %v2548 = vrot.slane %v2546, 4
      %v2549 = vrot.slane %v1797, 5
      %v2550 = vsel %vm1137, %v2548, %v2549
      %v2551 = vrot.slane %v2439, 5
      %v2552 = vrot.slane %v2551, 4
      %v2553 = vrot.slane %v1799, 5
      %v2554 = vsel %vm1137, %v2552, %v2553
      %v2555 = vrot.slane %v2553, 4
      %v2556 = vrot.slane %v1800, 5
      %v2557 = vsel %vm1137, %v2555, %v2556
      %v2558 = vrot.slane %v2440, 5
      %v2559 = vrot.slane %v2558, 4
      %v2560 = vrot.slane %v1802, 5
      %v2561 = vsel %vm1137, %v2559, %v2560
      %v2562 = vrot.slane %v2560, 4
      %v2563 = vrot.slane %v1803, 5
      %v2564 = vsel %vm1137, %v2562, %v2563
      %v2565 = vrot.slane %v2441, 5
      %v2566 = vrot.slane %v2565, 4
      %v2567 = vrot.slane %v1805, 5
      %v2568 = vsel %vm1137, %v2566, %v2567
      %v2569 = vrot.slane %v2567, 4
      %v2570 = vrot.slane %v1806, 5
      %v2571 = vsel %vm1137, %v2569, %v2570
      %v2572 = vrot.slane %v2442, 5
      %v2573 = vrot.slane %v2572, 4
      %v2574 = vrot.slane %v1808, 5
      %v2575 = vsel %vm1137, %v2573, %v2574
      %v2576 = vrot.slane %v2574, 4
      %v2577 = vrot.slane %v1809, 5
      %v2578 = vsel %vm1137, %v2576, %v2577
      %v2579 = vrot.slane %v2443, 5
      %v2580 = vrot.slane %v2579, 4
      %v2581 = vrot.slane %v1811, 5
      %v2582 = vsel %vm1137, %v2580, %v2581
      %v2583 = vrot.slane %v2581, 4
      %v2584 = vrot.slane %v1812, 5
      %v2585 = vsel %vm1137, %v2583, %v2584
      %v2586 = vrot.slane %v2444, 5
      %v2587 = vrot.slane %v2586, 4
      %v2588 = vrot.slane %v1814, 5
      %v2589 = vsel %vm1137, %v2587, %v2588
      %v2590 = vrot.slane %v2588, 4
      %v2591 = vrot.slane %v1815, 5
      %v2592 = vsel %vm1137, %v2590, %v2591
      %v2593 = vrot.slane %v2445, 5
      %v2594 = vrot.slane %v2593, 4
      %v2595 = vrot.slane %v1817, 5
      %v2596 = vsel %vm1137, %v2594, %v2595
      %v2597 = vrot.slane %v2595, 4
      %v2598 = vrot.slane %v1818, 5
      %v2599 = vsel %vm1137, %v2597, %v2598
      %v2600 = vrot.slane %v2446, 5
      %v2601 = vrot.slane %v2600, 4
      %v2602 = vrot.slane %v1820, 5
      %v2603 = vsel %vm1137, %v2601, %v2602
      %v2604 = vrot.slane %v2602, 4
      %v2605 = vrot.slane %v1821, 5
      %v2606 = vsel %vm1137, %v2604, %v2605
      %v2607 = vld [vmem:[%s212 + $0x4] sm:$0x8]
      %v2608 = vld [vmem:[%s212 + $0x8] sm:$0x1]
      %v2609 = vunpack.c.l.b16 %v2498
      %v2610 = vunpack.c.l.b16 %v2501
      %v2611 = vunpack.c.l.b16 %v2505
      %v2612 = vunpack.c.l.b16 %v2508
      %v2613 = vunpack.c.l.b16 %v2512
      %v2614 = vunpack.c.l.b16 %v2515
      %v2615 = vunpack.c.l.b16 %v2519
      %v2616 = vunpack.c.l.b16 %v2522
      %v2617 = vunpack.c.l.b16 %v2526
      %v2618 = vunpack.c.l.b16 %v2529
      %v2619 = vunpack.c.l.b16 %v2533
      %v2620 = vunpack.c.l.b16 %v2536
      %v2621 = vunpack.c.l.b16 %v2540
      %v2622 = vunpack.c.l.b16 %v2543
      %v2623 = vunpack.c.l.b16 %v2547
      %v2624 = vunpack.c.l.b16 %v2550
      %v2625 = vunpack.c.l.b16 %v2554
      %v2626 = vunpack.c.l.b16 %v2557
      %v2627 = vunpack.c.l.b16 %v2561
      %v2628 = vunpack.c.l.b16 %v2564
      %v2629 = vunpack.c.l.b16 %v2568
      %v2630 = vunpack.c.l.b16 %v2571
      %v2631 = vunpack.c.l.b16 %v2575
      %v2632 = vunpack.c.l.b16 %v2578
      %v2633 = vunpack.c.l.b16 %v2582
      %v2634 = vunpack.c.l.b16 %v2585
      %v2635 = vunpack.c.l.b16 %v2589
      %v2636 = vunpack.c.l.b16 %v2592
      %v2637 = vunpack.c.l.b16 %v2596
      %v2638 = vunpack.c.l.b16 %v2599
      %v2639 = vunpack.c.l.b16 %v2603
      %v2640 = vunpack.c.l.b16 %v2606
      %v2641 = vpack.c.b16 %v2610, %v2609
      %v2642 = vpack.c.b16 %v2612, %v2611
      %v2643 = vpack.c.b16 %v2614, %v2613
      %v2644 = vpack.c.b16 %v2616, %v2615
      %v2645 = vpack.c.b16 %v2618, %v2617
      %v2646 = vpack.c.b16 %v2620, %v2619
      %v2647 = vpack.c.b16 %v2622, %v2621
      %v2648 = vpack.c.b16 %v2624, %v2623
      %v2649 = vpack.c.b16 %v2626, %v2625
      %v2650 = vpack.c.b16 %v2628, %v2627
      %v2651 = vpack.c.b16 %v2630, %v2629
      %v2652 = vpack.c.b16 %v2632, %v2631
      %v2653 = vpack.c.b16 %v2634, %v2633
      %v2654 = vpack.c.b16 %v2636, %v2635
      %v2655 = vpack.c.b16 %v2638, %v2637
      %v2656 = vpack.c.b16 %v2640, %v2639
      %v2659 = vunpack.c.l.b16 %v2607
      %v2660 = vunpack.c.l.b16 %v2608
      %v2661 = vpack.c.b16 %v2660, %v2659
      %v2663 = vshrl.u32 %v2661, 16
      %v2665 = vrot.slane %v2663, 3
      %v2666 = vshll.u32 %v2661, 16
      %v2668 = vrot.slane %v2666, 4
      %v2669 = vor.u32 %v2665, %v2668
      %v2671 = vsel %vm722, %v2641, 0
      %v2674 = vsel %vm722, %v2642, 0
      %v2677 = vsel %vm722, %v2643, 0
      %v2680 = vsel %vm722, %v2644, 0
      %v2683 = vsel %vm722, %v2645, 0
      %v2686 = vsel %vm722, %v2646, 0
      %v2689 = vsel %vm722, %v2647, 0
      %v2692 = vsel %vm722, %v2648, 0
      %v2695 = vsel %vm722, %v2649, 0
      %v2698 = vsel %vm722, %v2650, 0
      %v2701 = vsel %vm722, %v2651, 0
      %v2704 = vsel %vm722, %v2652, 0
      %v2707 = vsel %vm722, %v2653, 0
      %v2710 = vsel %vm722, %v2654, 0
      %v2713 = vsel %vm722, %v2655, 0
      %v2716 = vsel %vm722, %v2656, 0
      %v2719 = vand.u32 %v2669, %v774
      %2721 = vmatpush.bf16.msra.mxu0 0
      %2722 = vmatpush.bf16.msra.mxu0 0
      %2723 = vmatpush.bf16.msra.mxu0 0
      %2724 = vmatpush.bf16.msra.mxu0 0
      %2725 = vmatpush.bf16.msra.mxu0 0
      %2726 = vmatpush.bf16.msra.mxu0 0
      %2727 = vmatpush.bf16.msra.mxu0 0
      %2728 = vmatpush.bf16.msra.mxu0 %v2719
      %2729 = vmatmul.bf16.gmra.mxu0 %v2671
      %v2730 = vpop.f32.mrf.mxu0
      %v2731 = vadd.f32 0.0, %v2730
      %v2732 = vpop.f32.mrf.mxu0
      %v2733 = vadd.f32 0.0, %v2732
      %2734 = vmatmul.bf16.gmra.mxu0 %v2674
      %v2735 = vpop.f32.mrf.mxu0
      %v2736 = vadd.f32 0.0, %v2735
      %v2737 = vpop.f32.mrf.mxu0
      %v2738 = vadd.f32 0.0, %v2737
      %2739 = vmatmul.bf16.gmra.mxu0 %v2677
      %v2740 = vpop.f32.mrf.mxu0
      %v2741 = vadd.f32 0.0, %v2740
      %v2742 = vpop.f32.mrf.mxu0
      %v2743 = vadd.f32 0.0, %v2742
      %2744 = vmatmul.bf16.gmra.mxu0 %v2680
      %v2745 = vpop.f32.mrf.mxu0
      %v2746 = vadd.f32 0.0, %v2745
      %v2747 = vpop.f32.mrf.mxu0
      %v2748 = vadd.f32 0.0, %v2747
      %2749 = vmatmul.bf16.gmra.mxu0 %v2683
      %v2750 = vpop.f32.mrf.mxu0
      %v2751 = vadd.f32 0.0, %v2750
      %v2752 = vpop.f32.mrf.mxu0
      %v2753 = vadd.f32 0.0, %v2752
      %2754 = vmatmul.bf16.gmra.mxu0 %v2686
      %v2755 = vpop.f32.mrf.mxu0
      %v2756 = vadd.f32 0.0, %v2755
      %v2757 = vpop.f32.mrf.mxu0
      %v2758 = vadd.f32 0.0, %v2757
      %2759 = vmatmul.bf16.gmra.mxu0 %v2689
      %v2760 = vpop.f32.mrf.mxu0
      %v2761 = vadd.f32 0.0, %v2760
      %v2762 = vpop.f32.mrf.mxu0
      %v2763 = vadd.f32 0.0, %v2762
      %2764 = vmatmul.bf16.gmra.mxu0 %v2692
      %v2765 = vpop.f32.mrf.mxu0
      %v2766 = vadd.f32 0.0, %v2765
      %v2767 = vpop.f32.mrf.mxu0
      %v2768 = vadd.f32 0.0, %v2767
      %2769 = vmatmul.bf16.gmra.mxu0 %v2695
      %v2770 = vpop.f32.mrf.mxu0
      %v2771 = vadd.f32 0.0, %v2770
      %v2772 = vpop.f32.mrf.mxu0
      %v2773 = vadd.f32 0.0, %v2772
      %2774 = vmatmul.bf16.gmra.mxu0 %v2698
      %v2775 = vpop.f32.mrf.mxu0
      %v2776 = vadd.f32 0.0, %v2775
      %v2777 = vpop.f32.mrf.mxu0
      %v2778 = vadd.f32 0.0, %v2777
      %2779 = vmatmul.bf16.gmra.mxu0 %v2701
      %v2780 = vpop.f32.mrf.mxu0
      %v2781 = vadd.f32 0.0, %v2780
      %v2782 = vpop.f32.mrf.mxu0
      %v2783 = vadd.f32 0.0, %v2782
      %2784 = vmatmul.bf16.gmra.mxu0 %v2704
      %v2785 = vpop.f32.mrf.mxu0
      %v2786 = vadd.f32 0.0, %v2785
      %v2787 = vpop.f32.mrf.mxu0
      %v2788 = vadd.f32 0.0, %v2787
      %2789 = vmatmul.bf16.gmra.mxu0 %v2707
      %v2790 = vpop.f32.mrf.mxu0
      %v2791 = vadd.f32 0.0, %v2790
      %v2792 = vpop.f32.mrf.mxu0
      %v2793 = vadd.f32 0.0, %v2792
      %2794 = vmatmul.bf16.gmra.mxu0 %v2710
      %v2795 = vpop.f32.mrf.mxu0
      %v2796 = vadd.f32 0.0, %v2795
      %v2797 = vpop.f32.mrf.mxu0
      %v2798 = vadd.f32 0.0, %v2797
      %2799 = vmatmul.bf16.gmra.mxu0 %v2713
      %v2800 = vpop.f32.mrf.mxu0
      %v2801 = vadd.f32 0.0, %v2800
      %v2802 = vpop.f32.mrf.mxu0
      %v2803 = vadd.f32 0.0, %v2802
      %2804 = vmatmul.bf16.gmra.mxu0 %v2716
      %v2805 = vpop.f32.mrf.mxu0
      %v2806 = vadd.f32 0.0, %v2805
      %v2807 = vpop.f32.mrf.mxu0
      %v2808 = vadd.f32 0.0, %v2807
      %2809 = vdwg.mxu0
      %v2810 = vadd.f32 %v2399, %v2731
      %v2811 = vadd.f32 %v2400, %v2733
      %v2812 = vadd.f32 %v2401, %v2736
      %v2813 = vadd.f32 %v2402, %v2738
      %v2814 = vadd.f32 %v2403, %v2741
      %v2815 = vadd.f32 %v2404, %v2743
      %v2816 = vadd.f32 %v2405, %v2746
      %v2817 = vadd.f32 %v2406, %v2748
      %v2818 = vadd.f32 %v2407, %v2751
      %v2819 = vadd.f32 %v2408, %v2753
      %v2820 = vadd.f32 %v2409, %v2756
      %v2821 = vadd.f32 %v2410, %v2758
      %v2822 = vadd.f32 %v2411, %v2761
      %v2823 = vadd.f32 %v2412, %v2763
      %v2824 = vadd.f32 %v2413, %v2766
      %v2825 = vadd.f32 %v2414, %v2768
      %v2826 = vadd.f32 %v2415, %v2771
      %v2827 = vadd.f32 %v2416, %v2773
      %v2828 = vadd.f32 %v2417, %v2776
      %v2829 = vadd.f32 %v2418, %v2778
      %v2830 = vadd.f32 %v2419, %v2781
      %v2831 = vadd.f32 %v2420, %v2783
      %v2832 = vadd.f32 %v2421, %v2786
      %v2833 = vadd.f32 %v2422, %v2788
      %v2834 = vadd.f32 %v2423, %v2791
      %v2835 = vadd.f32 %v2424, %v2793
      %v2836 = vadd.f32 %v2425, %v2796
      %v2837 = vadd.f32 %v2426, %v2798
      %v2838 = vadd.f32 %v2427, %v2801
      %v2839 = vadd.f32 %v2428, %v2803
      %v2840 = vadd.f32 %v2429, %v2806
      %v2841 = vadd.f32 %v2430, %v2808
      %s2842 = scalar_lea.vmem %s208, 24
      %v2843 = vld [vmem:[%s2842] sm:$0xf]
      %v2844 = vld [vmem:[%s2842 + $0x4] sm:$0xf]
      %v2845 = vld [vmem:[%s2842 + $0xc] sm:$0xf]
      %v2846 = vld [vmem:[%s2842 + $0x10] sm:$0xf]
      %v2847 = vld [vmem:[%s2842 + $0x18] sm:$0xf]
      %v2848 = vld [vmem:[%s2842 + $0x1c] sm:$0xf]
      %v2849 = vld [vmem:[%s2842 + $0x24] sm:$0xf]
      %v2850 = vld [vmem:[%s2842 + $0x28] sm:$0xf]
      %v2851 = vld [vmem:[%s2842 + $0x30] sm:$0xf]
      %v2852 = vld [vmem:[%s2842 + $0x34] sm:$0xf]
      %v2853 = vld [vmem:[%s2842 + $0x3c] sm:$0xf]
      %v2854 = vld [vmem:[%s2842 + $0x40] sm:$0xf]
      %v2855 = vld [vmem:[%s2842 + $0x48] sm:$0xf]
      %v2856 = vld [vmem:[%s2842 + $0x4c] sm:$0xf]
      %v2857 = vld [vmem:[%s2842 + $0x54] sm:$0xf]
      %v2858 = vld [vmem:[%s2842 + $0x58] sm:$0xf]
      %v2859 = vld [vmem:[%s2842 + $0x60] sm:$0xf]
      %v2860 = vld [vmem:[%s2842 + $0x64] sm:$0xf]
      %v2861 = vld [vmem:[%s2842 + $0x6c] sm:$0xf]
      %v2862 = vld [vmem:[%s2842 + $0x70] sm:$0xf]
      %v2863 = vld [vmem:[%s2842 + $0x78] sm:$0xf]
      %v2864 = vld [vmem:[%s2842 + $0x7c] sm:$0xf]
      %v2865 = vld [vmem:[%s2842 + $0x84] sm:$0xf]
      %v2866 = vld [vmem:[%s2842 + $0x88] sm:$0xf]
      %v2867 = vld [vmem:[%s2842 + $0x90] sm:$0xf]
      %v2868 = vld [vmem:[%s2842 + $0x94] sm:$0xf]
      %v2869 = vld [vmem:[%s2842 + $0x9c] sm:$0xf]
      %v2870 = vld [vmem:[%s2842 + $0xa0] sm:$0xf]
      %v2871 = vld [vmem:[%s2842 + $0xa8] sm:$0xf]
      %v2872 = vld [vmem:[%s2842 + $0xac] sm:$0xf]
      %v2873 = vld [vmem:[%s2842 + $0xb4] sm:$0xf]
      %v2874 = vld [vmem:[%s2842 + $0xb8] sm:$0xf]
      %v2875 = vld [vmem:[%s212 + $0x8] sm:$0x6]
      %v2908 = vunpack.c.l.b16 %v2843
      %v2909 = vunpack.c.l.b16 %v2844
      %v2910 = vunpack.c.l.b16 %v2845
      %v2911 = vunpack.c.l.b16 %v2846
      %v2912 = vunpack.c.l.b16 %v2847
      %v2913 = vunpack.c.l.b16 %v2848
      %v2914 = vunpack.c.l.b16 %v2849
      %v2915 = vunpack.c.l.b16 %v2850
      %v2916 = vunpack.c.l.b16 %v2851
      %v2917 = vunpack.c.l.b16 %v2852
      %v2918 = vunpack.c.l.b16 %v2853
      %v2919 = vunpack.c.l.b16 %v2854
      %v2920 = vunpack.c.l.b16 %v2855
      %v2921 = vunpack.c.l.b16 %v2856
      %v2922 = vunpack.c.l.b16 %v2857
      %v2923 = vunpack.c.l.b16 %v2858
      %v2924 = vunpack.c.l.b16 %v2859
      %v2925 = vunpack.c.l.b16 %v2860
      %v2926 = vunpack.c.l.b16 %v2861
      %v2927 = vunpack.c.l.b16 %v2862
      %v2928 = vunpack.c.l.b16 %v2863
      %v2929 = vunpack.c.l.b16 %v2864
      %v2930 = vunpack.c.l.b16 %v2865
      %v2931 = vunpack.c.l.b16 %v2866
      %v2932 = vunpack.c.l.b16 %v2867
      %v2933 = vunpack.c.l.b16 %v2868
      %v2934 = vunpack.c.l.b16 %v2869
      %v2935 = vunpack.c.l.b16 %v2870
      %v2936 = vunpack.c.l.b16 %v2871
      %v2937 = vunpack.c.l.b16 %v2872
      %v2938 = vunpack.c.l.b16 %v2873
      %v2939 = vunpack.c.l.b16 %v2874
      %v2940 = vpack.c.b16 %v2909, %v2908
      %v2941 = vpack.c.b16 %v2911, %v2910
      %v2942 = vpack.c.b16 %v2913, %v2912
      %v2943 = vpack.c.b16 %v2915, %v2914
      %v2944 = vpack.c.b16 %v2917, %v2916
      %v2945 = vpack.c.b16 %v2919, %v2918
      %v2946 = vpack.c.b16 %v2921, %v2920
      %v2947 = vpack.c.b16 %v2923, %v2922
      %v2948 = vpack.c.b16 %v2925, %v2924
      %v2949 = vpack.c.b16 %v2927, %v2926
      %v2950 = vpack.c.b16 %v2929, %v2928
      %v2951 = vpack.c.b16 %v2931, %v2930
      %v2952 = vpack.c.b16 %v2933, %v2932
      %v2953 = vpack.c.b16 %v2935, %v2934
      %v2954 = vpack.c.b16 %v2937, %v2936
      %v2955 = vpack.c.b16 %v2939, %v2938
      %v2957 = vunpack.c.l.b16 %v2875
      %v2958 = vpack.c.b16 %v2957, %v2957
      %v2959 = vrot.slane %v2958, 1
      %v2961 = vsel %vm722, %v2940, 0
      %v2964 = vsel %vm722, %v2941, 0
      %v2967 = vsel %vm722, %v2942, 0
      %v2970 = vsel %vm722, %v2943, 0
      %v2973 = vsel %vm722, %v2944, 0
      %v2976 = vsel %vm722, %v2945, 0
      %v2979 = vsel %vm722, %v2946, 0
      %v2982 = vsel %vm722, %v2947, 0
      %v2985 = vsel %vm722, %v2948, 0
      %v2988 = vsel %vm722, %v2949, 0
      %v2991 = vsel %vm722, %v2950, 0
      %v2994 = vsel %vm722, %v2951, 0
      %v2997 = vsel %vm722, %v2952, 0
      %v3000 = vsel %vm722, %v2953, 0
      %v3003 = vsel %vm722, %v2954, 0
      %v3006 = vsel %vm722, %v2955, 0
      %v3009 = vand.u32 %v2959, %v774
      %3011 = vmatpush.bf16.msra.mxu0 0
      %3012 = vmatpush.bf16.msra.mxu0 0
      %3013 = vmatpush.bf16.msra.mxu0 0
      %3014 = vmatpush.bf16.msra.mxu0 0
      %3015 = vmatpush.bf16.msra.mxu0 0
      %3016 = vmatpush.bf16.msra.mxu0 0
      %3017 = vmatpush.bf16.msra.mxu0 0
      %3018 = vmatpush.bf16.msra.mxu0 %v3009
      %3019 = vmatmul.bf16.gmra.mxu0 %v2961
      %v3020 = vpop.f32.mrf.mxu0
      %v3021 = vadd.f32 0.0, %v3020
      %v3022 = vpop.f32.mrf.mxu0
      %v3023 = vadd.f32 0.0, %v3022
      %3024 = vmatmul.bf16.gmra.mxu0 %v2964
      %v3025 = vpop.f32.mrf.mxu0
      %v3026 = vadd.f32 0.0, %v3025
      %v3027 = vpop.f32.mrf.mxu0
      %v3028 = vadd.f32 0.0, %v3027
      %3029 = vmatmul.bf16.gmra.mxu0 %v2967
      %v3030 = vpop.f32.mrf.mxu0
      %v3031 = vadd.f32 0.0, %v3030
      %v3032 = vpop.f32.mrf.mxu0
      %v3033 = vadd.f32 0.0, %v3032
      %3034 = vmatmul.bf16.gmra.mxu0 %v2970
      %v3035 = vpop.f32.mrf.mxu0
      %v3036 = vadd.f32 0.0, %v3035
      %v3037 = vpop.f32.mrf.mxu0
      %v3038 = vadd.f32 0.0, %v3037
      %3039 = vmatmul.bf16.gmra.mxu0 %v2973
      %v3040 = vpop.f32.mrf.mxu0
      %v3041 = vadd.f32 0.0, %v3040
      %v3042 = vpop.f32.mrf.mxu0
      %v3043 = vadd.f32 0.0, %v3042
      %3044 = vmatmul.bf16.gmra.mxu0 %v2976
      %v3045 = vpop.f32.mrf.mxu0
      %v3046 = vadd.f32 0.0, %v3045
      %v3047 = vpop.f32.mrf.mxu0
      %v3048 = vadd.f32 0.0, %v3047
      %3049 = vmatmul.bf16.gmra.mxu0 %v2979
      %v3050 = vpop.f32.mrf.mxu0
      %v3051 = vadd.f32 0.0, %v3050
      %v3052 = vpop.f32.mrf.mxu0
      %v3053 = vadd.f32 0.0, %v3052
      %3054 = vmatmul.bf16.gmra.mxu0 %v2982
      %v3055 = vpop.f32.mrf.mxu0
      %v3056 = vadd.f32 0.0, %v3055
      %v3057 = vpop.f32.mrf.mxu0
      %v3058 = vadd.f32 0.0, %v3057
      %3059 = vmatmul.bf16.gmra.mxu0 %v2985
      %v3060 = vpop.f32.mrf.mxu0
      %v3061 = vadd.f32 0.0, %v3060
      %v3062 = vpop.f32.mrf.mxu0
      %v3063 = vadd.f32 0.0, %v3062
      %3064 = vmatmul.bf16.gmra.mxu0 %v2988
      %v3065 = vpop.f32.mrf.mxu0
      %v3066 = vadd.f32 0.0, %v3065
      %v3067 = vpop.f32.mrf.mxu0
      %v3068 = vadd.f32 0.0, %v3067
      %3069 = vmatmul.bf16.gmra.mxu0 %v2991
      %v3070 = vpop.f32.mrf.mxu0
      %v3071 = vadd.f32 0.0, %v3070
      %v3072 = vpop.f32.mrf.mxu0
      %v3073 = vadd.f32 0.0, %v3072
      %3074 = vmatmul.bf16.gmra.mxu0 %v2994
      %v3075 = vpop.f32.mrf.mxu0
      %v3076 = vadd.f32 0.0, %v3075
      %v3077 = vpop.f32.mrf.mxu0
      %v3078 = vadd.f32 0.0, %v3077
      %3079 = vmatmul.bf16.gmra.mxu0 %v2997
      %v3080 = vpop.f32.mrf.mxu0
      %v3081 = vadd.f32 0.0, %v3080
      %v3082 = vpop.f32.mrf.mxu0
      %v3083 = vadd.f32 0.0, %v3082
      %3084 = vmatmul.bf16.gmra.mxu0 %v3000
      %v3085 = vpop.f32.mrf.mxu0
      %v3086 = vadd.f32 0.0, %v3085
      %v3087 = vpop.f32.mrf.mxu0
      %v3088 = vadd.f32 0.0, %v3087
      %3089 = vmatmul.bf16.gmra.mxu0 %v3003
      %v3090 = vpop.f32.mrf.mxu0
      %v3091 = vadd.f32 0.0, %v3090
      %v3092 = vpop.f32.mrf.mxu0
      %v3093 = vadd.f32 0.0, %v3092
      %3094 = vmatmul.bf16.gmra.mxu0 %v3006
      %v3095 = vpop.f32.mrf.mxu0
      %v3096 = vadd.f32 0.0, %v3095
      %v3097 = vpop.f32.mrf.mxu0
      %v3098 = vadd.f32 0.0, %v3097
      %3099 = vdwg.mxu0
      %v3100 = vadd.f32 %v2810, %v3021
      %v3101 = vadd.f32 %v2811, %v3023
      %v3102 = vadd.f32 %v2812, %v3026
      %v3103 = vadd.f32 %v2813, %v3028
      %v3104 = vadd.f32 %v2814, %v3031
      %v3105 = vadd.f32 %v2815, %v3033
      %v3106 = vadd.f32 %v2816, %v3036
      %v3107 = vadd.f32 %v2817, %v3038
      %v3108 = vadd.f32 %v2818, %v3041
      %v3109 = vadd.f32 %v2819, %v3043
      %v3110 = vadd.f32 %v2820, %v3046
      %v3111 = vadd.f32 %v2821, %v3048
      %v3112 = vadd.f32 %v2822, %v3051
      %v3113 = vadd.f32 %v2823, %v3053
      %v3114 = vadd.f32 %v2824, %v3056
      %v3115 = vadd.f32 %v2825, %v3058
      %v3116 = vadd.f32 %v2826, %v3061
      %v3117 = vadd.f32 %v2827, %v3063
      %v3118 = vadd.f32 %v2828, %v3066
      %v3119 = vadd.f32 %v2829, %v3068
      %v3120 = vadd.f32 %v2830, %v3071
      %v3121 = vadd.f32 %v2831, %v3073
      %v3122 = vadd.f32 %v2832, %v3076
      %v3123 = vadd.f32 %v2833, %v3078
      %v3124 = vadd.f32 %v2834, %v3081
      %v3125 = vadd.f32 %v2835, %v3083
      %v3126 = vadd.f32 %v2836, %v3086
      %v3127 = vadd.f32 %v2837, %v3088
      %v3128 = vadd.f32 %v2838, %v3091
      %v3129 = vadd.f32 %v2839, %v3093
      %v3130 = vadd.f32 %v2840, %v3096
      %v3131 = vadd.f32 %v2841, %v3098
      %v3132 = vld [vmem:[%s2842] sm:$0xf]
      %v3133 = vld [vmem:[%s2842 + $0x4] sm:$0xf]
      %v3134 = vld [vmem:[%s2842 + $0x8] sm:$0x1]
      %v3135 = vld [vmem:[%s2842 + $0xc] sm:$0xf]
      %v3136 = vld [vmem:[%s2842 + $0x10] sm:$0xf]
      %v3137 = vld [vmem:[%s2842 + $0x14] sm:$0x1]
      %v3138 = vld [vmem:[%s2842 + $0x18] sm:$0xf]
      %v3139 = vld [vmem:[%s2842 + $0x1c] sm:$0xf]
      %v3140 = vld [vmem:[%s2842 + $0x20] sm:$0x1]
      %v3141 = vld [vmem:[%s2842 + $0x24] sm:$0xf]
      %v3142 = vld [vmem:[%s2842 + $0x28] sm:$0xf]
      %v3143 = vld [vmem:[%s2842 + $0x2c] sm:$0x1]
      %v3144 = vld [vmem:[%s2842 + $0x30] sm:$0xf]
      %v3145 = vld [vmem:[%s2842 + $0x34] sm:$0xf]
      %v3146 = vld [vmem:[%s2842 + $0x38] sm:$0x1]
      %v3147 = vld [vmem:[%s2842 + $0x3c] sm:$0xf]
      %v3148 = vld [vmem:[%s2842 + $0x40] sm:$0xf]
      %v3149 = vld [vmem:[%s2842 + $0x44] sm:$0x1]
      %v3150 = vld [vmem:[%s2842 + $0x48] sm:$0xf]
      %v3151 = vld [vmem:[%s2842 + $0x4c] sm:$0xf]
      %v3152 = vld [vmem:[%s2842 + $0x50] sm:$0x1]
      %v3153 = vld [vmem:[%s2842 + $0x54] sm:$0xf]
      %v3154 = vld [vmem:[%s2842 + $0x58] sm:$0xf]
      %v3155 = vld [vmem:[%s2842 + $0x5c] sm:$0x1]
      %v3156 = vld [vmem:[%s2842 + $0x60] sm:$0xf]
      %v3157 = vld [vmem:[%s2842 + $0x64] sm:$0xf]
      %v3158 = vld [vmem:[%s2842 + $0x68] sm:$0x1]
      %v3159 = vld [vmem:[%s2842 + $0x6c] sm:$0xf]
      %v3160 = vld [vmem:[%s2842 + $0x70] sm:$0xf]
      %v3161 = vld [vmem:[%s2842 + $0x74] sm:$0x1]
      %v3162 = vld [vmem:[%s2842 + $0x78] sm:$0xf]
      %v3163 = vld [vmem:[%s2842 + $0x7c] sm:$0xf]
      %v3164 = vld [vmem:[%s2842 + $0x80] sm:$0x1]
      %v3165 = vld [vmem:[%s2842 + $0x84] sm:$0xf]
      %v3166 = vld [vmem:[%s2842 + $0x88] sm:$0xf]
      %v3167 = vld [vmem:[%s2842 + $0x8c] sm:$0x1]
      %v3168 = vld [vmem:[%s2842 + $0x90] sm:$0xf]
      %v3169 = vld [vmem:[%s2842 + $0x94] sm:$0xf]
      %v3170 = vld [vmem:[%s2842 + $0x98] sm:$0x1]
      %v3171 = vld [vmem:[%s2842 + $0x9c] sm:$0xf]
      %v3172 = vld [vmem:[%s2842 + $0xa0] sm:$0xf]
      %v3173 = vld [vmem:[%s2842 + $0xa4] sm:$0x1]
      %v3174 = vld [vmem:[%s2842 + $0xa8] sm:$0xf]
      %v3175 = vld [vmem:[%s2842 + $0xac] sm:$0xf]
      %v3176 = vld [vmem:[%s2842 + $0xb0] sm:$0x1]
      %v3177 = vld [vmem:[%s2842 + $0xb4] sm:$0xf]
      %v3178 = vld [vmem:[%s2842 + $0xb8] sm:$0xf]
      %v3179 = vld [vmem:[%s2842 + $0xbc] sm:$0x1]
      %v3181 = vshrl.u32 %v3132, 16
      %v3183 = vrot.slane %v3181, 4
      %v3184 = vshll.u32 %v3132, 16
      %v3186 = vrot.slane %v3184, 5
      %v3187 = vor.u32 %v3183, %v3186
      %v3188 = vrot.slane %v3187, 4
      %v3190 = vshll.u32 %v3133, 16
      %v3192 = vrot.slane %v3190, 5
      %v3193 = vsel %vm277, %v3188, %v3192
      %v3194 = vshrl.u32 %v3133, 16
      %v3196 = vrot.slane %v3194, 4
      %v3197 = vor.u32 %v3196, %v3192
      %v3198 = vrot.slane %v3197, 4
      %v3200 = vshll.u32 %v3134, 16
      %v3202 = vrot.slane %v3200, 5
      %v3203 = vsel %vm277, %v3198, %v3202
      %v3205 = vshrl.u32 %v3135, 16
      %v3207 = vrot.slane %v3205, 4
      %v3208 = vshll.u32 %v3135, 16
      %v3210 = vrot.slane %v3208, 5
      %v3211 = vor.u32 %v3207, %v3210
      %v3212 = vrot.slane %v3211, 4
      %v3214 = vshll.u32 %v3136, 16
      %v3216 = vrot.slane %v3214, 5
      %v3217 = vsel %vm277, %v3212, %v3216
      %v3218 = vshrl.u32 %v3136, 16
      %v3220 = vrot.slane %v3218, 4
      %v3221 = vor.u32 %v3220, %v3216
      %v3222 = vrot.slane %v3221, 4
      %v3224 = vshll.u32 %v3137, 16
      %v3226 = vrot.slane %v3224, 5
      %v3227 = vsel %vm277, %v3222, %v3226
      %v3229 = vshrl.u32 %v3138, 16
      %v3231 = vrot.slane %v3229, 4
      %v3232 = vshll.u32 %v3138, 16
      %v3234 = vrot.slane %v3232, 5
      %v3235 = vor.u32 %v3231, %v3234
      %v3236 = vrot.slane %v3235, 4
      %v3238 = vshll.u32 %v3139, 16
      %v3240 = vrot.slane %v3238, 5
      %v3241 = vsel %vm277, %v3236, %v3240
      %v3242 = vshrl.u32 %v3139, 16
      %v3244 = vrot.slane %v3242, 4
      %v3245 = vor.u32 %v3244, %v3240
      %v3246 = vrot.slane %v3245, 4
      %v3248 = vshll.u32 %v3140, 16
      %v3250 = vrot.slane %v3248, 5
      %v3251 = vsel %vm277, %v3246, %v3250
      %v3253 = vshrl.u32 %v3141, 16
      %v3255 = vrot.slane %v3253, 4
      %v3256 = vshll.u32 %v3141, 16
      %v3258 = vrot.slane %v3256, 5
      %v3259 = vor.u32 %v3255, %v3258
      %v3260 = vrot.slane %v3259, 4
      %v3262 = vshll.u32 %v3142, 16
      %v3264 = vrot.slane %v3262, 5
      %v3265 = vsel %vm277, %v3260, %v3264
      %v3266 = vshrl.u32 %v3142, 16
      %v3268 = vrot.slane %v3266, 4
      %v3269 = vor.u32 %v3268, %v3264
      %v3270 = vrot.slane %v3269, 4
      %v3272 = vshll.u32 %v3143, 16
      %v3274 = vrot.slane %v3272, 5
      %v3275 = vsel %vm277, %v3270, %v3274
      %v3277 = vshrl.u32 %v3144, 16
      %v3279 = vrot.slane %v3277, 4
      %v3280 = vshll.u32 %v3144, 16
      %v3282 = vrot.slane %v3280, 5
      %v3283 = vor.u32 %v3279, %v3282
      %v3284 = vrot.slane %v3283, 4
      %v3286 = vshll.u32 %v3145, 16
      %v3288 = vrot.slane %v3286, 5
      %v3289 = vsel %vm277, %v3284, %v3288
      %v3290 = vshrl.u32 %v3145, 16
      %v3292 = vrot.slane %v3290, 4
      %v3293 = vor.u32 %v3292, %v3288
      %v3294 = vrot.slane %v3293, 4
      %v3296 = vshll.u32 %v3146, 16
      %v3298 = vrot.slane %v3296, 5
      %v3299 = vsel %vm277, %v3294, %v3298
      %v3301 = vshrl.u32 %v3147, 16
      %v3303 = vrot.slane %v3301, 4
      %v3304 = vshll.u32 %v3147, 16
      %v3306 = vrot.slane %v3304, 5
      %v3307 = vor.u32 %v3303, %v3306
      %v3308 = vrot.slane %v3307, 4
      %v3310 = vshll.u32 %v3148, 16
      %v3312 = vrot.slane %v3310, 5
      %v3313 = vsel %vm277, %v3308, %v3312
      %v3314 = vshrl.u32 %v3148, 16
      %v3316 = vrot.slane %v3314, 4
      %v3317 = vor.u32 %v3316, %v3312
      %v3318 = vrot.slane %v3317, 4
      %v3320 = vshll.u32 %v3149, 16
      %v3322 = vrot.slane %v3320, 5
      %v3323 = vsel %vm277, %v3318, %v3322
      %v3325 = vshrl.u32 %v3150, 16
      %v3327 = vrot.slane %v3325, 4
      %v3328 = vshll.u32 %v3150, 16
      %v3330 = vrot.slane %v3328, 5
      %v3331 = vor.u32 %v3327, %v3330
      %v3332 = vrot.slane %v3331, 4
      %v3334 = vshll.u32 %v3151, 16
      %v3336 = vrot.slane %v3334, 5
      %v3337 = vsel %vm277, %v3332, %v3336
      %v3338 = vshrl.u32 %v3151, 16
      %v3340 = vrot.slane %v3338, 4
      %v3341 = vor.u32 %v3340, %v3336
      %v3342 = vrot.slane %v3341, 4
      %v3344 = vshll.u32 %v3152, 16
      %v3346 = vrot.slane %v3344, 5
      %v3347 = vsel %vm277, %v3342, %v3346
      %v3349 = vshrl.u32 %v3153, 16
      %v3351 = vrot.slane %v3349, 4
      %v3352 = vshll.u32 %v3153, 16
      %v3354 = vrot.slane %v3352, 5
      %v3355 = vor.u32 %v3351, %v3354
      %v3356 = vrot.slane %v3355, 4
      %v3358 = vshll.u32 %v3154, 16
      %v3360 = vrot.slane %v3358, 5
      %v3361 = vsel %vm277, %v3356, %v3360
      %v3362 = vshrl.u32 %v3154, 16
      %v3364 = vrot.slane %v3362, 4
      %v3365 = vor.u32 %v3364, %v3360
      %v3366 = vrot.slane %v3365, 4
      %v3368 = vshll.u32 %v3155, 16
      %v3370 = vrot.slane %v3368, 5
      %v3371 = vsel %vm277, %v3366, %v3370
      %v3373 = vshrl.u32 %v3156, 16
      %v3375 = vrot.slane %v3373, 4
      %v3376 = vshll.u32 %v3156, 16
      %v3378 = vrot.slane %v3376, 5
      %v3379 = vor.u32 %v3375, %v3378
      %v3380 = vrot.slane %v3379, 4
      %v3382 = vshll.u32 %v3157, 16
      %v3384 = vrot.slane %v3382, 5
      %v3385 = vsel %vm277, %v3380, %v3384
      %v3386 = vshrl.u32 %v3157, 16
      %v3388 = vrot.slane %v3386, 4
      %v3389 = vor.u32 %v3388, %v3384
      %v3390 = vrot.slane %v3389, 4
      %v3392 = vshll.u32 %v3158, 16
      %v3394 = vrot.slane %v3392, 5
      %v3395 = vsel %vm277, %v3390, %v3394
      %v3397 = vshrl.u32 %v3159, 16
      %v3399 = vrot.slane %v3397, 4
      %v3400 = vshll.u32 %v3159, 16
      %v3402 = vrot.slane %v3400, 5
      %v3403 = vor.u32 %v3399, %v3402
      %v3404 = vrot.slane %v3403, 4
      %v3406 = vshll.u32 %v3160, 16
      %v3408 = vrot.slane %v3406, 5
      %v3409 = vsel %vm277, %v3404, %v3408
      %v3410 = vshrl.u32 %v3160, 16
      %v3412 = vrot.slane %v3410, 4
      %v3413 = vor.u32 %v3412, %v3408
      %v3414 = vrot.slane %v3413, 4
      %v3416 = vshll.u32 %v3161, 16
      %v3418 = vrot.slane %v3416, 5
      %v3419 = vsel %vm277, %v3414, %v3418
      %v3421 = vshrl.u32 %v3162, 16
      %v3423 = vrot.slane %v3421, 4
      %v3424 = vshll.u32 %v3162, 16
      %v3426 = vrot.slane %v3424, 5
      %v3427 = vor.u32 %v3423, %v3426
      %v3428 = vrot.slane %v3427, 4
      %v3430 = vshll.u32 %v3163, 16
      %v3432 = vrot.slane %v3430, 5
      %v3433 = vsel %vm277, %v3428, %v3432
      %v3434 = vshrl.u32 %v3163, 16
      %v3436 = vrot.slane %v3434, 4
      %v3437 = vor.u32 %v3436, %v3432
      %v3438 = vrot.slane %v3437, 4
      %v3440 = vshll.u32 %v3164, 16
      %v3442 = vrot.slane %v3440, 5
      %v3443 = vsel %vm277, %v3438, %v3442
      %v3445 = vshrl.u32 %v3165, 16
      %v3447 = vrot.slane %v3445, 4
      %v3448 = vshll.u32 %v3165, 16
      %v3450 = vrot.slane %v3448, 5
      %v3451 = vor.u32 %v3447, %v3450
      %v3452 = vrot.slane %v3451, 4
      %v3454 = vshll.u32 %v3166, 16
      %v3456 = vrot.slane %v3454, 5
      %v3457 = vsel %vm277, %v3452, %v3456
      %v3458 = vshrl.u32 %v3166, 16
      %v3460 = vrot.slane %v3458, 4
      %v3461 = vor.u32 %v3460, %v3456
      %v3462 = vrot.slane %v3461, 4
      %v3464 = vshll.u32 %v3167, 16
      %v3466 = vrot.slane %v3464, 5
      %v3467 = vsel %vm277, %v3462, %v3466
      %v3469 = vshrl.u32 %v3168, 16
      %v3471 = vrot.slane %v3469, 4
      %v3472 = vshll.u32 %v3168, 16
      %v3474 = vrot.slane %v3472, 5
      %v3475 = vor.u32 %v3471, %v3474
      %v3476 = vrot.slane %v3475, 4
      %v3478 = vshll.u32 %v3169, 16
      %v3480 = vrot.slane %v3478, 5
      %v3481 = vsel %vm277, %v3476, %v3480
      %v3482 = vshrl.u32 %v3169, 16
      %v3484 = vrot.slane %v3482, 4
      %v3485 = vor.u32 %v3484, %v3480
      %v3486 = vrot.slane %v3485, 4
      %v3488 = vshll.u32 %v3170, 16
      %v3490 = vrot.slane %v3488, 5
      %v3491 = vsel %vm277, %v3486, %v3490
      %v3493 = vshrl.u32 %v3171, 16
      %v3495 = vrot.slane %v3493, 4
      %v3496 = vshll.u32 %v3171, 16
      %v3498 = vrot.slane %v3496, 5
      %v3499 = vor.u32 %v3495, %v3498
      %v3500 = vrot.slane %v3499, 4
      %v3502 = vshll.u32 %v3172, 16
      %v3504 = vrot.slane %v3502, 5
      %v3505 = vsel %vm277, %v3500, %v3504
      %v3506 = vshrl.u32 %v3172, 16
      %v3508 = vrot.slane %v3506, 4
      %v3509 = vor.u32 %v3508, %v3504
      %v3510 = vrot.slane %v3509, 4
      %v3512 = vshll.u32 %v3173, 16
      %v3514 = vrot.slane %v3512, 5
      %v3515 = vsel %vm277, %v3510, %v3514
      %v3517 = vshrl.u32 %v3174, 16
      %v3519 = vrot.slane %v3517, 4
      %v3520 = vshll.u32 %v3174, 16
      %v3522 = vrot.slane %v3520, 5
      %v3523 = vor.u32 %v3519, %v3522
      %v3524 = vrot.slane %v3523, 4
      %v3526 = vshll.u32 %v3175, 16
      %v3528 = vrot.slane %v3526, 5
      %v3529 = vsel %vm277, %v3524, %v3528
      %v3530 = vshrl.u32 %v3175, 16
      %v3532 = vrot.slane %v3530, 4
      %v3533 = vor.u32 %v3532, %v3528
      %v3534 = vrot.slane %v3533, 4
      %v3536 = vshll.u32 %v3176, 16
      %v3538 = vrot.slane %v3536, 5
      %v3539 = vsel %vm277, %v3534, %v3538
      %v3541 = vshrl.u32 %v3177, 16
      %v3543 = vrot.slane %v3541, 4
      %v3544 = vshll.u32 %v3177, 16
      %v3546 = vrot.slane %v3544, 5
      %v3547 = vor.u32 %v3543, %v3546
      %v3548 = vrot.slane %v3547, 4
      %v3550 = vshll.u32 %v3178, 16
      %v3552 = vrot.slane %v3550, 5
      %v3553 = vsel %vm277, %v3548, %v3552
      %v3554 = vshrl.u32 %v3178, 16
      %v3556 = vrot.slane %v3554, 4
      %v3557 = vor.u32 %v3556, %v3552
      %v3558 = vrot.slane %v3557, 4
      %v3560 = vshll.u32 %v3179, 16
      %v3562 = vrot.slane %v3560, 5
      %v3563 = vsel %vm277, %v3558, %v3562
      %v3564 = vld [vmem:[%s212 + $0x8] sm:$0xc]
      %v3565 = vunpack.c.l.b16 %v3193
      %v3566 = vunpack.c.l.b16 %v3203
      %v3567 = vunpack.c.l.b16 %v3217
      %v3568 = vunpack.c.l.b16 %v3227
      %v3569 = vunpack.c.l.b16 %v3241
      %v3570 = vunpack.c.l.b16 %v3251
      %v3571 = vunpack.c.l.b16 %v3265
      %v3572 = vunpack.c.l.b16 %v3275
      %v3573 = vunpack.c.l.b16 %v3289
      %v3574 = vunpack.c.l.b16 %v3299
      %v3575 = vunpack.c.l.b16 %v3313
      %v3576 = vunpack.c.l.b16 %v3323
      %v3577 = vunpack.c.l.b16 %v3337
      %v3578 = vunpack.c.l.b16 %v3347
      %v3579 = vunpack.c.l.b16 %v3361
      %v3580 = vunpack.c.l.b16 %v3371
      %v3581 = vunpack.c.l.b16 %v3385
      %v3582 = vunpack.c.l.b16 %v3395
      %v3583 = vunpack.c.l.b16 %v3409
      %v3584 = vunpack.c.l.b16 %v3419
      %v3585 = vunpack.c.l.b16 %v3433
      %v3586 = vunpack.c.l.b16 %v3443
      %v3587 = vunpack.c.l.b16 %v3457
      %v3588 = vunpack.c.l.b16 %v3467
      %v3589 = vunpack.c.l.b16 %v3481
      %v3590 = vunpack.c.l.b16 %v3491
      %v3591 = vunpack.c.l.b16 %v3505
      %v3592 = vunpack.c.l.b16 %v3515
      %v3593 = vunpack.c.l.b16 %v3529
      %v3594 = vunpack.c.l.b16 %v3539
      %v3595 = vunpack.c.l.b16 %v3553
      %v3596 = vunpack.c.l.b16 %v3563
      %v3597 = vpack.c.b16 %v3566, %v3565
      %v3598 = vpack.c.b16 %v3568, %v3567
      %v3599 = vpack.c.b16 %v3570, %v3569
      %v3600 = vpack.c.b16 %v3572, %v3571
      %v3601 = vpack.c.b16 %v3574, %v3573
      %v3602 = vpack.c.b16 %v3576, %v3575
      %v3603 = vpack.c.b16 %v3578, %v3577
      %v3604 = vpack.c.b16 %v3580, %v3579
      %v3605 = vpack.c.b16 %v3582, %v3581
      %v3606 = vpack.c.b16 %v3584, %v3583
      %v3607 = vpack.c.b16 %v3586, %v3585
      %v3608 = vpack.c.b16 %v3588, %v3587
      %v3609 = vpack.c.b16 %v3590, %v3589
      %v3610 = vpack.c.b16 %v3592, %v3591
      %v3611 = vpack.c.b16 %v3594, %v3593
      %v3612 = vpack.c.b16 %v3596, %v3595
      %v3614 = vunpack.c.l.b16 %v3564
      %v3615 = vpack.c.b16 %v3614, %v3614
      %v3617 = vshrl.u32 %v3615, 16
      %v3619 = vrot.slane %v3617, 2
      %v3620 = vshll.u32 %v3615, 16
      %v3622 = vrot.slane %v3620, 3
      %v3623 = vor.u32 %v3619, %v3622
      %v3625 = vsel %vm722, %v3597, 0
      %v3628 = vsel %vm722, %v3598, 0
      %v3631 = vsel %vm722, %v3599, 0
      %v3634 = vsel %vm722, %v3600, 0
      %v3637 = vsel %vm722, %v3601, 0
      %v3640 = vsel %vm722, %v3602, 0
      %v3643 = vsel %vm722, %v3603, 0
      %v3646 = vsel %vm722, %v3604, 0
      %v3649 = vsel %vm722, %v3605, 0
      %v3652 = vsel %vm722, %v3606, 0
      %v3655 = vsel %vm722, %v3607, 0
      %v3658 = vsel %vm722, %v3608, 0
      %v3661 = vsel %vm722, %v3609, 0
      %v3664 = vsel %vm722, %v3610, 0
      %v3667 = vsel %vm722, %v3611, 0
      %v3670 = vsel %vm722, %v3612, 0
      %v3673 = vand.u32 %v3623, %v774
      %3675 = vmatpush.bf16.msra.mxu0 0
      %3676 = vmatpush.bf16.msra.mxu0 0
      %3677 = vmatpush.bf16.msra.mxu0 0
      %3678 = vmatpush.bf16.msra.mxu0 0
      %3679 = vmatpush.bf16.msra.mxu0 0
      %3680 = vmatpush.bf16.msra.mxu0 0
      %3681 = vmatpush.bf16.msra.mxu0 0
      %3682 = vmatpush.bf16.msra.mxu0 %v3673
      %3683 = vmatmul.bf16.gmra.mxu0 %v3625
      %v3684 = vpop.f32.mrf.mxu0
      %v3685 = vadd.f32 0.0, %v3684
      %v3686 = vpop.f32.mrf.mxu0
      %v3687 = vadd.f32 0.0, %v3686
      %3688 = vmatmul.bf16.gmra.mxu0 %v3628
      %v3689 = vpop.f32.mrf.mxu0
      %v3690 = vadd.f32 0.0, %v3689
      %v3691 = vpop.f32.mrf.mxu0
      %v3692 = vadd.f32 0.0, %v3691
      %3693 = vmatmul.bf16.gmra.mxu0 %v3631
      %v3694 = vpop.f32.mrf.mxu0
      %v3695 = vadd.f32 0.0, %v3694
      %v3696 = vpop.f32.mrf.mxu0
      %v3697 = vadd.f32 0.0, %v3696
      %3698 = vmatmul.bf16.gmra.mxu0 %v3634
      %v3699 = vpop.f32.mrf.mxu0
      %v3700 = vadd.f32 0.0, %v3699
      %v3701 = vpop.f32.mrf.mxu0
      %v3702 = vadd.f32 0.0, %v3701
      %3703 = vmatmul.bf16.gmra.mxu0 %v3637
      %v3704 = vpop.f32.mrf.mxu0
      %v3705 = vadd.f32 0.0, %v3704
      %v3706 = vpop.f32.mrf.mxu0
      %v3707 = vadd.f32 0.0, %v3706
      %3708 = vmatmul.bf16.gmra.mxu0 %v3640
      %v3709 = vpop.f32.mrf.mxu0
      %v3710 = vadd.f32 0.0, %v3709
      %v3711 = vpop.f32.mrf.mxu0
      %v3712 = vadd.f32 0.0, %v3711
      %3713 = vmatmul.bf16.gmra.mxu0 %v3643
      %v3714 = vpop.f32.mrf.mxu0
      %v3715 = vadd.f32 0.0, %v3714
      %v3716 = vpop.f32.mrf.mxu0
      %v3717 = vadd.f32 0.0, %v3716
      %3718 = vmatmul.bf16.gmra.mxu0 %v3646
      %v3719 = vpop.f32.mrf.mxu0
      %v3720 = vadd.f32 0.0, %v3719
      %v3721 = vpop.f32.mrf.mxu0
      %v3722 = vadd.f32 0.0, %v3721
      %3723 = vmatmul.bf16.gmra.mxu0 %v3649
      %v3724 = vpop.f32.mrf.mxu0
      %v3725 = vadd.f32 0.0, %v3724
      %v3726 = vpop.f32.mrf.mxu0
      %v3727 = vadd.f32 0.0, %v3726
      %3728 = vmatmul.bf16.gmra.mxu0 %v3652
      %v3729 = vpop.f32.mrf.mxu0
      %v3730 = vadd.f32 0.0, %v3729
      %v3731 = vpop.f32.mrf.mxu0
      %v3732 = vadd.f32 0.0, %v3731
      %3733 = vmatmul.bf16.gmra.mxu0 %v3655
      %v3734 = vpop.f32.mrf.mxu0
      %v3735 = vadd.f32 0.0, %v3734
      %v3736 = vpop.f32.mrf.mxu0
      %v3737 = vadd.f32 0.0, %v3736
      %3738 = vmatmul.bf16.gmra.mxu0 %v3658
      %v3739 = vpop.f32.mrf.mxu0
      %v3740 = vadd.f32 0.0, %v3739
      %v3741 = vpop.f32.mrf.mxu0
      %v3742 = vadd.f32 0.0, %v3741
      %3743 = vmatmul.bf16.gmra.mxu0 %v3661
      %v3744 = vpop.f32.mrf.mxu0
      %v3745 = vadd.f32 0.0, %v3744
      %v3746 = vpop.f32.mrf.mxu0
      %v3747 = vadd.f32 0.0, %v3746
      %3748 = vmatmul.bf16.gmra.mxu0 %v3664
      %v3749 = vpop.f32.mrf.mxu0
      %v3750 = vadd.f32 0.0, %v3749
      %v3751 = vpop.f32.mrf.mxu0
      %v3752 = vadd.f32 0.0, %v3751
      %3753 = vmatmul.bf16.gmra.mxu0 %v3667
      %v3754 = vpop.f32.mrf.mxu0
      %v3755 = vadd.f32 0.0, %v3754
      %v3756 = vpop.f32.mrf.mxu0
      %v3757 = vadd.f32 0.0, %v3756
      %3758 = vmatmul.bf16.gmra.mxu0 %v3670
      %v3759 = vpop.f32.mrf.mxu0
      %v3760 = vadd.f32 0.0, %v3759
      %v3761 = vpop.f32.mrf.mxu0
      %v3762 = vadd.f32 0.0, %v3761
      %3763 = vdwg.mxu0
      %v3764 = vadd.f32 %v3100, %v3685
      %v3765 = vadd.f32 %v3101, %v3687
      %v3766 = vadd.f32 %v3102, %v3690
      %v3767 = vadd.f32 %v3103, %v3692
      %v3768 = vadd.f32 %v3104, %v3695
      %v3769 = vadd.f32 %v3105, %v3697
      %v3770 = vadd.f32 %v3106, %v3700
      %v3771 = vadd.f32 %v3107, %v3702
      %v3772 = vadd.f32 %v3108, %v3705
      %v3773 = vadd.f32 %v3109, %v3707
      %v3774 = vadd.f32 %v3110, %v3710
      %v3775 = vadd.f32 %v3111, %v3712
      %v3776 = vadd.f32 %v3112, %v3715
      %v3777 = vadd.f32 %v3113, %v3717
      %v3778 = vadd.f32 %v3114, %v3720
      %v3779 = vadd.f32 %v3115, %v3722
      %v3780 = vadd.f32 %v3116, %v3725
      %v3781 = vadd.f32 %v3117, %v3727
      %v3782 = vadd.f32 %v3118, %v3730
      %v3783 = vadd.f32 %v3119, %v3732
      %v3784 = vadd.f32 %v3120, %v3735
      %v3785 = vadd.f32 %v3121, %v3737
      %v3786 = vadd.f32 %v3122, %v3740
      %v3787 = vadd.f32 %v3123, %v3742
      %v3788 = vadd.f32 %v3124, %v3745
      %v3789 = vadd.f32 %v3125, %v3747
      %v3790 = vadd.f32 %v3126, %v3750
      %v3791 = vadd.f32 %v3127, %v3752
      %v3792 = vadd.f32 %v3128, %v3755
      %v3793 = vadd.f32 %v3129, %v3757
      %v3794 = vadd.f32 %v3130, %v3760
      %v3795 = vadd.f32 %v3131, %v3762
      %v3796 = vld [vmem:[%s2842] sm:$0xe]
      %v3797 = vld [vmem:[%s2842 + $0xc] sm:$0xe]
      %v3798 = vld [vmem:[%s2842 + $0x18] sm:$0xe]
      %v3799 = vld [vmem:[%s2842 + $0x24] sm:$0xe]
      %v3800 = vld [vmem:[%s2842 + $0x30] sm:$0xe]
      %v3801 = vld [vmem:[%s2842 + $0x3c] sm:$0xe]
      %v3802 = vld [vmem:[%s2842 + $0x48] sm:$0xe]
      %v3803 = vld [vmem:[%s2842 + $0x54] sm:$0xe]
      %v3804 = vld [vmem:[%s2842 + $0x60] sm:$0xe]
      %v3805 = vld [vmem:[%s2842 + $0x6c] sm:$0xe]
      %v3806 = vld [vmem:[%s2842 + $0x78] sm:$0xe]
      %v3807 = vld [vmem:[%s2842 + $0x84] sm:$0xe]
      %v3808 = vld [vmem:[%s2842 + $0x90] sm:$0xe]
      %v3809 = vld [vmem:[%s2842 + $0x9c] sm:$0xe]
      %v3810 = vld [vmem:[%s2842 + $0xa8] sm:$0xe]
      %v3811 = vld [vmem:[%s2842 + $0xb4] sm:$0xe]
      %v3860 = vrot.slane %v3796, 5
      %v3861 = vrot.slane %v3860, 4
      %v3862 = vrot.slane %v3133, 5
      %v3863 = vsel %vm1137, %v3861, %v3862
      %v3864 = vrot.slane %v3862, 4
      %v3865 = vrot.slane %v3134, 5
      %v3866 = vsel %vm1137, %v3864, %v3865
      %v3867 = vrot.slane %v3797, 5
      %v3868 = vrot.slane %v3867, 4
      %v3869 = vrot.slane %v3136, 5
      %v3870 = vsel %vm1137, %v3868, %v3869
      %v3871 = vrot.slane %v3869, 4
      %v3872 = vrot.slane %v3137, 5
      %v3873 = vsel %vm1137, %v3871, %v3872
      %v3874 = vrot.slane %v3798, 5
      %v3875 = vrot.slane %v3874, 4
      %v3876 = vrot.slane %v3139, 5
      %v3877 = vsel %vm1137, %v3875, %v3876
      %v3878 = vrot.slane %v3876, 4
      %v3879 = vrot.slane %v3140, 5
      %v3880 = vsel %vm1137, %v3878, %v3879
      %v3881 = vrot.slane %v3799, 5
      %v3882 = vrot.slane %v3881, 4
      %v3883 = vrot.slane %v3142, 5
      %v3884 = vsel %vm1137, %v3882, %v3883
      %v3885 = vrot.slane %v3883, 4
      %v3886 = vrot.slane %v3143, 5
      %v3887 = vsel %vm1137, %v3885, %v3886
      %v3888 = vrot.slane %v3800, 5
      %v3889 = vrot.slane %v3888, 4
      %v3890 = vrot.slane %v3145, 5
      %v3891 = vsel %vm1137, %v3889, %v3890
      %v3892 = vrot.slane %v3890, 4
      %v3893 = vrot.slane %v3146, 5
      %v3894 = vsel %vm1137, %v3892, %v3893
      %v3895 = vrot.slane %v3801, 5
      %v3896 = vrot.slane %v3895, 4
      %v3897 = vrot.slane %v3148, 5
      %v3898 = vsel %vm1137, %v3896, %v3897
      %v3899 = vrot.slane %v3897, 4
      %v3900 = vrot.slane %v3149, 5
      %v3901 = vsel %vm1137, %v3899, %v3900
      %v3902 = vrot.slane %v3802, 5
      %v3903 = vrot.slane %v3902, 4
      %v3904 = vrot.slane %v3151, 5
      %v3905 = vsel %vm1137, %v3903, %v3904
      %v3906 = vrot.slane %v3904, 4
      %v3907 = vrot.slane %v3152, 5
      %v3908 = vsel %vm1137, %v3906, %v3907
      %v3909 = vrot.slane %v3803, 5
      %v3910 = vrot.slane %v3909, 4
      %v3911 = vrot.slane %v3154, 5
      %v3912 = vsel %vm1137, %v3910, %v3911
      %v3913 = vrot.slane %v3911, 4
      %v3914 = vrot.slane %v3155, 5
      %v3915 = vsel %vm1137, %v3913, %v3914
      %v3916 = vrot.slane %v3804, 5
      %v3917 = vrot.slane %v3916, 4
      %v3918 = vrot.slane %v3157, 5
      %v3919 = vsel %vm1137, %v3917, %v3918
      %v3920 = vrot.slane %v3918, 4
      %v3921 = vrot.slane %v3158, 5
      %v3922 = vsel %vm1137, %v3920, %v3921
      %v3923 = vrot.slane %v3805, 5
      %v3924 = vrot.slane %v3923, 4
      %v3925 = vrot.slane %v3160, 5
      %v3926 = vsel %vm1137, %v3924, %v3925
      %v3927 = vrot.slane %v3925, 4
      %v3928 = vrot.slane %v3161, 5
      %v3929 = vsel %vm1137, %v3927, %v3928
      %v3930 = vrot.slane %v3806, 5
      %v3931 = vrot.slane %v3930, 4
      %v3932 = vrot.slane %v3163, 5
      %v3933 = vsel %vm1137, %v3931, %v3932
      %v3934 = vrot.slane %v3932, 4
      %v3935 = vrot.slane %v3164, 5
      %v3936 = vsel %vm1137, %v3934, %v3935
      %v3937 = vrot.slane %v3807, 5
      %v3938 = vrot.slane %v3937, 4
      %v3939 = vrot.slane %v3166, 5
      %v3940 = vsel %vm1137, %v3938, %v3939
      %v3941 = vrot.slane %v3939, 4
      %v3942 = vrot.slane %v3167, 5
      %v3943 = vsel %vm1137, %v3941, %v3942
      %v3944 = vrot.slane %v3808, 5
      %v3945 = vrot.slane %v3944, 4
      %v3946 = vrot.slane %v3169, 5
      %v3947 = vsel %vm1137, %v3945, %v3946
      %v3948 = vrot.slane %v3946, 4
      %v3949 = vrot.slane %v3170, 5
      %v3950 = vsel %vm1137, %v3948, %v3949
      %v3951 = vrot.slane %v3809, 5
      %v3952 = vrot.slane %v3951, 4
      %v3953 = vrot.slane %v3172, 5
      %v3954 = vsel %vm1137, %v3952, %v3953
      %v3955 = vrot.slane %v3953, 4
      %v3956 = vrot.slane %v3173, 5
      %v3957 = vsel %vm1137, %v3955, %v3956
      %v3958 = vrot.slane %v3810, 5
      %v3959 = vrot.slane %v3958, 4
      %v3960 = vrot.slane %v3175, 5
      %v3961 = vsel %vm1137, %v3959, %v3960
      %v3962 = vrot.slane %v3960, 4
      %v3963 = vrot.slane %v3176, 5
      %v3964 = vsel %vm1137, %v3962, %v3963
      %v3965 = vrot.slane %v3811, 5
      %v3966 = vrot.slane %v3965, 4
      %v3967 = vrot.slane %v3178, 5
      %v3968 = vsel %vm1137, %v3966, %v3967
      %v3969 = vrot.slane %v3967, 4
      %v3970 = vrot.slane %v3179, 5
      %v3971 = vsel %vm1137, %v3969, %v3970
      %v3972 = vld [vmem:[%s212 + $0xc] sm:$0x3]
      %v3973 = vunpack.c.l.b16 %v3863
      %v3974 = vunpack.c.l.b16 %v3866
      %v3975 = vunpack.c.l.b16 %v3870
      %v3976 = vunpack.c.l.b16 %v3873
      %v3977 = vunpack.c.l.b16 %v3877
      %v3978 = vunpack.c.l.b16 %v3880
      %v3979 = vunpack.c.l.b16 %v3884
      %v3980 = vunpack.c.l.b16 %v3887
      %v3981 = vunpack.c.l.b16 %v3891
      %v3982 = vunpack.c.l.b16 %v3894
      %v3983 = vunpack.c.l.b16 %v3898
      %v3984 = vunpack.c.l.b16 %v3901
      %v3985 = vunpack.c.l.b16 %v3905
      %v3986 = vunpack.c.l.b16 %v3908
      %v3987 = vunpack.c.l.b16 %v3912
      %v3988 = vunpack.c.l.b16 %v3915
      %v3989 = vunpack.c.l.b16 %v3919
      %v3990 = vunpack.c.l.b16 %v3922
      %v3991 = vunpack.c.l.b16 %v3926
      %v3992 = vunpack.c.l.b16 %v3929
      %v3993 = vunpack.c.l.b16 %v3933
      %v3994 = vunpack.c.l.b16 %v3936
      %v3995 = vunpack.c.l.b16 %v3940
      %v3996 = vunpack.c.l.b16 %v3943
      %v3997 = vunpack.c.l.b16 %v3947
      %v3998 = vunpack.c.l.b16 %v3950
      %v3999 = vunpack.c.l.b16 %v3954
      %v4000 = vunpack.c.l.b16 %v3957
      %v4001 = vunpack.c.l.b16 %v3961
      %v4002 = vunpack.c.l.b16 %v3964
      %v4003 = vunpack.c.l.b16 %v3968
      %v4004 = vunpack.c.l.b16 %v3971
      %v4005 = vpack.c.b16 %v3974, %v3973
      %v4006 = vpack.c.b16 %v3976, %v3975
      %v4007 = vpack.c.b16 %v3978, %v3977
      %v4008 = vpack.c.b16 %v3980, %v3979
      %v4009 = vpack.c.b16 %v3982, %v3981
      %v4010 = vpack.c.b16 %v3984, %v3983
      %v4011 = vpack.c.b16 %v3986, %v3985
      %v4012 = vpack.c.b16 %v3988, %v3987
      %v4013 = vpack.c.b16 %v3990, %v3989
      %v4014 = vpack.c.b16 %v3992, %v3991
      %v4015 = vpack.c.b16 %v3994, %v3993
      %v4016 = vpack.c.b16 %v3996, %v3995
      %v4017 = vpack.c.b16 %v3998, %v3997
      %v4018 = vpack.c.b16 %v4000, %v3999
      %v4019 = vpack.c.b16 %v4002, %v4001
      %v4020 = vpack.c.b16 %v4004, %v4003
      %v4022 = vsel %vm722, %v4005, 0
      %v4025 = vsel %vm722, %v4006, 0
      %v4028 = vsel %vm722, %v4007, 0
      %v4031 = vsel %vm722, %v4008, 0
      %v4034 = vsel %vm722, %v4009, 0
      %v4037 = vsel %vm722, %v4010, 0
      %v4040 = vsel %vm722, %v4011, 0
      %v4043 = vsel %vm722, %v4012, 0
      %v4046 = vsel %vm722, %v4013, 0
      %v4049 = vsel %vm722, %v4014, 0
      %v4052 = vsel %vm722, %v4015, 0
      %v4055 = vsel %vm722, %v4016, 0
      %v4058 = vsel %vm722, %v4017, 0
      %v4061 = vsel %vm722, %v4018, 0
      %v4064 = vsel %vm722, %v4019, 0
      %v4067 = vsel %vm722, %v4020, 0
      %v4070 = vand.u32 %v3972, %v774
      %4072 = vmatpush.bf16.msra.mxu0 0
      %4073 = vmatpush.bf16.msra.mxu0 0
      %4074 = vmatpush.bf16.msra.mxu0 0
      %4075 = vmatpush.bf16.msra.mxu0 0
      %4076 = vmatpush.bf16.msra.mxu0 0
      %4077 = vmatpush.bf16.msra.mxu0 0
      %4078 = vmatpush.bf16.msra.mxu0 0
      %4079 = vmatpush.bf16.msra.mxu0 %v4070
      %4080 = vmatmul.bf16.gmra.mxu0 %v4022
      %v4081 = vpop.f32.mrf.mxu0
      %v4082 = vadd.f32 0.0, %v4081
      %v4083 = vpop.f32.mrf.mxu0
      %v4084 = vadd.f32 0.0, %v4083
      %4085 = vmatmul.bf16.gmra.mxu0 %v4025
      %v4086 = vpop.f32.mrf.mxu0
      %v4087 = vadd.f32 0.0, %v4086
      %v4088 = vpop.f32.mrf.mxu0
      %v4089 = vadd.f32 0.0, %v4088
      %4090 = vmatmul.bf16.gmra.mxu0 %v4028
      %v4091 = vpop.f32.mrf.mxu0
      %v4092 = vadd.f32 0.0, %v4091
      %v4093 = vpop.f32.mrf.mxu0
      %v4094 = vadd.f32 0.0, %v4093
      %4095 = vmatmul.bf16.gmra.mxu0 %v4031
      %v4096 = vpop.f32.mrf.mxu0
      %v4097 = vadd.f32 0.0, %v4096
      %v4098 = vpop.f32.mrf.mxu0
      %v4099 = vadd.f32 0.0, %v4098
      %4100 = vmatmul.bf16.gmra.mxu0 %v4034
      %v4101 = vpop.f32.mrf.mxu0
      %v4102 = vadd.f32 0.0, %v4101
      %v4103 = vpop.f32.mrf.mxu0
      %v4104 = vadd.f32 0.0, %v4103
      %4105 = vmatmul.bf16.gmra.mxu0 %v4037
      %v4106 = vpop.f32.mrf.mxu0
      %v4107 = vadd.f32 0.0, %v4106
      %v4108 = vpop.f32.mrf.mxu0
      %v4109 = vadd.f32 0.0, %v4108
      %4110 = vmatmul.bf16.gmra.mxu0 %v4040
      %v4111 = vpop.f32.mrf.mxu0
      %v4112 = vadd.f32 0.0, %v4111
      %v4113 = vpop.f32.mrf.mxu0
      %v4114 = vadd.f32 0.0, %v4113
      %4115 = vmatmul.bf16.gmra.mxu0 %v4043
      %v4116 = vpop.f32.mrf.mxu0
      %v4117 = vadd.f32 0.0, %v4116
      %v4118 = vpop.f32.mrf.mxu0
      %v4119 = vadd.f32 0.0, %v4118
      %4120 = vmatmul.bf16.gmra.mxu0 %v4046
      %v4121 = vpop.f32.mrf.mxu0
      %v4122 = vadd.f32 0.0, %v4121
      %v4123 = vpop.f32.mrf.mxu0
      %v4124 = vadd.f32 0.0, %v4123
      %4125 = vmatmul.bf16.gmra.mxu0 %v4049
      %v4126 = vpop.f32.mrf.mxu0
      %v4127 = vadd.f32 0.0, %v4126
      %v4128 = vpop.f32.mrf.mxu0
      %v4129 = vadd.f32 0.0, %v4128
      %4130 = vmatmul.bf16.gmra.mxu0 %v4052
      %v4131 = vpop.f32.mrf.mxu0
      %v4132 = vadd.f32 0.0, %v4131
      %v4133 = vpop.f32.mrf.mxu0
      %v4134 = vadd.f32 0.0, %v4133
      %4135 = vmatmul.bf16.gmra.mxu0 %v4055
      %v4136 = vpop.f32.mrf.mxu0
      %v4137 = vadd.f32 0.0, %v4136
      %v4138 = vpop.f32.mrf.mxu0
      %v4139 = vadd.f32 0.0, %v4138
      %4140 = vmatmul.bf16.gmra.mxu0 %v4058
      %v4141 = vpop.f32.mrf.mxu0
      %v4142 = vadd.f32 0.0, %v4141
      %v4143 = vpop.f32.mrf.mxu0
      %v4144 = vadd.f32 0.0, %v4143
      %4145 = vmatmul.bf16.gmra.mxu0 %v4061
      %v4146 = vpop.f32.mrf.mxu0
      %v4147 = vadd.f32 0.0, %v4146
      %v4148 = vpop.f32.mrf.mxu0
      %v4149 = vadd.f32 0.0, %v4148
      %4150 = vmatmul.bf16.gmra.mxu0 %v4064
      %v4151 = vpop.f32.mrf.mxu0
      %v4152 = vadd.f32 0.0, %v4151
      %v4153 = vpop.f32.mrf.mxu0
      %v4154 = vadd.f32 0.0, %v4153
      %4155 = vmatmul.bf16.gmra.mxu0 %v4067
      %v4156 = vpop.f32.mrf.mxu0
      %v4157 = vadd.f32 0.0, %v4156
      %v4158 = vpop.f32.mrf.mxu0
      %v4159 = vadd.f32 0.0, %v4158
      %4160 = vdwg.mxu0
      %v4161 = vadd.f32 %v3764, %v4082
      %v4162 = vadd.f32 %v3765, %v4084
      %v4163 = vadd.f32 %v3766, %v4087
      %v4164 = vadd.f32 %v3767, %v4089
      %v4165 = vadd.f32 %v3768, %v4092
      %v4166 = vadd.f32 %v3769, %v4094
      %v4167 = vadd.f32 %v3770, %v4097
      %v4168 = vadd.f32 %v3771, %v4099
      %v4169 = vadd.f32 %v3772, %v4102
      %v4170 = vadd.f32 %v3773, %v4104
      %v4171 = vadd.f32 %v3774, %v4107
      %v4172 = vadd.f32 %v3775, %v4109
      %v4173 = vadd.f32 %v3776, %v4112
      %v4174 = vadd.f32 %v3777, %v4114
      %v4175 = vadd.f32 %v3778, %v4117
      %v4176 = vadd.f32 %v3779, %v4119
      %v4177 = vadd.f32 %v3780, %v4122
      %v4178 = vadd.f32 %v3781, %v4124
      %v4179 = vadd.f32 %v3782, %v4127
      %v4180 = vadd.f32 %v3783, %v4129
      %v4181 = vadd.f32 %v3784, %v4132
      %v4182 = vadd.f32 %v3785, %v4134
      %v4183 = vadd.f32 %v3786, %v4137
      %v4184 = vadd.f32 %v3787, %v4139
      %v4185 = vadd.f32 %v3788, %v4142
      %v4186 = vadd.f32 %v3789, %v4144
      %v4187 = vadd.f32 %v3790, %v4147
      %v4188 = vadd.f32 %v3791, %v4149
      %v4189 = vadd.f32 %v3792, %v4152
      %v4190 = vadd.f32 %v3793, %v4154
      %v4191 = vadd.f32 %v3794, %v4157
      %v4192 = vadd.f32 %v3795, %v4159
      %v4193 = vld [vmem:[%s216] sm:$0x1]
      %v4194 = vperm.slane %v4193, 0
      %v4195 = vmul.f32 %v4161, %v4194
      %v4196 = vmul.f32 %v4162, %v4194
      %v4197 = vmul.f32 %v4163, %v4194
      %v4198 = vmul.f32 %v4164, %v4194
      %v4199 = vmul.f32 %v4165, %v4194
      %v4200 = vmul.f32 %v4166, %v4194
      %v4201 = vmul.f32 %v4167, %v4194
      %v4202 = vmul.f32 %v4168, %v4194
      %v4203 = vmul.f32 %v4169, %v4194
      %v4204 = vmul.f32 %v4170, %v4194
      %v4205 = vmul.f32 %v4171, %v4194
      %v4206 = vmul.f32 %v4172, %v4194
      %v4207 = vmul.f32 %v4173, %v4194
      %v4208 = vmul.f32 %v4174, %v4194
      %v4209 = vmul.f32 %v4175, %v4194
      %v4210 = vmul.f32 %v4176, %v4194
      %v4211 = vmul.f32 %v4177, %v4194
      %v4212 = vmul.f32 %v4178, %v4194
      %v4213 = vmul.f32 %v4179, %v4194
      %v4214 = vmul.f32 %v4180, %v4194
      %v4215 = vmul.f32 %v4181, %v4194
      %v4216 = vmul.f32 %v4182, %v4194
      %v4217 = vmul.f32 %v4183, %v4194
      %v4218 = vmul.f32 %v4184, %v4194
      %v4219 = vmul.f32 %v4185, %v4194
      %v4220 = vmul.f32 %v4186, %v4194
      %v4221 = vmul.f32 %v4187, %v4194
      %v4222 = vmul.f32 %v4188, %v4194
      %v4223 = vmul.f32 %v4189, %v4194
      %v4224 = vmul.f32 %v4190, %v4194
      %v4225 = vmul.f32 %v4191, %v4194
      %v4226 = vmul.f32 %v4192, %v4194
      %v4227 = vld [vmem:[%s216 + $0x1] sm:$0x1]
      %v4228 = vperm.slane %v4227, 0
      %v4229 = vadd.f32 %v4195, %v4228
      %v4230 = vadd.f32 %v4196, %v4228
      %v4231 = vadd.f32 %v4197, %v4228
      %v4232 = vadd.f32 %v4198, %v4228
      %v4233 = vadd.f32 %v4199, %v4228
      %v4234 = vadd.f32 %v4200, %v4228
      %v4235 = vadd.f32 %v4201, %v4228
      %v4236 = vadd.f32 %v4202, %v4228
      %v4237 = vadd.f32 %v4203, %v4228
      %v4238 = vadd.f32 %v4204, %v4228
      %v4239 = vadd.f32 %v4205, %v4228
      %v4240 = vadd.f32 %v4206, %v4228
      %v4241 = vadd.f32 %v4207, %v4228
      %v4242 = vadd.f32 %v4208, %v4228
      %v4243 = vadd.f32 %v4209, %v4228
      %v4244 = vadd.f32 %v4210, %v4228
      %v4245 = vadd.f32 %v4211, %v4228
      %v4246 = vadd.f32 %v4212, %v4228
      %v4247 = vadd.f32 %v4213, %v4228
      %v4248 = vadd.f32 %v4214, %v4228
      %v4249 = vadd.f32 %v4215, %v4228
      %v4250 = vadd.f32 %v4216, %v4228
      %v4251 = vadd.f32 %v4217, %v4228
      %v4252 = vadd.f32 %v4218, %v4228
      %v4253 = vadd.f32 %v4219, %v4228
      %v4254 = vadd.f32 %v4220, %v4228
      %v4255 = vadd.f32 %v4221, %v4228
      %v4256 = vadd.f32 %v4222, %v4228
      %v4257 = vadd.f32 %v4223, %v4228
      %v4258 = vadd.f32 %v4224, %v4228
      %v4259 = vadd.f32 %v4225, %v4228
      %v4260 = vadd.f32 %v4226, %v4228
      %vm4261 = vcmp.ge.f32.partialorder %v4229, 0.0
      %vm4262 = vcmp.ge.f32.partialorder %v4230, 0.0
      %vm4263 = vcmp.ge.f32.partialorder %v4231, 0.0
      %vm4264 = vcmp.ge.f32.partialorder %v4232, 0.0
      %vm4265 = vcmp.ge.f32.partialorder %v4233, 0.0
      %vm4266 = vcmp.ge.f32.partialorder %v4234, 0.0
      %vm4267 = vcmp.ge.f32.partialorder %v4235, 0.0
      %vm4268 = vcmp.ge.f32.partialorder %v4236, 0.0
      %vm4269 = vcmp.ge.f32.partialorder %v4237, 0.0
      %vm4270 = vcmp.ge.f32.partialorder %v4238, 0.0
      %vm4271 = vcmp.ge.f32.partialorder %v4239, 0.0
      %vm4272 = vcmp.ge.f32.partialorder %v4240, 0.0
      %vm4273 = vcmp.ge.f32.partialorder %v4241, 0.0
      %vm4274 = vcmp.ge.f32.partialorder %v4242, 0.0
      %vm4275 = vcmp.ge.f32.partialorder %v4243, 0.0
      %vm4276 = vcmp.ge.f32.partialorder %v4244, 0.0
      %vm4277 = vcmp.ge.f32.partialorder %v4245, 0.0
      %vm4278 = vcmp.ge.f32.partialorder %v4246, 0.0
      %vm4279 = vcmp.ge.f32.partialorder %v4247, 0.0
      %vm4280 = vcmp.ge.f32.partialorder %v4248, 0.0
      %vm4281 = vcmp.ge.f32.partialorder %v4249, 0.0
      %vm4282 = vcmp.ge.f32.partialorder %v4250, 0.0
      %vm4283 = vcmp.ge.f32.partialorder %v4251, 0.0
      %vm4284 = vcmp.ge.f32.partialorder %v4252, 0.0
      %vm4285 = vcmp.ge.f32.partialorder %v4253, 0.0
      %vm4286 = vcmp.ge.f32.partialorder %v4254, 0.0
      %vm4287 = vcmp.ge.f32.partialorder %v4255, 0.0
      %vm4288 = vcmp.ge.f32.partialorder %v4256, 0.0
      %vm4289 = vcmp.ge.f32.partialorder %v4257, 0.0
      %vm4290 = vcmp.ge.f32.partialorder %v4258, 0.0
      %vm4291 = vcmp.ge.f32.partialorder %v4259, 0.0
      %vm4292 = vcmp.ge.f32.partialorder %v4260, 0.0
      %v4293 = vld [vmem:[%s216 + $0x2] sm:$0x1]
      %v4294 = vperm.slane %v4293, 0
      %v4295 = vmul.f32 %v4294, %v4229
      %v4296 = vmul.f32 %v4294, %v4230
      %v4297 = vmul.f32 %v4294, %v4231
      %v4298 = vmul.f32 %v4294, %v4232
      %v4299 = vmul.f32 %v4294, %v4233
      %v4300 = vmul.f32 %v4294, %v4234
      %v4301 = vmul.f32 %v4294, %v4235
      %v4302 = vmul.f32 %v4294, %v4236
      %v4303 = vmul.f32 %v4294, %v4237
      %v4304 = vmul.f32 %v4294, %v4238
      %v4305 = vmul.f32 %v4294, %v4239
      %v4306 = vmul.f32 %v4294, %v4240
      %v4307 = vmul.f32 %v4294, %v4241
      %v4308 = vmul.f32 %v4294, %v4242
      %v4309 = vmul.f32 %v4294, %v4243
      %v4310 = vmul.f32 %v4294, %v4244
      %v4311 = vmul.f32 %v4294, %v4245
      %v4312 = vmul.f32 %v4294, %v4246
      %v4313 = vmul.f32 %v4294, %v4247
      %v4314 = vmul.f32 %v4294, %v4248
      %v4315 = vmul.f32 %v4294, %v4249
      %v4316 = vmul.f32 %v4294, %v4250
      %v4317 = vmul.f32 %v4294, %v4251
      %v4318 = vmul.f32 %v4294, %v4252
      %v4319 = vmul.f32 %v4294, %v4253
      %v4320 = vmul.f32 %v4294, %v4254
      %v4321 = vmul.f32 %v4294, %v4255
      %v4322 = vmul.f32 %v4294, %v4256
      %v4323 = vmul.f32 %v4294, %v4257
      %v4324 = vmul.f32 %v4294, %v4258
      %v4325 = vmul.f32 %v4294, %v4259
      %v4326 = vmul.f32 %v4294, %v4260
      %v4327 = vsel %vm4261, %v4229, %v4295
      %v4328 = vsel %vm4262, %v4230, %v4296
      %v4329 = vsel %vm4263, %v4231, %v4297
      %v4330 = vsel %vm4264, %v4232, %v4298
      %v4331 = vsel %vm4265, %v4233, %v4299
      %v4332 = vsel %vm4266, %v4234, %v4300
      %v4333 = vsel %vm4267, %v4235, %v4301
      %v4334 = vsel %vm4268, %v4236, %v4302
      %v4335 = vsel %vm4269, %v4237, %v4303
      %v4336 = vsel %vm4270, %v4238, %v4304
      %v4337 = vsel %vm4271, %v4239, %v4305
      %v4338 = vsel %vm4272, %v4240, %v4306
      %v4339 = vsel %vm4273, %v4241, %v4307
      %v4340 = vsel %vm4274, %v4242, %v4308
      %v4341 = vsel %vm4275, %v4243, %v4309
      %v4342 = vsel %vm4276, %v4244, %v4310
      %v4343 = vsel %vm4277, %v4245, %v4311
      %v4344 = vsel %vm4278, %v4246, %v4312
      %v4345 = vsel %vm4279, %v4247, %v4313
      %v4346 = vsel %vm4280, %v4248, %v4314
      %v4347 = vsel %vm4281, %v4249, %v4315
      %v4348 = vsel %vm4282, %v4250, %v4316
      %v4349 = vsel %vm4283, %v4251, %v4317
      %v4350 = vsel %vm4284, %v4252, %v4318
      %v4351 = vsel %vm4285, %v4253, %v4319
      %v4352 = vsel %vm4286, %v4254, %v4320
      %v4353 = vsel %vm4287, %v4255, %v4321
      %v4354 = vsel %vm4288, %v4256, %v4322
      %v4355 = vsel %vm4289, %v4257, %v4323
      %v4356 = vsel %vm4290, %v4258, %v4324
      %v4357 = vsel %vm4291, %v4259, %v4325
      %v4358 = vsel %vm4292, %v4260, %v4326
      %v4359 = vpack.c.bf16 %v4327, %v4327
      %v4360 = vpack.c.bf16 %v4328, %v4328
      %v4361 = vpack.c.bf16 %v4329, %v4329
      %v4362 = vpack.c.bf16 %v4330, %v4330
      %v4363 = vpack.c.bf16 %v4331, %v4331
      %v4364 = vpack.c.bf16 %v4332, %v4332
      %v4365 = vpack.c.bf16 %v4333, %v4333
      %v4366 = vpack.c.bf16 %v4334, %v4334
      %v4367 = vpack.c.bf16 %v4335, %v4335
      %v4368 = vpack.c.bf16 %v4336, %v4336
      %v4369 = vpack.c.bf16 %v4337, %v4337
      %v4370 = vpack.c.bf16 %v4338, %v4338
      %v4371 = vpack.c.bf16 %v4339, %v4339
      %v4372 = vpack.c.bf16 %v4340, %v4340
      %v4373 = vpack.c.bf16 %v4341, %v4341
      %v4374 = vpack.c.bf16 %v4342, %v4342
      %v4375 = vpack.c.bf16 %v4343, %v4343
      %v4376 = vpack.c.bf16 %v4344, %v4344
      %v4377 = vpack.c.bf16 %v4345, %v4345
      %v4378 = vpack.c.bf16 %v4346, %v4346
      %v4379 = vpack.c.bf16 %v4347, %v4347
      %v4380 = vpack.c.bf16 %v4348, %v4348
      %v4381 = vpack.c.bf16 %v4349, %v4349
      %v4382 = vpack.c.bf16 %v4350, %v4350
      %v4383 = vpack.c.bf16 %v4351, %v4351
      %v4384 = vpack.c.bf16 %v4352, %v4352
      %v4385 = vpack.c.bf16 %v4353, %v4353
      %v4386 = vpack.c.bf16 %v4354, %v4354
      %v4387 = vpack.c.bf16 %v4355, %v4355
      %v4388 = vpack.c.bf16 %v4356, %v4356
      %v4389 = vpack.c.bf16 %v4357, %v4357
      %v4390 = vpack.c.bf16 %v4358, %v4358
      %vm4391 = vcmask 60416
      %4392 = vst.msk [vmem:[%s224] sm:$0xf] %vm4391, %v4359
      %4393 = vst.msk [vmem:[%s224 + $0x4] sm:$0xf] %vm4391, %v4360
      %4394 = vst.msk [vmem:[%s224 + $0x8] sm:$0xf] %vm4391, %v4361
      %4395 = vst.msk [vmem:[%s224 + $0xc] sm:$0xf] %vm4391, %v4362
      %4396 = vst.msk [vmem:[%s224 + $0x10] sm:$0xf] %vm4391, %v4363
      %4397 = vst.msk [vmem:[%s224 + $0x14] sm:$0xf] %vm4391, %v4364
      %4398 = vst.msk [vmem:[%s224 + $0x18] sm:$0xf] %vm4391, %v4365
      %4399 = vst.msk [vmem:[%s224 + $0x1c] sm:$0xf] %vm4391, %v4366
      %4400 = vst.msk [vmem:[%s224 + $0x20] sm:$0xf] %vm4391, %v4367
      %4401 = vst.msk [vmem:[%s224 + $0x24] sm:$0xf] %vm4391, %v4368
      %4402 = vst.msk [vmem:[%s224 + $0x28] sm:$0xf] %vm4391, %v4369
      %4403 = vst.msk [vmem:[%s224 + $0x2c] sm:$0xf] %vm4391, %v4370
      %4404 = vst.msk [vmem:[%s224 + $0x30] sm:$0xf] %vm4391, %v4371
      %4405 = vst.msk [vmem:[%s224 + $0x34] sm:$0xf] %vm4391, %v4372
      %4406 = vst.msk [vmem:[%s224 + $0x38] sm:$0xf] %vm4391, %v4373
      %4407 = vst.msk [vmem:[%s224 + $0x3c] sm:$0xf] %vm4391, %v4374
      %4408 = vst.msk [vmem:[%s224 + $0x40] sm:$0xf] %vm4391, %v4375
      %4409 = vst.msk [vmem:[%s224 + $0x44] sm:$0xf] %vm4391, %v4376
      %4410 = vst.msk [vmem:[%s224 + $0x48] sm:$0xf] %vm4391, %v4377
      %4411 = vst.msk [vmem:[%s224 + $0x4c] sm:$0xf] %vm4391, %v4378
      %4412 = vst.msk [vmem:[%s224 + $0x50] sm:$0xf] %vm4391, %v4379
      %4413 = vst.msk [vmem:[%s224 + $0x54] sm:$0xf] %vm4391, %v4380
      %4414 = vst.msk [vmem:[%s224 + $0x58] sm:$0xf] %vm4391, %v4381
      %4415 = vst.msk [vmem:[%s224 + $0x5c] sm:$0xf] %vm4391, %v4382
      %4416 = vst.msk [vmem:[%s224 + $0x60] sm:$0xf] %vm4391, %v4383
      %4417 = vst.msk [vmem:[%s224 + $0x64] sm:$0xf] %vm4391, %v4384
      %4418 = vst.msk [vmem:[%s224 + $0x68] sm:$0xf] %vm4391, %v4385
      %4419 = vst.msk [vmem:[%s224 + $0x6c] sm:$0xf] %vm4391, %v4386
      %4420 = vst.msk [vmem:[%s224 + $0x70] sm:$0xf] %vm4391, %v4387
      %4421 = vst.msk [vmem:[%s224 + $0x74] sm:$0xf] %vm4391, %v4388
      %4422 = vst.msk [vmem:[%s224 + $0x78] sm:$0xf] %vm4391, %v4389
      %4423 = vst.msk [vmem:[%s224 + $0x7c] sm:$0xf] %vm4391, %v4390
      %p4424 = scmp.lt.s32.totalorder %s18, 1
      %s4425 = scalar_select %p4424, %s18, 1
      %p4426 = scmp.lt.s32.totalorder %s19, 0
      %s4427 = scalar_select %p4426, %s19, 0
      %s4428 = smul.addr %s4425, 32
      %s4429 = sadd.s32 %s4427, %s4428
      %s4430 = smul.addr %s4429, 4
      %s4431 = scalar_lea.vmem %s3, %s4430
      // Predicated region
      $region33: #{tpu_custom_call.1} parent=31 // pred_check
        %p4432 = pneg %p124
      $region34: #{tpu_custom_call.1} parent=31 // pred_check_branch
        %4434 = sbr.rel (%p4432) target = $region36
      $region35: #{tpu_custom_call.1} parent=31 // pred_region
        _
      $region36: #{tpu_custom_call.1} parent=31 // pred_fallthru
        _
    $region32: #{tpu_custom_call.1} parent=5 // pred_fallthru
      _
    %p4435 = scmp.le.s32.totalorder 2, %s9
    // Predicated region
    $region37: #{tpu_custom_call.1} parent=5 // pred_check
      %p4436 = pneg %p4435
    $region38: #{tpu_custom_call.1} parent=5 // pred_check_branch
      %4438 = sbr.rel (%p4436) target = $region40
    $region39: #{tpu_custom_call.1} parent=5 // pred_region
      %s4439 = ssub.s32 %s9, 2
      // Predicated region
      $region41: #{tpu_custom_call.1} parent=39 // pred_check
        %p4440 = pneg %p130
      $region42: #{tpu_custom_call.1} parent=39 // pred_check_branch
        %4442 = sbr.rel (%p4440) target = $region44
      $region43: #{tpu_custom_call.1} parent=39 // pred_region
        %p4443 = scmp.lt.s32.totalorder %s20, 1
        %s4444 = scalar_select %p4443, %s20, 1
        %p4445 = scmp.lt.s32.totalorder %s21, 0
        %s4446 = scalar_select %p4445, %s21, 0
        %s4447 = smul.addr %s4444, 32
        %s4448 = sadd.s32 %s4446, %s4447
        %s4449 = smul.addr %s4448, 4
        %s4450 = scalar_lea.vmem %s3, %s4449
      $region44: #{tpu_custom_call.1} parent=39 // pred_fallthru
        _
    $region40: #{tpu_custom_call.1} parent=5 // pred_fallthru
      _
  $region6: #{tpu_custom_call.1} parent=0 // loop_footer
    %s13 = sadd.s32 1, %s9
  $region7: #{tpu_custom_call.1} parent=0 // loop_footer_branch
    %8 = sbr.rel target = $region3
  $region8: #{tpu_custom_call.1} parent=0 // loop_exit
    _

</llo_original>
